<compile_context>
chip_gen: v6e
topology: v6e:2x2x1
jax: 0.10.0
libtpu: 0.0.40
codegen_flags: <defaults>
</compile_context>

<pallas_src>
import functools

import numpy as np
import jax
import jax.numpy as jnp
from jax import lax
from jax.experimental import pallas as pl
from jax.experimental.pallas import tpu as pltpu


def _round_up(v, m):
    return (v + m - 1) // m * m


def _const_index_map(rank):
    return lambda b: (0,) * rank


# ----------------------------------------------------------------------------
# Fused Pallas kernel: whole HINetSkipBlock forward for one batch element.
# ----------------------------------------------------------------------------
def _hinet_skip_kernel(x_ref, cmask_ref,                       # (1,Cin,Nx), (1,Nint)
                       wsc_ref, bsc_ref,                       # stacked [shortcut; block0 id] 1x1
                       w1a_ref, b1a_ref, w2a_ref, b2a_ref,     # block0 3x3 convs
                       w1b_ref, b1b_ref, w2b_ref, b2b_ref,     # block1 3x3 convs
                       wib_ref, bib_ref,                       # block1 identity 1x1
                       o_ref,                                  # (1, Cout, Nint)
                       t_pad, y_pad, u_pad, stage,             # VMEM scratch
                       *, P, interior, slope):
    Nint = cmask_ref.shape[1]          # flattened interior length, multiple of 128
    Nx = x_ref.shape[2]                # full padded slab length
    base = interior - P - 1            # offset of the padded image's first pad row
    cin = x_ref.shape[1]
    cmid = t_pad.shape[0]
    cout = o_ref.shape[1]

    # Zero only the pad stripes of the activation slabs.  The interior is fully
    # overwritten (with pad columns / rounded tail already zeroed via cmask), so
    # full-buffer zeroing would be wasted store bandwidth.  Done every grid step
    # so correctness holds even when the "parallel" batch axis splits across TCs.
    front = interior
    back = Nx - interior - Nint
    for buf in (t_pad, y_pad, u_pad):
        buf[:, pl.ds(0, front)] = jnp.zeros((buf.shape[0], front), buf.dtype)
        buf[:, pl.ds(interior + Nint, back)] = jnp.zeros((buf.shape[0], back), buf.dtype)

    cm = cmask_ref[...]                # (1, Nint) f32, grid-invariant constant

    def lrelu(v):
        return jnp.where(v >= 0, v, slope * v)

    def src_x(s):
        return x_ref[0, :, pl.ds(s, Nint)]

    def src(buf):
        return lambda s: buf[:, pl.ds(s, Nint)]

    def conv3x3(load_slice, c_in, w_ref_, b_ref_):
        # Stage the 9 shifted tap slices contiguously along K (lane-dense stores),
        # then a single MXU matmul (Cout, 9*Cin) @ (9*Cin, Nint), f32 accumulation.
        for k in range(9):
            dy, dx = divmod(k, 3)
            stage[pl.ds(k * c_in, c_in), :] = load_slice(base + dy * P + dx)
        return jnp.dot(w_ref_[...], stage[pl.ds(0, 9 * c_in), :],
                       preferred_element_type=jnp.float32) + b_ref_[...]

    # ---- shortcut 1x1 + block0 identity 1x1, folded into one matmul on x's interior ----
    sc_id = jnp.dot(wsc_ref[...], src_x(interior),
                    preferred_element_type=jnp.float32) + bsc_ref[...]
    skip = sc_id[:cout]                # pad columns are garbage; wrapper drops them
    id0 = sc_id[cout:]                 # block0 identity path

    # ---- HINetConvBlock 0: Cin -> Cmid ----
    t = lrelu(conv3x3(src_x, cin, w1a_ref, b1a_ref)) * cm
    t_pad[:, pl.ds(interior, Nint)] = t.astype(t_pad.dtype)
    t2 = lrelu(conv3x3(src(t_pad), cmid, w2a_ref, b2a_ref))
    y0 = (t2 + id0) * cm
    y0c = y0.astype(y_pad.dtype)
    y_pad[:, pl.ds(interior, Nint)] = y0c

    # block1 identity 1x1: reuse the in-register block0 output (== y_pad interior)
    id1 = jnp.dot(wib_ref[...], y0c, preferred_element_type=jnp.float32) + bib_ref[...]

    # ---- HINetConvBlock 1: Cmid -> Cout, with fused final skip add ----
    u = lrelu(conv3x3(src(y_pad), cmid, w1b_ref, b1b_ref)) * cm
    u_pad[:, pl.ds(interior, Nint)] = u.astype(u_pad.dtype)
    u2 = lrelu(conv3x3(src(u_pad), cout, w2b_ref, b2b_ref))

    # Pad columns / rounded tail of the output are garbage but are discarded by the
    # wrapper's [:, :, :, 1:W+1] slice -- do NOT reuse the raw kernel output directly.
    o_ref[0] = (u2 + id1 + skip).astype(o_ref.dtype)


# ----------------------------------------------------------------------------
# Public wrapper: NCHW in, NCHW out, one pallas_call over the batch.
# ----------------------------------------------------------------------------
def hinet_skip_block(x_nchw, params, *, relu_slope=0.2, compute_dtype=jnp.float32):
    B, Cin, H, W = x_nchw.shape
    Cout = params["shortcut_b"].shape[0]
    Cmid = params["block0"]["b1"].shape[0]
    Cmax = max(Cin, Cmid, Cout)

    P = W + 2                                   # padded row width in the flat layout
    nint_raw = H * P                            # real flattened interior length
    Nint = _round_up(nint_raw, 128)             # lane-dense / 128-aligned stores
    interior = _round_up(P + 1, 128)            # 128-aligned interior offset
    base = interior - (P + 1)
    Nx = _round_up(interior + Nint + P + 2, 128)

    # NCHW -> flattened, zero-padded CHW slabs (interior lands at lane `interior`).
    xp = jnp.pad(x_nchw, ((0, 0), (0, 0), (1, 1), (1, 1)))          # (B,Cin,H+2,P)
    xp = xp.reshape(B, Cin, (H + 2) * P)
    front = base + 1
    xp = jnp.pad(xp, ((0, 0), (0, 0), (front, Nx - front - (H + 2) * P)))
    xp = xp.astype(compute_dtype)

    # Hoisted mask: zero the two horizontal pad columns and the rounded tail.
    rel = np.arange(Nint)
    col = rel % P
    cmask_np = ((col != 0) & (col != P - 1) & (rel < nint_raw)).astype(np.float32)
    cmask = jnp.asarray(cmask_np).reshape(1, Nint)

    def conv_w(w):   # HWIO (3,3,ci,co) -> (co, 9*ci): K-stacked per-tap blocks
        ci, co = w.shape[2], w.shape[3]
        return jnp.transpose(w, (3, 0, 1, 2)).reshape(co, 9 * ci).astype(compute_dtype)

    def mat_w(w):    # (ci, co) -> (co, ci)
        return w.T.astype(compute_dtype)

    def col_b(b):    # (c,) -> (c, 1), kept f32 (f32 epilogue on all generations)
        return b.reshape(-1, 1).astype(jnp.float32)

    p0, p1 = params["block0"], params["block1"]
    w_sc_id = jnp.concatenate([mat_w(params["shortcut_w"]), mat_w(p0["wid"])], axis=0)
    b_sc_id = jnp.concatenate([col_b(params["shortcut_b"]), col_b(p0["bid"])], axis=0)

    ins = (
        xp, cmask,
        w_sc_id, b_sc_id,
        conv_w(p0["w1"]), col_b(p0["b1"]), conv_w(p0["w2"]), col_b(p0["b2"]),
        conv_w(p1["w1"]), col_b(p1["b1"]), conv_w(p1["w2"]), col_b(p1["b2"]),
        mat_w(p1["wid"]), col_b(p1["bid"]),
    )

    in_specs = [pl.BlockSpec((1, Cin, Nx), lambda b: (b, 0, 0))]
    for a in ins[1:]:
        # Small weight / bias / mask arrays with constant block index -> fetched
        # once, resident in VMEM across the whole batch grid.
        in_specs.append(pl.BlockSpec(a.shape, _const_index_map(a.ndim)))

    # Per-generation VMEM budget: derive the limit from actual residency instead
    # of a fixed cap.  (v5e/v6e have 128 MiB physical; v7x only 64 MiB -- if this
    # estimate approaches ~48 MiB, switch to the row-tiled variant before scaling.)
    isz = jnp.dtype(compute_dtype).itemsize
    weight_bytes = sum(int(np.prod(a.shape)) * a.dtype.itemsize for a in ins[1:])
    io_bytes = 2 * (Cin * Nx + Cout * Nint) * isz            # double-buffered blocks
    scratch_bytes = ((2 * Cmid + Cout) * Nx + 9 * Cmax * Nint) * isz
    vmem_needed = io_bytes + 2 * weight_bytes + scratch_bytes
    vmem_limit = int(max(32 << 20, min(int(vmem_needed * 1.5) + (4 << 20), 120 << 20)))

    kernel = functools.partial(_hinet_skip_kernel, P=P, interior=interior,
                               slope=relu_slope)

    y = pl.pallas_call(
        kernel,
        grid=(B,),
        in_specs=in_specs,
        out_specs=pl.BlockSpec((1, Cout, Nint), lambda b: (b, 0, 0)),
        out_shape=jax.ShapeDtypeStruct((B, Cout, Nint), compute_dtype),
        scratch_shapes=[
            pltpu.VMEM((Cmid, Nx), compute_dtype),        # t_pad (block0 conv1 output)
            pltpu.VMEM((Cmid, Nx), compute_dtype),        # y_pad (block0 output)
            pltpu.VMEM((Cout, Nx), compute_dtype),        # u_pad (block1 conv1 output)
            pltpu.VMEM((9 * Cmax, Nint), compute_dtype),  # K-stacked conv staging
        ],
        compiler_params=pltpu.CompilerParams(
            dimension_semantics=("parallel",),
            vmem_limit_bytes=vmem_limit,
        ),
    )(*ins)

    # Drop the rounded tail and the two built-in horizontal pad columns.
    # (One post-kernel pass over the compute_dtype output; half-width on bf16.)
    return y[:, :, :nint_raw].reshape(B, Cout, H, P)[:, :, :, 1:W + 1]


# ----------------------------------------------------------------------------
# Deterministic parameter init (shapes dictated by the module's __init__)
# ----------------------------------------------------------------------------
def init_params(key, cin, cout, cmid):
    ks = jax.random.split(key, 14)

    def w_conv(k, ci, co):
        return jax.random.normal(k, (3, 3, ci, co), jnp.float32) / jnp.sqrt(9.0 * ci)

    def w_mat(k, ci, co):
        return jax.random.normal(k, (ci, co), jnp.float32) / jnp.sqrt(1.0 * ci)

    def bias(k, co):
        return 0.01 * jax.random.normal(k, (co,), jnp.float32)

    return {
        "shortcut_w": w_mat(ks[0], cin, cout),
        "shortcut_b": bias(ks[1], cout),
        "block0": {
            "w1": w_conv(ks[2], cin, cmid), "b1": bias(ks[3], cmid),
            "w2": w_conv(ks[4], cmid, cmid), "b2": bias(ks[5], cmid),
            "wid": w_mat(ks[6], cin, cmid), "bid": bias(ks[7], cmid),
        },
        "block1": {
            "w1": w_conv(ks[8], cmid, cout), "b1": bias(ks[9], cout),
            "w2": w_conv(ks[10], cout, cout), "b2": bias(ks[11], cout),
            "wid": w_mat(ks[12], cmid, cout), "bid": bias(ks[13], cout),
        },
    }


# ----------------------------------------------------------------------------
# Pure-JAX reference (lax.conv) for numerical validation
# ----------------------------------------------------------------------------
def _ref_conv(x, w, b, padding):
    y = lax.conv_general_dilated(
        x, w, window_strides=(1, 1), padding=padding,
        dimension_numbers=("NHWC", "HWIO", "NHWC"))
    return y + b.reshape(1, 1, 1, -1)


def _ref_block(x, p):
    lrelu = lambda v: jnp.where(v >= 0, v, 0.2 * v)
    y = lrelu(_ref_conv(x, p["w1"], p["b1"], ((1, 1), (1, 1))))
    y = lrelu(_ref_conv(y, p["w2"], p["b2"], ((1, 1), (1, 1))))
    y = y + _ref_conv(x, p["wid"].reshape(1, 1, *p["wid"].shape), p["bid"],
                      ((0, 0), (0, 0)))
    return y


def ref_forward(x_nchw, params):
    x = jnp.transpose(x_nchw, (0, 2, 3, 1))
    x_skip = _ref_conv(x, params["shortcut_w"].reshape(1, 1, *params["shortcut_w"].shape),
                       params["shortcut_b"], ((0, 0), (0, 0)))
    y = _ref_block(x, params["block0"])
    y = _ref_block(y, params["block1"])
    y = y + x_skip
    return jnp.transpose(y, (0, 3, 1, 2))


if __name__ == "__main__":
    B, Cin, H, W = 2, 4, 16, 16
    Cout, Cmid = 4, 32   # mid_channels kept small for the synthetic test

    key = jax.random.PRNGKey(0)
    kx, kp = jax.random.split(key)
    x_nchw = jax.random.normal(kx, (B, Cin, H, W), jnp.float32)
    params = init_params(kp, Cin, Cout, Cmid)

    # f32 path (validated tightly against the lax.conv reference)
    out = jax.block_until_ready(jax.jit(hinet_skip_block)(x_nchw, params))
    assert out.shape == (B, Cout, H, W)

    ref = jax.block_until_ready(ref_forward(x_nchw, params))
    if not np.allclose(np.asarray(out), np.asarray(ref), atol=2e-3, rtol=2e-3):
        err = float(np.max(np.abs(np.asarray(out) - np.asarray(ref))))
        raise SystemExit(f"mismatch vs reference (f32), max abs err = {err:e}")

    # bf16 MXU / bf16 intermediates / bf16 output path (valid on v5e/v6e/v7x);
    # f32 MXU accumulation and f32 epilogue in-kernel.
    fwd_bf16 = jax.jit(functools.partial(hinet_skip_block, compute_dtype=jnp.bfloat16))
    out_bf16 = jax.block_until_ready(fwd_bf16(x_nchw, params))
    out_bf16_f32 = np.asarray(out_bf16.astype(jnp.float32))
    if not np.allclose(out_bf16_f32, np.asarray(ref), atol=1e-1, rtol=1e-1):
        err = float(np.max(np.abs(out_bf16_f32 - np.asarray(ref))))
        raise SystemExit(f"mismatch vs reference (bf16), max abs err = {err:e}")

    print("KERNEL_OK")
</pallas_src>

<mosaic_0001>
module attributes {stable_mosaic.version = 11 : i64} {
  func.func @_hinet_skip_kernel(%arg0: i32, %arg1: memref<1x4x640xf32, #tpu.memory_space<vmem>>, %arg2: memref<1x384xf32, #tpu.memory_space<vmem>>, %arg3: memref<36x4xf32, #tpu.memory_space<vmem>>, %arg4: memref<36x1xf32, #tpu.memory_space<vmem>>, %arg5: memref<32x36xf32, #tpu.memory_space<vmem>>, %arg6: memref<32x1xf32, #tpu.memory_space<vmem>>, %arg7: memref<32x288xf32, #tpu.memory_space<vmem>>, %arg8: memref<32x1xf32, #tpu.memory_space<vmem>>, %arg9: memref<4x288xf32, #tpu.memory_space<vmem>>, %arg10: memref<4x1xf32, #tpu.memory_space<vmem>>, %arg11: memref<4x36xf32, #tpu.memory_space<vmem>>, %arg12: memref<4x1xf32, #tpu.memory_space<vmem>>, %arg13: memref<4x32xf32, #tpu.memory_space<vmem>>, %arg14: memref<4x1xf32, #tpu.memory_space<vmem>>, %arg15: memref<1x4x384xf32, #tpu.memory_space<vmem>>, %arg16: memref<32x640xf32, #tpu.memory_space<vmem>>, %arg17: memref<32x640xf32, #tpu.memory_space<vmem>>, %arg18: memref<4x640xf32, #tpu.memory_space<vmem>>, %arg19: memref<288x384xf32, #tpu.memory_space<vmem>>) attributes {dimension_semantics = [#tpu.dimension_semantics<parallel>], iteration_bounds = array<i64: 2>, scalar_prefetch = 0 : i64, scratch_operands = 4 : i64, tpu.core_type = #tpu.core_type<tc>, window_params = [{transform_indices = @transform_0, window_bounds = array<i64: 1, 4, 640>}, {pipeline_mode = #tpu.pipeline_mode<synchronous>, transform_indices = @transform_1, window_bounds = array<i64: 1, 384>}, {pipeline_mode = #tpu.pipeline_mode<synchronous>, transform_indices = @transform_2, window_bounds = array<i64: 36, 4>}, {pipeline_mode = #tpu.pipeline_mode<synchronous>, transform_indices = @transform_3, window_bounds = array<i64: 36, 1>}, {pipeline_mode = #tpu.pipeline_mode<synchronous>, transform_indices = @transform_4, window_bounds = array<i64: 32, 36>}, {pipeline_mode = #tpu.pipeline_mode<synchronous>, transform_indices = @transform_5, window_bounds = array<i64: 32, 1>}, {pipeline_mode = #tpu.pipeline_mode<synchronous>, transform_indices = @transform_6, window_bounds = array<i64: 32, 288>}, {pipeline_mode = #tpu.pipeline_mode<synchronous>, transform_indices = @transform_7, window_bounds = array<i64: 32, 1>}, {pipeline_mode = #tpu.pipeline_mode<synchronous>, transform_indices = @transform_8, window_bounds = array<i64: 4, 288>}, {pipeline_mode = #tpu.pipeline_mode<synchronous>, transform_indices = @transform_9, window_bounds = array<i64: 4, 1>}, {pipeline_mode = #tpu.pipeline_mode<synchronous>, transform_indices = @transform_10, window_bounds = array<i64: 4, 36>}, {pipeline_mode = #tpu.pipeline_mode<synchronous>, transform_indices = @transform_11, window_bounds = array<i64: 4, 1>}, {pipeline_mode = #tpu.pipeline_mode<synchronous>, transform_indices = @transform_12, window_bounds = array<i64: 4, 32>}, {pipeline_mode = #tpu.pipeline_mode<synchronous>, transform_indices = @transform_13, window_bounds = array<i64: 4, 1>}, {transform_indices = @transform_14, window_bounds = array<i64: 1, 4, 384>}]} {
    %cst = arith.constant 0.000000e+00 : f32
    %0 = vector.broadcast %cst : f32 to vector<32x128xf32>
    %c0 = arith.constant 0 : index
    %c0_0 = arith.constant 0 : index
    %1 = vector.load %arg16[%c0, %c0_0] : memref<32x640xf32, #tpu.memory_space<vmem>>, vector<32x128xf32>
    tpu.vector_store %arg16[%c0, %c0_0], %0 {strides = array<i32>} : memref<32x640xf32, #tpu.memory_space<vmem>>, vector<32x128xf32>,
    %cst_1 = arith.constant 0.000000e+00 : f32
    %2 = vector.broadcast %cst_1 : f32 to vector<32x128xf32>
    %c0_2 = arith.constant 0 : index
    %c512 = arith.constant 512 : index
    %3 = vector.load %arg16[%c0_2, %c512] : memref<32x640xf32, #tpu.memory_space<vmem>>, vector<32x128xf32>
    tpu.vector_store %arg16[%c0_2, %c512], %2 {strides = array<i32>} : memref<32x640xf32, #tpu.memory_space<vmem>>, vector<32x128xf32>,
    %cst_3 = arith.constant 0.000000e+00 : f32
    %4 = vector.broadcast %cst_3 : f32 to vector<32x128xf32>
    %c0_4 = arith.constant 0 : index
    %c0_5 = arith.constant 0 : index
    %5 = vector.load %arg17[%c0_4, %c0_5] : memref<32x640xf32, #tpu.memory_space<vmem>>, vector<32x128xf32>
    tpu.vector_store %arg17[%c0_4, %c0_5], %4 {strides = array<i32>} : memref<32x640xf32, #tpu.memory_space<vmem>>, vector<32x128xf32>,
    %cst_6 = arith.constant 0.000000e+00 : f32
    %6 = vector.broadcast %cst_6 : f32 to vector<32x128xf32>
    %c0_7 = arith.constant 0 : index
    %c512_8 = arith.constant 512 : index
    %7 = vector.load %arg17[%c0_7, %c512_8] : memref<32x640xf32, #tpu.memory_space<vmem>>, vector<32x128xf32>
    tpu.vector_store %arg17[%c0_7, %c512_8], %6 {strides = array<i32>} : memref<32x640xf32, #tpu.memory_space<vmem>>, vector<32x128xf32>,
    %cst_9 = arith.constant 0.000000e+00 : f32
    %8 = vector.broadcast %cst_9 : f32 to vector<4x128xf32>
    %c0_10 = arith.constant 0 : index
    %c0_11 = arith.constant 0 : index
    %9 = vector.load %arg18[%c0_10, %c0_11] : memref<4x640xf32, #tpu.memory_space<vmem>>, vector<4x128xf32>
    tpu.vector_store %arg18[%c0_10, %c0_11], %8 {strides = array<i32>} : memref<4x640xf32, #tpu.memory_space<vmem>>, vector<4x128xf32>,
    %cst_12 = arith.constant 0.000000e+00 : f32
    %10 = vector.broadcast %cst_12 : f32 to vector<4x128xf32>
    %c0_13 = arith.constant 0 : index
    %c512_14 = arith.constant 512 : index
    %11 = vector.load %arg18[%c0_13, %c512_14] : memref<4x640xf32, #tpu.memory_space<vmem>>, vector<4x128xf32>
    tpu.vector_store %arg18[%c0_13, %c512_14], %10 {strides = array<i32>} : memref<4x640xf32, #tpu.memory_space<vmem>>, vector<4x128xf32>,
    %c0_15 = arith.constant 0 : index
    %c0_16 = arith.constant 0 : index
    %12 = vector.load %arg2[%c0_15, %c0_16] : memref<1x384xf32, #tpu.memory_space<vmem>>, vector<1x384xf32>
    %c0_17 = arith.constant 0 : index
    %c0_18 = arith.constant 0 : index
    %13 = vector.load %arg3[%c0_17, %c0_18] : memref<36x4xf32, #tpu.memory_space<vmem>>, vector<36x4xf32>
    %c0_19 = arith.constant 0 : index
    %c0_20 = arith.constant 0 : index
    %c128 = arith.constant 128 : index
    %14 = vector.load %arg1[%c0_19, %c0_20, %c128] : memref<1x4x640xf32, #tpu.memory_space<vmem>>, vector<1x4x384xf32>
    %15 = vector.shape_cast %14 : vector<1x4x384xf32> to vector<4x384xf32>
    %cst_21 = arith.constant dense<0.000000e+00> : vector<36x384xf32>
    %16 = tpu.matmul %13, %15, %cst_21 {dimension_numbers = #tpu.dot_dimension_numbers<[1], [0], [0], [1], [0, 0, 1, 1], [], []>} : vector<36x4xf32>, vector<4x384xf32>, vector<36x384xf32> -> vector<36x384xf32>
    %c0_22 = arith.constant 0 : index
    %c0_23 = arith.constant 0 : index
    %17 = vector.load %arg4[%c0_22, %c0_23] : memref<36x1xf32, #tpu.memory_space<vmem>>, vector<36x1xf32>
    %18 = vector.broadcast %17 : vector<36x1xf32> to vector<36x384xf32>
    %19 = arith.addf %16, %18 : vector<36x384xf32>
    %20 = vector.extract_strided_slice %19 {offsets = [0, 0], sizes = [4, 384], strides = [1, 1]} : vector<36x384xf32> to vector<4x384xf32>
    %21 = vector.extract_strided_slice %19 {offsets = [4, 0], sizes = [32, 384], strides = [1, 1]} : vector<36x384xf32> to vector<32x384xf32>
    %c0_24 = arith.constant 0 : index
    %c0_25 = arith.constant 0 : index
    %c109 = arith.constant 109 : index
    %22 = vector.load %arg1[%c0_24, %c0_25, %c109] : memref<1x4x640xf32, #tpu.memory_space<vmem>>, vector<1x4x384xf32>
    %23 = vector.shape_cast %22 : vector<1x4x384xf32> to vector<4x384xf32>
    %c0_26 = arith.constant 0 : index
    %c0_27 = arith.constant 0 : index
    %24 = vector.load %arg19[%c0_26, %c0_27] : memref<288x384xf32, #tpu.memory_space<vmem>>, vector<4x384xf32>
    tpu.vector_store %arg19[%c0_26, %c0_27], %23 {strides = array<i32>} : memref<288x384xf32, #tpu.memory_space<vmem>>, vector<4x384xf32>,
    %c0_28 = arith.constant 0 : index
    %c0_29 = arith.constant 0 : index
    %c110 = arith.constant 110 : index
    %25 = vector.load %arg1[%c0_28, %c0_29, %c110] : memref<1x4x640xf32, #tpu.memory_space<vmem>>, vector<1x4x384xf32>
    %26 = vector.shape_cast %25 : vector<1x4x384xf32> to vector<4x384xf32>
    %c4 = arith.constant 4 : index
    %c0_30 = arith.constant 0 : index
    %27 = vector.load %arg19[%c4, %c0_30] : memref<288x384xf32, #tpu.memory_space<vmem>>, vector<4x384xf32>
    tpu.vector_store %arg19[%c4, %c0_30], %26 {strides = array<i32>} : memref<288x384xf32, #tpu.memory_space<vmem>>, vector<4x384xf32>,
    %c0_31 = arith.constant 0 : index
    %c0_32 = arith.constant 0 : index
    %c111 = arith.constant 111 : index
    %28 = vector.load %arg1[%c0_31, %c0_32, %c111] : memref<1x4x640xf32, #tpu.memory_space<vmem>>, vector<1x4x384xf32>
    %29 = vector.shape_cast %28 : vector<1x4x384xf32> to vector<4x384xf32>
    %c8 = arith.constant 8 : index
    %c0_33 = arith.constant 0 : index
    %30 = vector.load %arg19[%c8, %c0_33] : memref<288x384xf32, #tpu.memory_space<vmem>>, vector<4x384xf32>
    tpu.vector_store %arg19[%c8, %c0_33], %29 {strides = array<i32>} : memref<288x384xf32, #tpu.memory_space<vmem>>, vector<4x384xf32>,
    %c0_34 = arith.constant 0 : index
    %c0_35 = arith.constant 0 : index
    %c127 = arith.constant 127 : index
    %31 = vector.load %arg1[%c0_34, %c0_35, %c127] : memref<1x4x640xf32, #tpu.memory_space<vmem>>, vector<1x4x384xf32>
    %32 = vector.shape_cast %31 : vector<1x4x384xf32> to vector<4x384xf32>
    %c12 = arith.constant 12 : index
    %c0_36 = arith.constant 0 : index
    %33 = vector.load %arg19[%c12, %c0_36] : memref<288x384xf32, #tpu.memory_space<vmem>>, vector<4x384xf32>
    tpu.vector_store %arg19[%c12, %c0_36], %32 {strides = array<i32>} : memref<288x384xf32, #tpu.memory_space<vmem>>, vector<4x384xf32>,
    %c0_37 = arith.constant 0 : index
    %c0_38 = arith.constant 0 : index
    %c128_39 = arith.constant 128 : index
    %34 = vector.load %arg1[%c0_37, %c0_38, %c128_39] : memref<1x4x640xf32, #tpu.memory_space<vmem>>, vector<1x4x384xf32>
    %35 = vector.shape_cast %34 : vector<1x4x384xf32> to vector<4x384xf32>
    %c16 = arith.constant 16 : index
    %c0_40 = arith.constant 0 : index
    %36 = vector.load %arg19[%c16, %c0_40] : memref<288x384xf32, #tpu.memory_space<vmem>>, vector<4x384xf32>
    tpu.vector_store %arg19[%c16, %c0_40], %35 {strides = array<i32>} : memref<288x384xf32, #tpu.memory_space<vmem>>, vector<4x384xf32>,
    %c0_41 = arith.constant 0 : index
    %c0_42 = arith.constant 0 : index
    %c129 = arith.constant 129 : index
    %37 = vector.load %arg1[%c0_41, %c0_42, %c129] : memref<1x4x640xf32, #tpu.memory_space<vmem>>, vector<1x4x384xf32>
    %38 = vector.shape_cast %37 : vector<1x4x384xf32> to vector<4x384xf32>
    %c20 = arith.constant 20 : index
    %c0_43 = arith.constant 0 : index
    %39 = vector.load %arg19[%c20, %c0_43] : memref<288x384xf32, #tpu.memory_space<vmem>>, vector<4x384xf32>
    tpu.vector_store %arg19[%c20, %c0_43], %38 {strides = array<i32>} : memref<288x384xf32, #tpu.memory_space<vmem>>, vector<4x384xf32>,
    %c0_44 = arith.constant 0 : index
    %c0_45 = arith.constant 0 : index
    %c145 = arith.constant 145 : index
    %40 = vector.load %arg1[%c0_44, %c0_45, %c145] : memref<1x4x640xf32, #tpu.memory_space<vmem>>, vector<1x4x384xf32>
    %41 = vector.shape_cast %40 : vector<1x4x384xf32> to vector<4x384xf32>
    %c24 = arith.constant 24 : index
    %c0_46 = arith.constant 0 : index
    %42 = vector.load %arg19[%c24, %c0_46] : memref<288x384xf32, #tpu.memory_space<vmem>>, vector<4x384xf32>
    tpu.vector_store %arg19[%c24, %c0_46], %41 {strides = array<i32>} : memref<288x384xf32, #tpu.memory_space<vmem>>, vector<4x384xf32>,
    %c0_47 = arith.constant 0 : index
    %c0_48 = arith.constant 0 : index
    %c146 = arith.constant 146 : index
    %43 = vector.load %arg1[%c0_47, %c0_48, %c146] : memref<1x4x640xf32, #tpu.memory_space<vmem>>, vector<1x4x384xf32>
    %44 = vector.shape_cast %43 : vector<1x4x384xf32> to vector<4x384xf32>
    %c28 = arith.constant 28 : index
    %c0_49 = arith.constant 0 : index
    %45 = vector.load %arg19[%c28, %c0_49] : memref<288x384xf32, #tpu.memory_space<vmem>>, vector<4x384xf32>
    tpu.vector_store %arg19[%c28, %c0_49], %44 {strides = array<i32>} : memref<288x384xf32, #tpu.memory_space<vmem>>, vector<4x384xf32>,
    %c0_50 = arith.constant 0 : index
    %c0_51 = arith.constant 0 : index
    %c147 = arith.constant 147 : index
    %46 = vector.load %arg1[%c0_50, %c0_51, %c147] : memref<1x4x640xf32, #tpu.memory_space<vmem>>, vector<1x4x384xf32>
    %47 = vector.shape_cast %46 : vector<1x4x384xf32> to vector<4x384xf32>
    %c32 = arith.constant 32 : index
    %c0_52 = arith.constant 0 : index
    %48 = vector.load %arg19[%c32, %c0_52] : memref<288x384xf32, #tpu.memory_space<vmem>>, vector<4x384xf32>
    tpu.vector_store %arg19[%c32, %c0_52], %47 {strides = array<i32>} : memref<288x384xf32, #tpu.memory_space<vmem>>, vector<4x384xf32>,
    %c0_53 = arith.constant 0 : index
    %c0_54 = arith.constant 0 : index
    %49 = vector.load %arg5[%c0_53, %c0_54] : memref<32x36xf32, #tpu.memory_space<vmem>>, vector<32x36xf32>
    %c0_55 = arith.constant 0 : index
    %c0_56 = arith.constant 0 : index
    %50 = vector.load %arg19[%c0_55, %c0_56] : memref<288x384xf32, #tpu.memory_space<vmem>>, vector<36x384xf32>
    %cst_57 = arith.constant dense<0.000000e+00> : vector<32x384xf32>
    %51 = tpu.matmul %49, %50, %cst_57 {dimension_numbers = #tpu.dot_dimension_numbers<[1], [0], [0], [1], [0, 0, 1, 1], [], []>} : vector<32x36xf32>, vector<36x384xf32>, vector<32x384xf32> -> vector<32x384xf32>
    %c0_58 = arith.constant 0 : index
    %c0_59 = arith.constant 0 : index
    %52 = vector.load %arg6[%c0_58, %c0_59] : memref<32x1xf32, #tpu.memory_space<vmem>>, vector<32x1xf32>
    %53 = vector.broadcast %52 : vector<32x1xf32> to vector<32x384xf32>
    %54 = arith.addf %51, %53 : vector<32x384xf32>
    %cst_60 = arith.constant 0.000000e+00 : f32
    %55 = vector.broadcast %cst_60 : f32 to vector<32x384xf32>
    %56 = arith.cmpf oge, %54, %55 : vector<32x384xf32>
    %cst_61 = arith.constant 2.000000e-01 : f32
    %57 = vector.broadcast %cst_61 : f32 to vector<32x384xf32>
    %58 = arith.mulf %57, %54 : vector<32x384xf32>
    %59 = arith.select %56, %54, %58 : vector<32x384xi1>, vector<32x384xf32>
    %60 = vector.broadcast %12 : vector<1x384xf32> to vector<32x384xf32>
    %61 = arith.mulf %59, %60 : vector<32x384xf32>
    %c0_62 = arith.constant 0 : index
    %c128_63 = arith.constant 128 : index
    %62 = vector.load %arg16[%c0_62, %c128_63] : memref<32x640xf32, #tpu.memory_space<vmem>>, vector<32x384xf32>
    tpu.vector_store %arg16[%c0_62, %c128_63], %61 {strides = array<i32>} : memref<32x640xf32, #tpu.memory_space<vmem>>, vector<32x384xf32>,
    %c0_64 = arith.constant 0 : index
    %c109_65 = arith.constant 109 : index
    %63 = vector.load %arg16[%c0_64, %c109_65] : memref<32x640xf32, #tpu.memory_space<vmem>>, vector<32x384xf32>
    %c0_66 = arith.constant 0 : index
    %c0_67 = arith.constant 0 : index
    %64 = vector.load %arg19[%c0_66, %c0_67] : memref<288x384xf32, #tpu.memory_space<vmem>>, vector<32x384xf32>
    tpu.vector_store %arg19[%c0_66, %c0_67], %63 {strides = array<i32>} : memref<288x384xf32, #tpu.memory_space<vmem>>, vector<32x384xf32>,
    %c0_68 = arith.constant 0 : index
    %c110_69 = arith.constant 110 : index
    %65 = vector.load %arg16[%c0_68, %c110_69] : memref<32x640xf32, #tpu.memory_space<vmem>>, vector<32x384xf32>
    %c32_70 = arith.constant 32 : index
    %c0_71 = arith.constant 0 : index
    %66 = vector.load %arg19[%c32_70, %c0_71] : memref<288x384xf32, #tpu.memory_space<vmem>>, vector<32x384xf32>
    tpu.vector_store %arg19[%c32_70, %c0_71], %65 {strides = array<i32>} : memref<288x384xf32, #tpu.memory_space<vmem>>, vector<32x384xf32>,
    %c0_72 = arith.constant 0 : index
    %c111_73 = arith.constant 111 : index
    %67 = vector.load %arg16[%c0_72, %c111_73] : memref<32x640xf32, #tpu.memory_space<vmem>>, vector<32x384xf32>
    %c64 = arith.constant 64 : index
    %c0_74 = arith.constant 0 : index
    %68 = vector.load %arg19[%c64, %c0_74] : memref<288x384xf32, #tpu.memory_space<vmem>>, vector<32x384xf32>
    tpu.vector_store %arg19[%c64, %c0_74], %67 {strides = array<i32>} : memref<288x384xf32, #tpu.memory_space<vmem>>, vector<32x384xf32>,
    %c0_75 = arith.constant 0 : index
    %c127_76 = arith.constant 127 : index
    %69 = vector.load %arg16[%c0_75, %c127_76] : memref<32x640xf32, #tpu.memory_space<vmem>>, vector<32x384xf32>
    %c96 = arith.constant 96 : index
    %c0_77 = arith.constant 0 : index
    %70 = vector.load %arg19[%c96, %c0_77] : memref<288x384xf32, #tpu.memory_space<vmem>>, vector<32x384xf32>
    tpu.vector_store %arg19[%c96, %c0_77], %69 {strides = array<i32>} : memref<288x384xf32, #tpu.memory_space<vmem>>, vector<32x384xf32>,
    %c0_78 = arith.constant 0 : index
    %c128_79 = arith.constant 128 : index
    %71 = vector.load %arg16[%c0_78, %c128_79] : memref<32x640xf32, #tpu.memory_space<vmem>>, vector<32x384xf32>
    %c128_80 = arith.constant 128 : index
    %c0_81 = arith.constant 0 : index
    %72 = vector.load %arg19[%c128_80, %c0_81] : memref<288x384xf32, #tpu.memory_space<vmem>>, vector<32x384xf32>
    tpu.vector_store %arg19[%c128_80, %c0_81], %71 {strides = array<i32>} : memref<288x384xf32, #tpu.memory_space<vmem>>, vector<32x384xf32>,
    %c0_82 = arith.constant 0 : index
    %c129_83 = arith.constant 129 : index
    %73 = vector.load %arg16[%c0_82, %c129_83] : memref<32x640xf32, #tpu.memory_space<vmem>>, vector<32x384xf32>
    %c160 = arith.constant 160 : index
    %c0_84 = arith.constant 0 : index
    %74 = vector.load %arg19[%c160, %c0_84] : memref<288x384xf32, #tpu.memory_space<vmem>>, vector<32x384xf32>
    tpu.vector_store %arg19[%c160, %c0_84], %73 {strides = array<i32>} : memref<288x384xf32, #tpu.memory_space<vmem>>, vector<32x384xf32>,
    %c0_85 = arith.constant 0 : index
    %c145_86 = arith.constant 145 : index
    %75 = vector.load %arg16[%c0_85, %c145_86] : memref<32x640xf32, #tpu.memory_space<vmem>>, vector<32x384xf32>
    %c192 = arith.constant 192 : index
    %c0_87 = arith.constant 0 : index
    %76 = vector.load %arg19[%c192, %c0_87] : memref<288x384xf32, #tpu.memory_space<vmem>>, vector<32x384xf32>
    tpu.vector_store %arg19[%c192, %c0_87], %75 {strides = array<i32>} : memref<288x384xf32, #tpu.memory_space<vmem>>, vector<32x384xf32>,
    %c0_88 = arith.constant 0 : index
    %c146_89 = arith.constant 146 : index
    %77 = vector.load %arg16[%c0_88, %c146_89] : memref<32x640xf32, #tpu.memory_space<vmem>>, vector<32x384xf32>
    %c224 = arith.constant 224 : index
    %c0_90 = arith.constant 0 : index
    %78 = vector.load %arg19[%c224, %c0_90] : memref<288x384xf32, #tpu.memory_space<vmem>>, vector<32x384xf32>
    tpu.vector_store %arg19[%c224, %c0_90], %77 {strides = array<i32>} : memref<288x384xf32, #tpu.memory_space<vmem>>, vector<32x384xf32>,
    %c0_91 = arith.constant 0 : index
    %c147_92 = arith.constant 147 : index
    %79 = vector.load %arg16[%c0_91, %c147_92] : memref<32x640xf32, #tpu.memory_space<vmem>>, vector<32x384xf32>
    %c256 = arith.constant 256 : index
    %c0_93 = arith.constant 0 : index
    %80 = vector.load %arg19[%c256, %c0_93] : memref<288x384xf32, #tpu.memory_space<vmem>>, vector<32x384xf32>
    tpu.vector_store %arg19[%c256, %c0_93], %79 {strides = array<i32>} : memref<288x384xf32, #tpu.memory_space<vmem>>, vector<32x384xf32>,
    %c0_94 = arith.constant 0 : index
    %c0_95 = arith.constant 0 : index
    %81 = vector.load %arg7[%c0_94, %c0_95] : memref<32x288xf32, #tpu.memory_space<vmem>>, vector<32x288xf32>
    %c0_96 = arith.constant 0 : index
    %c0_97 = arith.constant 0 : index
    %82 = vector.load %arg19[%c0_96, %c0_97] : memref<288x384xf32, #tpu.memory_space<vmem>>, vector<288x384xf32>
    %cst_98 = arith.constant dense<0.000000e+00> : vector<32x384xf32>
    %83 = tpu.matmul %81, %82, %cst_98 {dimension_numbers = #tpu.dot_dimension_numbers<[1], [0], [0], [1], [0, 0, 1, 1], [], []>} : vector<32x288xf32>, vector<288x384xf32>, vector<32x384xf32> -> vector<32x384xf32>
    %c0_99 = arith.constant 0 : index
    %c0_100 = arith.constant 0 : index
    %84 = vector.load %arg8[%c0_99, %c0_100] : memref<32x1xf32, #tpu.memory_space<vmem>>, vector<32x1xf32>
    %85 = vector.broadcast %84 : vector<32x1xf32> to vector<32x384xf32>
    %86 = arith.addf %83, %85 : vector<32x384xf32>
    %cst_101 = arith.constant 0.000000e+00 : f32
    %87 = vector.broadcast %cst_101 : f32 to vector<32x384xf32>
    %88 = arith.cmpf oge, %86, %87 : vector<32x384xf32>
    %cst_102 = arith.constant 2.000000e-01 : f32
    %89 = vector.broadcast %cst_102 : f32 to vector<32x384xf32>
    %90 = arith.mulf %89, %86 : vector<32x384xf32>
    %91 = arith.select %88, %86, %90 : vector<32x384xi1>, vector<32x384xf32>
    %92 = arith.addf %91, %21 : vector<32x384xf32>
    %93 = vector.broadcast %12 : vector<1x384xf32> to vector<32x384xf32>
    %94 = arith.mulf %92, %93 : vector<32x384xf32>
    %c0_103 = arith.constant 0 : index
    %c128_104 = arith.constant 128 : index
    %95 = vector.load %arg17[%c0_103, %c128_104] : memref<32x640xf32, #tpu.memory_space<vmem>>, vector<32x384xf32>
    tpu.vector_store %arg17[%c0_103, %c128_104], %94 {strides = array<i32>} : memref<32x640xf32, #tpu.memory_space<vmem>>, vector<32x384xf32>,
    %c0_105 = arith.constant 0 : index
    %c0_106 = arith.constant 0 : index
    %96 = vector.load %arg13[%c0_105, %c0_106] : memref<4x32xf32, #tpu.memory_space<vmem>>, vector<4x32xf32>
    %cst_107 = arith.constant dense<0.000000e+00> : vector<4x384xf32>
    %97 = tpu.matmul %96, %94, %cst_107 {dimension_numbers = #tpu.dot_dimension_numbers<[1], [0], [0], [1], [0, 0, 1, 1], [], []>} : vector<4x32xf32>, vector<32x384xf32>, vector<4x384xf32> -> vector<4x384xf32>
    %c0_108 = arith.constant 0 : index
    %c0_109 = arith.constant 0 : index
    %98 = vector.load %arg14[%c0_108, %c0_109] : memref<4x1xf32, #tpu.memory_space<vmem>>, vector<4x1xf32>
    %99 = vector.broadcast %98 : vector<4x1xf32> to vector<4x384xf32>
    %100 = arith.addf %97, %99 : vector<4x384xf32>
    %c0_110 = arith.constant 0 : index
    %c109_111 = arith.constant 109 : index
    %101 = vector.load %arg17[%c0_110, %c109_111] : memref<32x640xf32, #tpu.memory_space<vmem>>, vector<32x384xf32>
    %c0_112 = arith.constant 0 : index
    %c0_113 = arith.constant 0 : index
    %102 = vector.load %arg19[%c0_112, %c0_113] : memref<288x384xf32, #tpu.memory_space<vmem>>, vector<32x384xf32>
    tpu.vector_store %arg19[%c0_112, %c0_113], %101 {strides = array<i32>} : memref<288x384xf32, #tpu.memory_space<vmem>>, vector<32x384xf32>,
    %c0_114 = arith.constant 0 : index
    %c110_115 = arith.constant 110 : index
    %103 = vector.load %arg17[%c0_114, %c110_115] : memref<32x640xf32, #tpu.memory_space<vmem>>, vector<32x384xf32>
    %c32_116 = arith.constant 32 : index
    %c0_117 = arith.constant 0 : index
    %104 = vector.load %arg19[%c32_116, %c0_117] : memref<288x384xf32, #tpu.memory_space<vmem>>, vector<32x384xf32>
    tpu.vector_store %arg19[%c32_116, %c0_117], %103 {strides = array<i32>} : memref<288x384xf32, #tpu.memory_space<vmem>>, vector<32x384xf32>,
    %c0_118 = arith.constant 0 : index
    %c111_119 = arith.constant 111 : index
    %105 = vector.load %arg17[%c0_118, %c111_119] : memref<32x640xf32, #tpu.memory_space<vmem>>, vector<32x384xf32>
    %c64_120 = arith.constant 64 : index
    %c0_121 = arith.constant 0 : index
    %106 = vector.load %arg19[%c64_120, %c0_121] : memref<288x384xf32, #tpu.memory_space<vmem>>, vector<32x384xf32>
    tpu.vector_store %arg19[%c64_120, %c0_121], %105 {strides = array<i32>} : memref<288x384xf32, #tpu.memory_space<vmem>>, vector<32x384xf32>,
    %c0_122 = arith.constant 0 : index
    %c127_123 = arith.constant 127 : index
    %107 = vector.load %arg17[%c0_122, %c127_123] : memref<32x640xf32, #tpu.memory_space<vmem>>, vector<32x384xf32>
    %c96_124 = arith.constant 96 : index
    %c0_125 = arith.constant 0 : index
    %108 = vector.load %arg19[%c96_124, %c0_125] : memref<288x384xf32, #tpu.memory_space<vmem>>, vector<32x384xf32>
    tpu.vector_store %arg19[%c96_124, %c0_125], %107 {strides = array<i32>} : memref<288x384xf32, #tpu.memory_space<vmem>>, vector<32x384xf32>,
    %c0_126 = arith.constant 0 : index
    %c128_127 = arith.constant 128 : index
    %109 = vector.load %arg17[%c0_126, %c128_127] : memref<32x640xf32, #tpu.memory_space<vmem>>, vector<32x384xf32>
    %c128_128 = arith.constant 128 : index
    %c0_129 = arith.constant 0 : index
    %110 = vector.load %arg19[%c128_128, %c0_129] : memref<288x384xf32, #tpu.memory_space<vmem>>, vector<32x384xf32>
    tpu.vector_store %arg19[%c128_128, %c0_129], %109 {strides = array<i32>} : memref<288x384xf32, #tpu.memory_space<vmem>>, vector<32x384xf32>,
    %c0_130 = arith.constant 0 : index
    %c129_131 = arith.constant 129 : index
    %111 = vector.load %arg17[%c0_130, %c129_131] : memref<32x640xf32, #tpu.memory_space<vmem>>, vector<32x384xf32>
    %c160_132 = arith.constant 160 : index
    %c0_133 = arith.constant 0 : index
    %112 = vector.load %arg19[%c160_132, %c0_133] : memref<288x384xf32, #tpu.memory_space<vmem>>, vector<32x384xf32>
    tpu.vector_store %arg19[%c160_132, %c0_133], %111 {strides = array<i32>} : memref<288x384xf32, #tpu.memory_space<vmem>>, vector<32x384xf32>,
    %c0_134 = arith.constant 0 : index
    %c145_135 = arith.constant 145 : index
    %113 = vector.load %arg17[%c0_134, %c145_135] : memref<32x640xf32, #tpu.memory_space<vmem>>, vector<32x384xf32>
    %c192_136 = arith.constant 192 : index
    %c0_137 = arith.constant 0 : index
    %114 = vector.load %arg19[%c192_136, %c0_137] : memref<288x384xf32, #tpu.memory_space<vmem>>, vector<32x384xf32>
    tpu.vector_store %arg19[%c192_136, %c0_137], %113 {strides = array<i32>} : memref<288x384xf32, #tpu.memory_space<vmem>>, vector<32x384xf32>,
    %c0_138 = arith.constant 0 : index
    %c146_139 = arith.constant 146 : index
    %115 = vector.load %arg17[%c0_138, %c146_139] : memref<32x640xf32, #tpu.memory_space<vmem>>, vector<32x384xf32>
    %c224_140 = arith.constant 224 : index
    %c0_141 = arith.constant 0 : index
    %116 = vector.load %arg19[%c224_140, %c0_141] : memref<288x384xf32, #tpu.memory_space<vmem>>, vector<32x384xf32>
    tpu.vector_store %arg19[%c224_140, %c0_141], %115 {strides = array<i32>} : memref<288x384xf32, #tpu.memory_space<vmem>>, vector<32x384xf32>,
    %c0_142 = arith.constant 0 : index
    %c147_143 = arith.constant 147 : index
    %117 = vector.load %arg17[%c0_142, %c147_143] : memref<32x640xf32, #tpu.memory_space<vmem>>, vector<32x384xf32>
    %c256_144 = arith.constant 256 : index
    %c0_145 = arith.constant 0 : index
    %118 = vector.load %arg19[%c256_144, %c0_145] : memref<288x384xf32, #tpu.memory_space<vmem>>, vector<32x384xf32>
    tpu.vector_store %arg19[%c256_144, %c0_145], %117 {strides = array<i32>} : memref<288x384xf32, #tpu.memory_space<vmem>>, vector<32x384xf32>,
    %c0_146 = arith.constant 0 : index
    %c0_147 = arith.constant 0 : index
    %119 = vector.load %arg9[%c0_146, %c0_147] : memref<4x288xf32, #tpu.memory_space<vmem>>, vector<4x288xf32>
    %c0_148 = arith.constant 0 : index
    %c0_149 = arith.constant 0 : index
    %120 = vector.load %arg19[%c0_148, %c0_149] : memref<288x384xf32, #tpu.memory_space<vmem>>, vector<288x384xf32>
    %cst_150 = arith.constant dense<0.000000e+00> : vector<4x384xf32>
    %121 = tpu.matmul %119, %120, %cst_150 {dimension_numbers = #tpu.dot_dimension_numbers<[1], [0], [0], [1], [0, 0, 1, 1], [], []>} : vector<4x288xf32>, vector<288x384xf32>, vector<4x384xf32> -> vector<4x384xf32>
    %c0_151 = arith.constant 0 : index
    %c0_152 = arith.constant 0 : index
    %122 = vector.load %arg10[%c0_151, %c0_152] : memref<4x1xf32, #tpu.memory_space<vmem>>, vector<4x1xf32>
    %123 = vector.broadcast %122 : vector<4x1xf32> to vector<4x384xf32>
    %124 = arith.addf %121, %123 : vector<4x384xf32>
    %cst_153 = arith.constant 0.000000e+00 : f32
    %125 = vector.broadcast %cst_153 : f32 to vector<4x384xf32>
    %126 = arith.cmpf oge, %124, %125 : vector<4x384xf32>
    %cst_154 = arith.constant 2.000000e-01 : f32
    %127 = vector.broadcast %cst_154 : f32 to vector<4x384xf32>
    %128 = arith.mulf %127, %124 : vector<4x384xf32>
    %129 = arith.select %126, %124, %128 : vector<4x384xi1>, vector<4x384xf32>
    %130 = vector.broadcast %12 : vector<1x384xf32> to vector<4x384xf32>
    %131 = arith.mulf %129, %130 : vector<4x384xf32>
    %c0_155 = arith.constant 0 : index
    %c128_156 = arith.constant 128 : index
    %132 = vector.load %arg18[%c0_155, %c128_156] : memref<4x640xf32, #tpu.memory_space<vmem>>, vector<4x384xf32>
    tpu.vector_store %arg18[%c0_155, %c128_156], %131 {strides = array<i32>} : memref<4x640xf32, #tpu.memory_space<vmem>>, vector<4x384xf32>,
    %c0_157 = arith.constant 0 : index
    %c109_158 = arith.constant 109 : index
    %133 = vector.load %arg18[%c0_157, %c109_158] : memref<4x640xf32, #tpu.memory_space<vmem>>, vector<4x384xf32>
    %c0_159 = arith.constant 0 : index
    %c0_160 = arith.constant 0 : index
    %134 = vector.load %arg19[%c0_159, %c0_160] : memref<288x384xf32, #tpu.memory_space<vmem>>, vector<4x384xf32>
    tpu.vector_store %arg19[%c0_159, %c0_160], %133 {strides = array<i32>} : memref<288x384xf32, #tpu.memory_space<vmem>>, vector<4x384xf32>,
    %c0_161 = arith.constant 0 : index
    %c110_162 = arith.constant 110 : index
    %135 = vector.load %arg18[%c0_161, %c110_162] : memref<4x640xf32, #tpu.memory_space<vmem>>, vector<4x384xf32>
    %c4_163 = arith.constant 4 : index
    %c0_164 = arith.constant 0 : index
    %136 = vector.load %arg19[%c4_163, %c0_164] : memref<288x384xf32, #tpu.memory_space<vmem>>, vector<4x384xf32>
    tpu.vector_store %arg19[%c4_163, %c0_164], %135 {strides = array<i32>} : memref<288x384xf32, #tpu.memory_space<vmem>>, vector<4x384xf32>,
    %c0_165 = arith.constant 0 : index
    %c111_166 = arith.constant 111 : index
    %137 = vector.load %arg18[%c0_165, %c111_166] : memref<4x640xf32, #tpu.memory_space<vmem>>, vector<4x384xf32>
    %c8_167 = arith.constant 8 : index
    %c0_168 = arith.constant 0 : index
    %138 = vector.load %arg19[%c8_167, %c0_168] : memref<288x384xf32, #tpu.memory_space<vmem>>, vector<4x384xf32>
    tpu.vector_store %arg19[%c8_167, %c0_168], %137 {strides = array<i32>} : memref<288x384xf32, #tpu.memory_space<vmem>>, vector<4x384xf32>,
    %c0_169 = arith.constant 0 : index
    %c127_170 = arith.constant 127 : index
    %139 = vector.load %arg18[%c0_169, %c127_170] : memref<4x640xf32, #tpu.memory_space<vmem>>, vector<4x384xf32>
    %c12_171 = arith.constant 12 : index
    %c0_172 = arith.constant 0 : index
    %140 = vector.load %arg19[%c12_171, %c0_172] : memref<288x384xf32, #tpu.memory_space<vmem>>, vector<4x384xf32>
    tpu.vector_store %arg19[%c12_171, %c0_172], %139 {strides = array<i32>} : memref<288x384xf32, #tpu.memory_space<vmem>>, vector<4x384xf32>,
    %c0_173 = arith.constant 0 : index
    %c128_174 = arith.constant 128 : index
    %141 = vector.load %arg18[%c0_173, %c128_174] : memref<4x640xf32, #tpu.memory_space<vmem>>, vector<4x384xf32>
    %c16_175 = arith.constant 16 : index
    %c0_176 = arith.constant 0 : index
    %142 = vector.load %arg19[%c16_175, %c0_176] : memref<288x384xf32, #tpu.memory_space<vmem>>, vector<4x384xf32>
    tpu.vector_store %arg19[%c16_175, %c0_176], %141 {strides = array<i32>} : memref<288x384xf32, #tpu.memory_space<vmem>>, vector<4x384xf32>,
    %c0_177 = arith.constant 0 : index
    %c129_178 = arith.constant 129 : index
    %143 = vector.load %arg18[%c0_177, %c129_178] : memref<4x640xf32, #tpu.memory_space<vmem>>, vector<4x384xf32>
    %c20_179 = arith.constant 20 : index
    %c0_180 = arith.constant 0 : index
    %144 = vector.load %arg19[%c20_179, %c0_180] : memref<288x384xf32, #tpu.memory_space<vmem>>, vector<4x384xf32>
    tpu.vector_store %arg19[%c20_179, %c0_180], %143 {strides = array<i32>} : memref<288x384xf32, #tpu.memory_space<vmem>>, vector<4x384xf32>,
    %c0_181 = arith.constant 0 : index
    %c145_182 = arith.constant 145 : index
    %145 = vector.load %arg18[%c0_181, %c145_182] : memref<4x640xf32, #tpu.memory_space<vmem>>, vector<4x384xf32>
    %c24_183 = arith.constant 24 : index
    %c0_184 = arith.constant 0 : index
    %146 = vector.load %arg19[%c24_183, %c0_184] : memref<288x384xf32, #tpu.memory_space<vmem>>, vector<4x384xf32>
    tpu.vector_store %arg19[%c24_183, %c0_184], %145 {strides = array<i32>} : memref<288x384xf32, #tpu.memory_space<vmem>>, vector<4x384xf32>,
    %c0_185 = arith.constant 0 : index
    %c146_186 = arith.constant 146 : index
    %147 = vector.load %arg18[%c0_185, %c146_186] : memref<4x640xf32, #tpu.memory_space<vmem>>, vector<4x384xf32>
    %c28_187 = arith.constant 28 : index
    %c0_188 = arith.constant 0 : index
    %148 = vector.load %arg19[%c28_187, %c0_188] : memref<288x384xf32, #tpu.memory_space<vmem>>, vector<4x384xf32>
    tpu.vector_store %arg19[%c28_187, %c0_188], %147 {strides = array<i32>} : memref<288x384xf32, #tpu.memory_space<vmem>>, vector<4x384xf32>,
    %c0_189 = arith.constant 0 : index
    %c147_190 = arith.constant 147 : index
    %149 = vector.load %arg18[%c0_189, %c147_190] : memref<4x640xf32, #tpu.memory_space<vmem>>, vector<4x384xf32>
    %c32_191 = arith.constant 32 : index
    %c0_192 = arith.constant 0 : index
    %150 = vector.load %arg19[%c32_191, %c0_192] : memref<288x384xf32, #tpu.memory_space<vmem>>, vector<4x384xf32>
    tpu.vector_store %arg19[%c32_191, %c0_192], %149 {strides = array<i32>} : memref<288x384xf32, #tpu.memory_space<vmem>>, vector<4x384xf32>,
    %c0_193 = arith.constant 0 : index
    %c0_194 = arith.constant 0 : index
    %151 = vector.load %arg11[%c0_193, %c0_194] : memref<4x36xf32, #tpu.memory_space<vmem>>, vector<4x36xf32>
    %c0_195 = arith.constant 0 : index
    %c0_196 = arith.constant 0 : index
    %152 = vector.load %arg19[%c0_195, %c0_196] : memref<288x384xf32, #tpu.memory_space<vmem>>, vector<36x384xf32>
    %cst_197 = arith.constant dense<0.000000e+00> : vector<4x384xf32>
    %153 = tpu.matmul %151, %152, %cst_197 {dimension_numbers = #tpu.dot_dimension_numbers<[1], [0], [0], [1], [0, 0, 1, 1], [], []>} : vector<4x36xf32>, vector<36x384xf32>, vector<4x384xf32> -> vector<4x384xf32>
    %c0_198 = arith.constant 0 : index
    %c0_199 = arith.constant 0 : index
    %154 = vector.load %arg12[%c0_198, %c0_199] : memref<4x1xf32, #tpu.memory_space<vmem>>, vector<4x1xf32>
    %155 = vector.broadcast %154 : vector<4x1xf32> to vector<4x384xf32>
    %156 = arith.addf %153, %155 : vector<4x384xf32>
    %cst_200 = arith.constant 0.000000e+00 : f32
    %157 = vector.broadcast %cst_200 : f32 to vector<4x384xf32>
    %158 = arith.cmpf oge, %156, %157 : vector<4x384xf32>
    %cst_201 = arith.constant 2.000000e-01 : f32
    %159 = vector.broadcast %cst_201 : f32 to vector<4x384xf32>
    %160 = arith.mulf %159, %156 : vector<4x384xf32>
    %161 = arith.select %158, %156, %160 : vector<4x384xi1>, vector<4x384xf32>
    %162 = arith.addf %161, %100 : vector<4x384xf32>
    %163 = arith.addf %162, %20 : vector<4x384xf32>
    %c0_202 = arith.constant 0 : index
    %c0_203 = arith.constant 0 : index
    %c0_204 = arith.constant 0 : index
    %164 = vector.load %arg15[%c0_202, %c0_203, %c0_204] : memref<1x4x384xf32, #tpu.memory_space<vmem>>, vector<1x4x384xf32>
    %165 = vector.shape_cast %164 : vector<1x4x384xf32> to vector<4x384xf32>
    %166 = vector.shape_cast %163 : vector<4x384xf32> to vector<1x4x384xf32>
    tpu.vector_store %arg15[%c0_202, %c0_203, %c0_204], %166 {strides = array<i32>} : memref<1x4x384xf32, #tpu.memory_space<vmem>>, vector<1x4x384xf32>,
    return
  }
  func.func @transform_0(%arg0: i32) -> (i32, i32, i32) {
    %c0_i32 = arith.constant 0 : i32
    %c0_i32_0 = arith.constant 0 : i32
    %c0_i32_1 = arith.constant 0 : i32
    return %arg0, %c0_i32, %c0_i32_0 : i32, i32, i32
  }
  func.func @transform_1(%arg0: i32) -> (i32, i32) {
    %c0_i32 = arith.constant 0 : i32
    %c0_i32_0 = arith.constant 0 : i32
    %c0_i32_1 = arith.constant 0 : i32
    return %c0_i32, %c0_i32_0 : i32, i32
  }
  func.func @transform_2(%arg0: i32) -> (i32, i32) {
    %c0_i32 = arith.constant 0 : i32
    %c0_i32_0 = arith.constant 0 : i32
    %c0_i32_1 = arith.constant 0 : i32
    return %c0_i32, %c0_i32_0 : i32, i32
  }
  func.func @transform_3(%arg0: i32) -> (i32, i32) {
    %c0_i32 = arith.constant 0 : i32
    %c0_i32_0 = arith.constant 0 : i32
    %c0_i32_1 = arith.constant 0 : i32
    return %c0_i32, %c0_i32_0 : i32, i32
  }
  func.func @transform_4(%arg0: i32) -> (i32, i32) {
    %c0_i32 = arith.constant 0 : i32
    %c0_i32_0 = arith.constant 0 : i32
    %c0_i32_1 = arith.constant 0 : i32
    return %c0_i32, %c0_i32_0 : i32, i32
  }
  func.func @transform_5(%arg0: i32) -> (i32, i32) {
    %c0_i32 = arith.constant 0 : i32
    %c0_i32_0 = arith.constant 0 : i32
    %c0_i32_1 = arith.constant 0 : i32
    return %c0_i32, %c0_i32_0 : i32, i32
  }
  func.func @transform_6(%arg0: i32) -> (i32, i32) {
    %c0_i32 = arith.constant 0 : i32
    %c0_i32_0 = arith.constant 0 : i32
    %c0_i32_1 = arith.constant 0 : i32
    return %c0_i32, %c0_i32_0 : i32, i32
  }
  func.func @transform_7(%arg0: i32) -> (i32, i32) {
    %c0_i32 = arith.constant 0 : i32
    %c0_i32_0 = arith.constant 0 : i32
    %c0_i32_1 = arith.constant 0 : i32
    return %c0_i32, %c0_i32_0 : i32, i32
  }
  func.func @transform_8(%arg0: i32) -> (i32, i32) {
    %c0_i32 = arith.constant 0 : i32
    %c0_i32_0 = arith.constant 0 : i32
    %c0_i32_1 = arith.constant 0 : i32
    return %c0_i32, %c0_i32_0 : i32, i32
  }
  func.func @transform_9(%arg0: i32) -> (i32, i32) {
    %c0_i32 = arith.constant 0 : i32
    %c0_i32_0 = arith.constant 0 : i32
    %c0_i32_1 = arith.constant 0 : i32
    return %c0_i32, %c0_i32_0 : i32, i32
  }
  func.func @transform_10(%arg0: i32) -> (i32, i32) {
    %c0_i32 = arith.constant 0 : i32
    %c0_i32_0 = arith.constant 0 : i32
    %c0_i32_1 = arith.constant 0 : i32
    return %c0_i32, %c0_i32_0 : i32, i32
  }
  func.func @transform_11(%arg0: i32) -> (i32, i32) {
    %c0_i32 = arith.constant 0 : i32
    %c0_i32_0 = arith.constant 0 : i32
    %c0_i32_1 = arith.constant 0 : i32
    return %c0_i32, %c0_i32_0 : i32, i32
  }
  func.func @transform_12(%arg0: i32) -> (i32, i32) {
    %c0_i32 = arith.constant 0 : i32
    %c0_i32_0 = arith.constant 0 : i32
    %c0_i32_1 = arith.constant 0 : i32
    return %c0_i32, %c0_i32_0 : i32, i32
  }
  func.func @transform_13(%arg0: i32) -> (i32, i32) {
    %c0_i32 = arith.constant 0 : i32
    %c0_i32_0 = arith.constant 0 : i32
    %c0_i32_1 = arith.constant 0 : i32
    return %c0_i32, %c0_i32_0 : i32, i32
  }
  func.func @transform_14(%arg0: i32) -> (i32, i32, i32) {
    %c0_i32 = arith.constant 0 : i32
    %c0_i32_0 = arith.constant 0 : i32
    %c0_i32_1 = arith.constant 0 : i32
    return %arg0, %c0_i32, %c0_i32_0 : i32, i32, i32
  }
}

</mosaic_0001>

<llo_original>
// kernel: hinet_skip_block.1
$region0: #{hinet_skip_block.1}
  #allocation0 [shape = 'u32[]', space=smem, size = 0x4, offset = 0x4, fixed_abs, tag = 'smem constant byte address 0x4 - core index']
  #allocation1 [shape = 'u32[144,128]{1,0:T(1,128)}', space=vmem, size = 0x12000, scoped, tag = 'internal scratch']
  #allocation2 [shape = 'f32[32,640]{1,0:T(8,128)}', space=vmem, size = 0x14000, scoped, tag = 'scratch operand']
  #allocation3 [shape = 'f32[32,640]{1,0:T(8,128)}', space=vmem, size = 0x14000, scoped, tag = 'scratch operand']
  #allocation4 [shape = 'f32[4,640]{1,0:T(4,128)}', space=vmem, size = 0x2800, scoped, tag = 'scratch operand']
  #allocation5 [shape = 'f32[288,384]{1,0:T(8,128)}', space=vmem, size = 0x6c000, scoped, tag = 'scratch operand']
  %s0 = inlined_call_operand.vmem [shape: f32[2,4,640], index: 0, kind: input, shape index: {}]
  %s1 = inlined_call_operand.vmem [shape: f32[1,384], index: 1, kind: input, shape index: {}]
  %s2 = inlined_call_operand.vmem [shape: f32[36,4], index: 2, kind: input, shape index: {}]
  %s3 = inlined_call_operand.vmem [shape: f32[36,1], index: 3, kind: input, shape index: {}]
  %s4 = inlined_call_operand.vmem [shape: f32[32,36], index: 4, kind: input, shape index: {}]
  %s5 = inlined_call_operand.vmem [shape: f32[32,1], index: 5, kind: input, shape index: {}]
  %s6 = inlined_call_operand.vmem [shape: f32[32,288], index: 6, kind: input, shape index: {}]
  %s7 = inlined_call_operand.vmem [shape: f32[32,1], index: 7, kind: input, shape index: {}]
  %s8 = inlined_call_operand.vmem [shape: f32[4,288], index: 8, kind: input, shape index: {}]
  %s9 = inlined_call_operand.vmem [shape: f32[4,1], index: 9, kind: input, shape index: {}]
  %s10 = inlined_call_operand.vmem [shape: f32[4,36], index: 10, kind: input, shape index: {}]
  %s11 = inlined_call_operand.vmem [shape: f32[4,1], index: 11, kind: input, shape index: {}]
  %s12 = inlined_call_operand.vmem [shape: f32[4,32], index: 12, kind: input, shape index: {}]
  %s13 = inlined_call_operand.vmem [shape: f32[4,1], index: 13, kind: input, shape index: {}]
  %s14 = inlined_call_operand.vmem [shape: f32[2,4,384], index: 14, kind: output, shape index: {}]
  %s15 = sld [smem:[#allocation0]]
  $region89: #{hinet_skip_block.1} parent=0
    _
  %s17 = ssub.s32 1, %s15
  %s18 = scalar_select 0, %s17, %s15
  loop: start=0, step=1, limit=4
  $region2: #{hinet_skip_block.1} parent=0 // loop_pre_header
    _
  $region3: #{hinet_skip_block.1} parent=0 // loop_header
    %s20 = sphi 0, %s24
    %p21 = scmp.ge.s32.totalorder %s20, 4
    %s30 = sphi 0, %s32
    %s33 = sphi 0, %s30
    %s34 = sphi 0, %s33
    %s50 = sphi 0, %s34
    %s54 = sphi 0, %s54
    %s56 = sphi 0, %s54
    %s57 = sphi 0, %s56
    %s71 = sphi 0, %s57
    %s75 = sphi 0, %s75
    %s77 = sphi 0, %s75
    %s78 = sphi 0, %s77
    %s92 = sphi 0, %s78
    %s96 = sphi 0, %s96
    %s98 = sphi 0, %s96
    %s99 = sphi 0, %s98
    %s113 = sphi 0, %s99
    %s117 = sphi 0, %s117
    %s119 = sphi 0, %s117
    %s120 = sphi 0, %s119
    %s134 = sphi 0, %s120
    %s138 = sphi 0, %s138
    %s140 = sphi 0, %s138
    %s141 = sphi 0, %s140
    %s155 = sphi 0, %s141
    %s159 = sphi 0, %s159
    %s161 = sphi 0, %s159
    %s162 = sphi 0, %s161
    %s176 = sphi 0, %s162
    %s180 = sphi 0, %s180
    %s182 = sphi 0, %s180
    %s183 = sphi 0, %s182
    %s197 = sphi 0, %s183
    %s201 = sphi 0, %s201
    %s203 = sphi 0, %s201
    %s204 = sphi 0, %s203
    %s218 = sphi 0, %s204
    %s222 = sphi 0, %s222
    %s224 = sphi 0, %s222
    %s225 = sphi 0, %s224
    %s239 = sphi 0, %s225
    %s243 = sphi 0, %s243
    %s245 = sphi 0, %s243
    %s246 = sphi 0, %s245
    %s260 = sphi 0, %s246
    %s264 = sphi 0, %s264
    %s266 = sphi 0, %s264
    %s267 = sphi 0, %s266
    %s281 = sphi 0, %s267
    %s285 = sphi 0, %s285
    %s287 = sphi 0, %s285
    %s288 = sphi 0, %s287
    %s302 = sphi 0, %s288
    %s306 = sphi 0, %s306
    %s308 = sphi 0, %s306
    %s309 = sphi 0, %s308
    %s323 = sphi 0, %s309
    %s329 = sphi 0, %s331
    %s332 = sphi 0, %s329
    %s333 = sphi 0, %s332
    %s349 = sphi 0, %s333
  $region4: #{hinet_skip_block.1} parent=0 // loop_header_branch
    %23 = sbr.rel (%p21) target = $region8
  $region5: #{hinet_skip_block.1} parent=0 // loop_body
    %s25 = ssub.s32 %s20, 1
    %s26 = ssub.s32 %s20, 2
    %s27 = sadd.s32 %s20, 1
    %s28 = ssub.s32 %s20, %s27
    %p29 = scmp.eq.s32.totalorder %s28, 0
    %s31 = sadd.s32 %s30, 1
    %s32 = scalar_select %p29, %s30, %s31
    %p35 = pneg %p29
    %p36 = scmp.eq.s32.totalorder %s20, 1
    %p37 = por %p35, %p36
    %p38 = scmp.ne.s32.totalorder %s30, %s33
    %p39 = scmp.eq.s32.totalorder %s20, 0
    %p40 = por %p38, %p39
    %p41 = scmp.ne.s32.totalorder %s30, %s33
    %p42 = scmp.eq.s32.totalorder %s25, 1
    %p43 = por %p41, %p42
    %p44 = scmp.ne.s32.totalorder %s33, %s34
    %p45 = scmp.eq.s32.totalorder %s25, 0
    %p46 = por %p44, %p45
    %p47 = scmp.ne.s32.totalorder %s33, %s34
    %p48 = scmp.eq.s32.totalorder %s26, 1
    %p49 = por %p47, %p48
    %p51 = scmp.ne.s32.totalorder %s34, %s50
    %p52 = scmp.eq.s32.totalorder %s26, 0
    %p53 = por %p51, %p52
    %s55 = sadd.s32 %s54, 1
    %p58 = scmp.eq.s32.totalorder %s20, 1
    %p59 = scmp.ne.s32.totalorder %s54, %s56
    %p60 = scmp.eq.s32.totalorder %s20, 0
    %p61 = por %p59, %p60
    %p62 = scmp.ne.s32.totalorder %s54, %s56
    %p63 = scmp.eq.s32.totalorder %s25, 1
    %p64 = por %p62, %p63
    %p65 = scmp.ne.s32.totalorder %s56, %s57
    %p66 = scmp.eq.s32.totalorder %s25, 0
    %p67 = por %p65, %p66
    %p68 = scmp.ne.s32.totalorder %s56, %s57
    %p69 = scmp.eq.s32.totalorder %s26, 1
    %p70 = por %p68, %p69
    %p72 = scmp.ne.s32.totalorder %s57, %s71
    %p73 = scmp.eq.s32.totalorder %s26, 0
    %p74 = por %p72, %p73
    %s76 = sadd.s32 %s75, 1
    %p79 = scmp.eq.s32.totalorder %s20, 1
    %p80 = scmp.ne.s32.totalorder %s75, %s77
    %p81 = scmp.eq.s32.totalorder %s20, 0
    %p82 = por %p80, %p81
    %p83 = scmp.ne.s32.totalorder %s75, %s77
    %p84 = scmp.eq.s32.totalorder %s25, 1
    %p85 = por %p83, %p84
    %p86 = scmp.ne.s32.totalorder %s77, %s78
    %p87 = scmp.eq.s32.totalorder %s25, 0
    %p88 = por %p86, %p87
    %p89 = scmp.ne.s32.totalorder %s77, %s78
    %p90 = scmp.eq.s32.totalorder %s26, 1
    %p91 = por %p89, %p90
    %p93 = scmp.ne.s32.totalorder %s78, %s92
    %p94 = scmp.eq.s32.totalorder %s26, 0
    %p95 = por %p93, %p94
    %s97 = sadd.s32 %s96, 1
    %p100 = scmp.eq.s32.totalorder %s20, 1
    %p101 = scmp.ne.s32.totalorder %s96, %s98
    %p102 = scmp.eq.s32.totalorder %s20, 0
    %p103 = por %p101, %p102
    %p104 = scmp.ne.s32.totalorder %s96, %s98
    %p105 = scmp.eq.s32.totalorder %s25, 1
    %p106 = por %p104, %p105
    %p107 = scmp.ne.s32.totalorder %s98, %s99
    %p108 = scmp.eq.s32.totalorder %s25, 0
    %p109 = por %p107, %p108
    %p110 = scmp.ne.s32.totalorder %s98, %s99
    %p111 = scmp.eq.s32.totalorder %s26, 1
    %p112 = por %p110, %p111
    %p114 = scmp.ne.s32.totalorder %s99, %s113
    %p115 = scmp.eq.s32.totalorder %s26, 0
    %p116 = por %p114, %p115
    %s118 = sadd.s32 %s117, 1
    %p121 = scmp.eq.s32.totalorder %s20, 1
    %p122 = scmp.ne.s32.totalorder %s117, %s119
    %p123 = scmp.eq.s32.totalorder %s20, 0
    %p124 = por %p122, %p123
    %p125 = scmp.ne.s32.totalorder %s117, %s119
    %p126 = scmp.eq.s32.totalorder %s25, 1
    %p127 = por %p125, %p126
    %p128 = scmp.ne.s32.totalorder %s119, %s120
    %p129 = scmp.eq.s32.totalorder %s25, 0
    %p130 = por %p128, %p129
    %p131 = scmp.ne.s32.totalorder %s119, %s120
    %p132 = scmp.eq.s32.totalorder %s26, 1
    %p133 = por %p131, %p132
    %p135 = scmp.ne.s32.totalorder %s120, %s134
    %p136 = scmp.eq.s32.totalorder %s26, 0
    %p137 = por %p135, %p136
    %s139 = sadd.s32 %s138, 1
    %p142 = scmp.eq.s32.totalorder %s20, 1
    %p143 = scmp.ne.s32.totalorder %s138, %s140
    %p144 = scmp.eq.s32.totalorder %s20, 0
    %p145 = por %p143, %p144
    %p146 = scmp.ne.s32.totalorder %s138, %s140
    %p147 = scmp.eq.s32.totalorder %s25, 1
    %p148 = por %p146, %p147
    %p149 = scmp.ne.s32.totalorder %s140, %s141
    %p150 = scmp.eq.s32.totalorder %s25, 0
    %p151 = por %p149, %p150
    %p152 = scmp.ne.s32.totalorder %s140, %s141
    %p153 = scmp.eq.s32.totalorder %s26, 1
    %p154 = por %p152, %p153
    %p156 = scmp.ne.s32.totalorder %s141, %s155
    %p157 = scmp.eq.s32.totalorder %s26, 0
    %p158 = por %p156, %p157
    %s160 = sadd.s32 %s159, 1
    %p163 = scmp.eq.s32.totalorder %s20, 1
    %p164 = scmp.ne.s32.totalorder %s159, %s161
    %p165 = scmp.eq.s32.totalorder %s20, 0
    %p166 = por %p164, %p165
    %p167 = scmp.ne.s32.totalorder %s159, %s161
    %p168 = scmp.eq.s32.totalorder %s25, 1
    %p169 = por %p167, %p168
    %p170 = scmp.ne.s32.totalorder %s161, %s162
    %p171 = scmp.eq.s32.totalorder %s25, 0
    %p172 = por %p170, %p171
    %p173 = scmp.ne.s32.totalorder %s161, %s162
    %p174 = scmp.eq.s32.totalorder %s26, 1
    %p175 = por %p173, %p174
    %p177 = scmp.ne.s32.totalorder %s162, %s176
    %p178 = scmp.eq.s32.totalorder %s26, 0
    %p179 = por %p177, %p178
    %s181 = sadd.s32 %s180, 1
    %p184 = scmp.eq.s32.totalorder %s20, 1
    %p185 = scmp.ne.s32.totalorder %s180, %s182
    %p186 = scmp.eq.s32.totalorder %s20, 0
    %p187 = por %p185, %p186
    %p188 = scmp.ne.s32.totalorder %s180, %s182
    %p189 = scmp.eq.s32.totalorder %s25, 1
    %p190 = por %p188, %p189
    %p191 = scmp.ne.s32.totalorder %s182, %s183
    %p192 = scmp.eq.s32.totalorder %s25, 0
    %p193 = por %p191, %p192
    %p194 = scmp.ne.s32.totalorder %s182, %s183
    %p195 = scmp.eq.s32.totalorder %s26, 1
    %p196 = por %p194, %p195
    %p198 = scmp.ne.s32.totalorder %s183, %s197
    %p199 = scmp.eq.s32.totalorder %s26, 0
    %p200 = por %p198, %p199
    %s202 = sadd.s32 %s201, 1
    %p205 = scmp.eq.s32.totalorder %s20, 1
    %p206 = scmp.ne.s32.totalorder %s201, %s203
    %p207 = scmp.eq.s32.totalorder %s20, 0
    %p208 = por %p206, %p207
    %p209 = scmp.ne.s32.totalorder %s201, %s203
    %p210 = scmp.eq.s32.totalorder %s25, 1
    %p211 = por %p209, %p210
    %p212 = scmp.ne.s32.totalorder %s203, %s204
    %p213 = scmp.eq.s32.totalorder %s25, 0
    %p214 = por %p212, %p213
    %p215 = scmp.ne.s32.totalorder %s203, %s204
    %p216 = scmp.eq.s32.totalorder %s26, 1
    %p217 = por %p215, %p216
    %p219 = scmp.ne.s32.totalorder %s204, %s218
    %p220 = scmp.eq.s32.totalorder %s26, 0
    %p221 = por %p219, %p220
    %s223 = sadd.s32 %s222, 1
    %p226 = scmp.eq.s32.totalorder %s20, 1
    %p227 = scmp.ne.s32.totalorder %s222, %s224
    %p228 = scmp.eq.s32.totalorder %s20, 0
    %p229 = por %p227, %p228
    %p230 = scmp.ne.s32.totalorder %s222, %s224
    %p231 = scmp.eq.s32.totalorder %s25, 1
    %p232 = por %p230, %p231
    %p233 = scmp.ne.s32.totalorder %s224, %s225
    %p234 = scmp.eq.s32.totalorder %s25, 0
    %p235 = por %p233, %p234
    %p236 = scmp.ne.s32.totalorder %s224, %s225
    %p237 = scmp.eq.s32.totalorder %s26, 1
    %p238 = por %p236, %p237
    %p240 = scmp.ne.s32.totalorder %s225, %s239
    %p241 = scmp.eq.s32.totalorder %s26, 0
    %p242 = por %p240, %p241
    %s244 = sadd.s32 %s243, 1
    %p247 = scmp.eq.s32.totalorder %s20, 1
    %p248 = scmp.ne.s32.totalorder %s243, %s245
    %p249 = scmp.eq.s32.totalorder %s20, 0
    %p250 = por %p248, %p249
    %p251 = scmp.ne.s32.totalorder %s243, %s245
    %p252 = scmp.eq.s32.totalorder %s25, 1
    %p253 = por %p251, %p252
    %p254 = scmp.ne.s32.totalorder %s245, %s246
    %p255 = scmp.eq.s32.totalorder %s25, 0
    %p256 = por %p254, %p255
    %p257 = scmp.ne.s32.totalorder %s245, %s246
    %p258 = scmp.eq.s32.totalorder %s26, 1
    %p259 = por %p257, %p258
    %p261 = scmp.ne.s32.totalorder %s246, %s260
    %p262 = scmp.eq.s32.totalorder %s26, 0
    %p263 = por %p261, %p262
    %s265 = sadd.s32 %s264, 1
    %p268 = scmp.eq.s32.totalorder %s20, 1
    %p269 = scmp.ne.s32.totalorder %s264, %s266
    %p270 = scmp.eq.s32.totalorder %s20, 0
    %p271 = por %p269, %p270
    %p272 = scmp.ne.s32.totalorder %s264, %s266
    %p273 = scmp.eq.s32.totalorder %s25, 1
    %p274 = por %p272, %p273
    %p275 = scmp.ne.s32.totalorder %s266, %s267
    %p276 = scmp.eq.s32.totalorder %s25, 0
    %p277 = por %p275, %p276
    %p278 = scmp.ne.s32.totalorder %s266, %s267
    %p279 = scmp.eq.s32.totalorder %s26, 1
    %p280 = por %p278, %p279
    %p282 = scmp.ne.s32.totalorder %s267, %s281
    %p283 = scmp.eq.s32.totalorder %s26, 0
    %p284 = por %p282, %p283
    %s286 = sadd.s32 %s285, 1
    %p289 = scmp.eq.s32.totalorder %s20, 1
    %p290 = scmp.ne.s32.totalorder %s285, %s287
    %p291 = scmp.eq.s32.totalorder %s20, 0
    %p292 = por %p290, %p291
    %p293 = scmp.ne.s32.totalorder %s285, %s287
    %p294 = scmp.eq.s32.totalorder %s25, 1
    %p295 = por %p293, %p294
    %p296 = scmp.ne.s32.totalorder %s287, %s288
    %p297 = scmp.eq.s32.totalorder %s25, 0
    %p298 = por %p296, %p297
    %p299 = scmp.ne.s32.totalorder %s287, %s288
    %p300 = scmp.eq.s32.totalorder %s26, 1
    %p301 = por %p299, %p300
    %p303 = scmp.ne.s32.totalorder %s288, %s302
    %p304 = scmp.eq.s32.totalorder %s26, 0
    %p305 = por %p303, %p304
    %s307 = sadd.s32 %s306, 1
    %p310 = scmp.eq.s32.totalorder %s20, 1
    %p311 = scmp.ne.s32.totalorder %s306, %s308
    %p312 = scmp.eq.s32.totalorder %s20, 0
    %p313 = por %p311, %p312
    %p314 = scmp.ne.s32.totalorder %s306, %s308
    %p315 = scmp.eq.s32.totalorder %s25, 1
    %p316 = por %p314, %p315
    %p317 = scmp.ne.s32.totalorder %s308, %s309
    %p318 = scmp.eq.s32.totalorder %s25, 0
    %p319 = por %p317, %p318
    %p320 = scmp.ne.s32.totalorder %s308, %s309
    %p321 = scmp.eq.s32.totalorder %s26, 1
    %p322 = por %p320, %p321
    %p324 = scmp.ne.s32.totalorder %s309, %s323
    %p325 = scmp.eq.s32.totalorder %s26, 0
    %p326 = por %p324, %p325
    %s327 = ssub.s32 %s20, %s27
    %p328 = scmp.eq.s32.totalorder %s327, 0
    %s330 = sadd.s32 %s329, 1
    %s331 = scalar_select %p328, %s329, %s330
    %p334 = pneg %p328
    %p335 = scmp.eq.s32.totalorder %s20, 1
    %p336 = por %p334, %p335
    %p337 = scmp.ne.s32.totalorder %s329, %s332
    %p338 = scmp.eq.s32.totalorder %s20, 0
    %p339 = por %p337, %p338
    %p340 = scmp.ne.s32.totalorder %s329, %s332
    %p341 = scmp.eq.s32.totalorder %s25, 1
    %p342 = por %p340, %p341
    %p343 = scmp.ne.s32.totalorder %s332, %s333
    %p344 = scmp.eq.s32.totalorder %s25, 0
    %p345 = por %p343, %p344
    %p346 = scmp.ne.s32.totalorder %s332, %s333
    %p347 = scmp.eq.s32.totalorder %s26, 1
    %p348 = por %p346, %p347
    %p350 = scmp.ne.s32.totalorder %s333, %s349
    %p351 = scmp.eq.s32.totalorder %s26, 0
    %p352 = por %p350, %p351
    %p353 = scmp.le.s32.totalorder 1, %s20
    %p354 = scmp.lt.s32.totalorder %s20, 3
    %p355 = pnand %p353, %p354
    %p356 = pneg %p355
    // Predicated region
    $region9: #{hinet_skip_block.1} parent=5 // pred_check
      _
    $region10: #{hinet_skip_block.1} parent=5 // pred_check_branch
      %358 = sbr.rel (%p355) target = $region12
    $region11: #{hinet_skip_block.1} parent=5 // pred_region
      %s359 = ssub.s32 %s20, 1
      // Predicated region
      $region13: #{hinet_skip_block.1} parent=11 // pred_check
        %p360 = pneg %p67
      $region14: #{hinet_skip_block.1} parent=11 // pred_check_branch
        %362 = sbr.rel (%p360) target = $region16
      $region15: #{hinet_skip_block.1} parent=11 // pred_region
        _
      $region16: #{hinet_skip_block.1} parent=11 // pred_fallthru
        _
      // Predicated region
      $region17: #{hinet_skip_block.1} parent=11 // pred_check
        %p363 = pneg %p88
      $region18: #{hinet_skip_block.1} parent=11 // pred_check_branch
        %365 = sbr.rel (%p363) target = $region20
      $region19: #{hinet_skip_block.1} parent=11 // pred_region
        _
      $region20: #{hinet_skip_block.1} parent=11 // pred_fallthru
        _
      // Predicated region
      $region21: #{hinet_skip_block.1} parent=11 // pred_check
        %p366 = pneg %p109
      $region22: #{hinet_skip_block.1} parent=11 // pred_check_branch
        %368 = sbr.rel (%p366) target = $region24
      $region23: #{hinet_skip_block.1} parent=11 // pred_region
        _
      $region24: #{hinet_skip_block.1} parent=11 // pred_fallthru
        _
      // Predicated region
      $region25: #{hinet_skip_block.1} parent=11 // pred_check
        %p369 = pneg %p130
      $region26: #{hinet_skip_block.1} parent=11 // pred_check_branch
        %371 = sbr.rel (%p369) target = $region28
      $region27: #{hinet_skip_block.1} parent=11 // pred_region
        _
      $region28: #{hinet_skip_block.1} parent=11 // pred_fallthru
        _
      // Predicated region
      $region29: #{hinet_skip_block.1} parent=11 // pred_check
        %p372 = pneg %p151
      $region30: #{hinet_skip_block.1} parent=11 // pred_check_branch
        %374 = sbr.rel (%p372) target = $region32
      $region31: #{hinet_skip_block.1} parent=11 // pred_region
        _
      $region32: #{hinet_skip_block.1} parent=11 // pred_fallthru
        _
      // Predicated region
      $region33: #{hinet_skip_block.1} parent=11 // pred_check
        %p375 = pneg %p172
      $region34: #{hinet_skip_block.1} parent=11 // pred_check_branch
        %377 = sbr.rel (%p375) target = $region36
      $region35: #{hinet_skip_block.1} parent=11 // pred_region
        _
      $region36: #{hinet_skip_block.1} parent=11 // pred_fallthru
        _
      // Predicated region
      $region37: #{hinet_skip_block.1} parent=11 // pred_check
        %p378 = pneg %p193
      $region38: #{hinet_skip_block.1} parent=11 // pred_check_branch
        %380 = sbr.rel (%p378) target = $region40
      $region39: #{hinet_skip_block.1} parent=11 // pred_region
        _
      $region40: #{hinet_skip_block.1} parent=11 // pred_fallthru
        _
      // Predicated region
      $region41: #{hinet_skip_block.1} parent=11 // pred_check
        %p381 = pneg %p214
      $region42: #{hinet_skip_block.1} parent=11 // pred_check_branch
        %383 = sbr.rel (%p381) target = $region44
      $region43: #{hinet_skip_block.1} parent=11 // pred_region
        _
      $region44: #{hinet_skip_block.1} parent=11 // pred_fallthru
        _
      // Predicated region
      $region45: #{hinet_skip_block.1} parent=11 // pred_check
        %p384 = pneg %p235
      $region46: #{hinet_skip_block.1} parent=11 // pred_check_branch
        %386 = sbr.rel (%p384) target = $region48
      $region47: #{hinet_skip_block.1} parent=11 // pred_region
        _
      $region48: #{hinet_skip_block.1} parent=11 // pred_fallthru
        _
      // Predicated region
      $region49: #{hinet_skip_block.1} parent=11 // pred_check
        %p387 = pneg %p256
      $region50: #{hinet_skip_block.1} parent=11 // pred_check_branch
        %389 = sbr.rel (%p387) target = $region52
      $region51: #{hinet_skip_block.1} parent=11 // pred_region
        _
      $region52: #{hinet_skip_block.1} parent=11 // pred_fallthru
        _
      // Predicated region
      $region53: #{hinet_skip_block.1} parent=11 // pred_check
        %p390 = pneg %p277
      $region54: #{hinet_skip_block.1} parent=11 // pred_check_branch
        %392 = sbr.rel (%p390) target = $region56
      $region55: #{hinet_skip_block.1} parent=11 // pred_region
        _
      $region56: #{hinet_skip_block.1} parent=11 // pred_fallthru
        _
      // Predicated region
      $region57: #{hinet_skip_block.1} parent=11 // pred_check
        %p393 = pneg %p298
      $region58: #{hinet_skip_block.1} parent=11 // pred_check_branch
        %395 = sbr.rel (%p393) target = $region60
      $region59: #{hinet_skip_block.1} parent=11 // pred_region
        _
      $region60: #{hinet_skip_block.1} parent=11 // pred_fallthru
        _
      // Predicated region
      $region61: #{hinet_skip_block.1} parent=11 // pred_check
        %p396 = pneg %p319
      $region62: #{hinet_skip_block.1} parent=11 // pred_check_branch
        %398 = sbr.rel (%p396) target = $region64
      $region63: #{hinet_skip_block.1} parent=11 // pred_region
        _
      $region64: #{hinet_skip_block.1} parent=11 // pred_fallthru
        _
    $region12: #{hinet_skip_block.1} parent=5 // pred_fallthru
      _
    %p399 = scmp.lt.s32.totalorder %s20, 2
    // Predicated region
    $region65: #{hinet_skip_block.1} parent=5 // pred_check
      %p400 = pneg %p399
    $region66: #{hinet_skip_block.1} parent=5 // pred_check_branch
      %402 = sbr.rel (%p400) target = $region68
    $region67: #{hinet_skip_block.1} parent=5 // pred_region
      // Predicated region
      $region69: #{hinet_skip_block.1} parent=67 // pred_check
        %p403 = pneg %p40
      $region70: #{hinet_skip_block.1} parent=67 // pred_check_branch
        %405 = sbr.rel (%p403) target = $region72
      $region71: #{hinet_skip_block.1} parent=67 // pred_region
        %p406 = scmp.lt.s32.totalorder %s20, 1
        %s407 = scalar_select %p406, %s20, 1
        %s408 = smul.addr %s407, 5
        %s409 = smul.addr %s408, 4
        %s410 = scalar_lea.vmem %s0, %s409
      $region72: #{hinet_skip_block.1} parent=67 // pred_fallthru
        _
    $region68: #{hinet_skip_block.1} parent=5 // pred_fallthru
      _
    %p411 = scmp.le.s32.totalorder 1, %s20
    %p412 = scmp.lt.s32.totalorder %s20, 3
    %p413 = pnand %p411, %p412
    %p414 = pneg %p413
    // Predicated region
    $region73: #{hinet_skip_block.1} parent=5 // pred_check
      _
    $region74: #{hinet_skip_block.1} parent=5 // pred_check_branch
      %416 = sbr.rel (%p413) target = $region76
    $region75: #{hinet_skip_block.1} parent=5 // pred_region
      %s417 = ssub.s32 %s20, 1
      %p418 = scmp.lt.s32.totalorder %s25, 1
      %s419 = scalar_select %p418, %s25, 1
      %s420 = smul.addr %s419, 5
      %s421 = smul.addr %s420, 4
      %s422 = scalar_lea.vmem %s0, %s421
      %p423 = pneg %p46
      %p424 = pneg %p43
      %p425 = pneg %p67
      %p426 = pneg %p64
      %p427 = pneg %p88
      %p428 = pneg %p85
      %p429 = pneg %p109
      %p430 = pneg %p106
      %p431 = pneg %p130
      %p432 = pneg %p127
      %p433 = pneg %p151
      %p434 = pneg %p148
      %p435 = pneg %p172
      %p436 = pneg %p169
      %p437 = pneg %p193
      %p438 = pneg %p190
      %p439 = pneg %p214
      %p440 = pneg %p211
      %p441 = pneg %p235
      %p442 = pneg %p232
      %p443 = pneg %p256
      %p444 = pneg %p253
      %p445 = pneg %p277
      %p446 = pneg %p274
      %p447 = pneg %p298
      %p448 = pneg %p295
      %p449 = pneg %p319
      %p450 = pneg %p316
      %p451 = pneg %p345
      %p452 = pneg %p342
      %p453 = scmp.lt.s32.totalorder %s25, 1
      %s454 = scalar_select %p453, %s25, 1
      %s455 = smul.addr %s454, 3
      %s456 = smul.addr %s455, 4
      %s457 = scalar_lea.vmem %s14, %s456
      %p458 = scmp.lt.s32.totalorder %s25, 1
      %s459 = scalar_select %p458, %s25, 1
      %s460 = smul.addr %s459, 5
      %s461 = smul.addr %s460, 4
      %s462 = scalar_lea.vmem %s0, %s461
      %p463 = scmp.lt.s32.totalorder %s25, 1
      %s464 = scalar_select %p463, %s25, 1
      %s465 = smul.addr %s464, 3
      %s466 = smul.addr %s465, 4
      %s467 = scalar_lea.vmem %s14, %s466
      %468 = vst [vmem:[#allocation2] sm:$0xff] 0.0
      %469 = vst [vmem:[#allocation2 + $0x28] sm:$0xff] 0.0
      %470 = vst [vmem:[#allocation2 + $0x50] sm:$0xff] 0.0
      %471 = vst [vmem:[#allocation2 + $0x78] sm:$0xff] 0.0
      %472 = vst [vmem:[#allocation2 + $0x20] sm:$0xff] 0.0
      %473 = vst [vmem:[#allocation2 + $0x48] sm:$0xff] 0.0
      %474 = vst [vmem:[#allocation2 + $0x70] sm:$0xff] 0.0
      %475 = vst [vmem:[#allocation2 + $0x98] sm:$0xff] 0.0
      %476 = vst [vmem:[#allocation3] sm:$0xff] 0.0
      %477 = vst [vmem:[#allocation3 + $0x28] sm:$0xff] 0.0
      %478 = vst [vmem:[#allocation3 + $0x50] sm:$0xff] 0.0
      %479 = vst [vmem:[#allocation3 + $0x78] sm:$0xff] 0.0
      %480 = vst [vmem:[#allocation3 + $0x20] sm:$0xff] 0.0
      %481 = vst [vmem:[#allocation3 + $0x48] sm:$0xff] 0.0
      %482 = vst [vmem:[#allocation3 + $0x70] sm:$0xff] 0.0
      %483 = vst [vmem:[#allocation3 + $0x98] sm:$0xff] 0.0
      %484 = vst [vmem:[#allocation4] sm:$0xf] 0.0
      %485 = vst [vmem:[#allocation4 + $0x10] sm:$0xf] 0.0
      %v486 = vld [vmem:[%s1] sm:$0x7]
      %v487 = vld [vmem:[%s2] sm:$0xff]
      %v488 = vld [vmem:[%s2 + $0x8] sm:$0xff]
      %v489 = vld [vmem:[%s2 + $0x10] sm:$0xff]
      %v490 = vld [vmem:[%s2 + $0x18] sm:$0xff]
      %v491 = vld [vmem:[%s2 + $0x20] sm:$0xf]
      %v492 = vld [vmem:[%s462 + $0x4] sm:$0xff]
      %v493 = vld [vmem:[%s462 + $0xc] sm:$0xf]
      %v494 = vld [vmem:[%s3] sm:$0xff]
      %v495 = vld [vmem:[%s3 + $0x8] sm:$0xff]
      %v496 = vld [vmem:[%s3 + $0x10] sm:$0xff]
      %v497 = vld [vmem:[%s3 + $0x18] sm:$0xff]
      %v498 = vld [vmem:[%s3 + $0x20] sm:$0xf]
      %500 = vset.pattern.permute.xlu0 0
      %501 = vperm.xlu0 %500, %v494
      %v502 = vpop.permute.xlu0 %501
      %505 = vset.pattern.permute.xlu0 0
      %506 = vperm.xlu0 %505, %v495
      %v507 = vpop.permute.xlu0 %506
      %510 = vset.pattern.permute.xlu0 0
      %511 = vperm.xlu0 %510, %v496
      %v512 = vpop.permute.xlu0 %511
      %515 = vset.pattern.permute.xlu0 0
      %516 = vperm.xlu0 %515, %v497
      %v517 = vpop.permute.xlu0 %516
      %520 = vset.pattern.permute.xlu0 0
      %521 = vperm.xlu0 %520, %v498
      %v522 = vpop.permute.xlu0 %521
      %v526 = vcombine.high %v492, %v492
      %vm527 = vcmask 31744
      %v529 = vsel %vm527, %v487, 0
      %v532 = vsel %vm527, %v488, 0
      %v535 = vsel %vm527, %v489, 0
      %v538 = vsel %vm527, %v490, 0
      %v541 = vsel %vm527, %v491, 0
      %vm543 = vcmask 1043456
      %v544 = vsel %vm543, %v492, 0
      %v546 = vsel %vm543, %v526, 0
      %v548 = vsel %vm543, %v493, 0
      %550 = vmatprep.subr.mxu0 0.0
      %551 = vmatpush1.msra.mxu0 0.0
      %552 = vmatprep.subr.mxu0 0.0
      %553 = vmatpush1.msra.mxu0 0.0
      %554 = vmatprep.subr.mxu0 0.0
      %555 = vmatpush1.msra.mxu0 0.0
      %556 = vmatprep.subr.mxu0 0.0
      %557 = vmatpush1.msra.mxu0 0.0
      %558 = vmatprep.subr.mxu0 0.0
      %559 = vmatpush1.msra.mxu0 0.0
      %560 = vmatprep.subr.mxu0 0.0
      %561 = vmatpush1.msra.mxu0 0.0
      %562 = vmatprep.subr.mxu0 0.0
      %563 = vmatpush1.msra.mxu0 0.0
      %564 = vmatprep.subr.mxu0 0.0
      %565 = vmatpush1.msra.mxu0 0.0
      %566 = vmatprep.subr.mxu0 0.0
      %567 = vmatpush1.msra.mxu0 0.0
      %568 = vmatprep.subr.mxu0 0.0
      %569 = vmatpush1.msra.mxu0 0.0
      %570 = vmatprep.subr.mxu0 0.0
      %571 = vmatpush1.msra.mxu0 0.0
      %572 = vmatprep.subr.mxu0 0.0
      %573 = vmatpush1.msra.mxu0 0.0
      %574 = vmatprep.subr.mxu0 0.0
      %575 = vmatpush1.msra.mxu0 0.0
      %576 = vmatprep.subr.mxu0 0.0
      %577 = vmatpush1.msra.mxu0 0.0
      %578 = vmatprep.subr.mxu0 0.0
      %579 = vmatpush1.msra.mxu0 0.0
      %580 = vmatprep.subr.mxu0 %v546
      %581 = vmatpush1.msra.mxu0 %v544
      %582 = vmatprep.subr.mxu0 0.0
      %583 = vmatpush2.msra.mxu0 0.0
      %584 = vmatprep.subr.mxu0 0.0
      %585 = vmatpush2.msra.mxu0 0.0
      %586 = vmatprep.subr.mxu0 0.0
      %587 = vmatpush2.msra.mxu0 0.0
      %588 = vmatprep.subr.mxu0 0.0
      %589 = vmatpush2.msra.mxu0 0.0
      %590 = vmatprep.subr.mxu0 0.0
      %591 = vmatpush2.msra.mxu0 0.0
      %592 = vmatprep.subr.mxu0 0.0
      %593 = vmatpush2.msra.mxu0 0.0
      %594 = vmatprep.subr.mxu0 0.0
      %595 = vmatpush2.msra.mxu0 0.0
      %596 = vmatprep.subr.mxu0 0.0
      %597 = vmatpush2.msra.mxu0 0.0
      %598 = vmatprep.subr.mxu0 0.0
      %599 = vmatpush2.msra.mxu0 0.0
      %600 = vmatprep.subr.mxu0 0.0
      %601 = vmatpush2.msra.mxu0 0.0
      %602 = vmatprep.subr.mxu0 0.0
      %603 = vmatpush2.msra.mxu0 0.0
      %604 = vmatprep.subr.mxu0 0.0
      %605 = vmatpush2.msra.mxu0 0.0
      %606 = vmatprep.subr.mxu0 0.0
      %607 = vmatpush2.msra.mxu0 0.0
      %608 = vmatprep.subr.mxu0 0.0
      %609 = vmatpush2.msra.mxu0 0.0
      %610 = vmatprep.subr.mxu0 0.0
      %611 = vmatpush2.msra.mxu0 0.0
      %612 = vmatprep.subr.mxu0 0.0
      %613 = vmatpush2.msra.mxu0 0.0
      %614 = vmatprep.mubr.f32.mxu0 0.0
      %615 = vmatmul.mubr.f32.gmra.mxu0 %v529
      %v616 = vpop.f32.mrf.mxu0
      %v617 = vadd.f32 %v502, %v616
      %v618 = vpop.f32.mrf.mxu0
      %v619 = vadd.f32 %v502, %v618
      %620 = vmatprep.mubr.f32.mxu0 0.0
      %621 = vmatmul.mubr.f32.gmra.mxu0 %v532
      %v622 = vpop.f32.mrf.mxu0
      %v623 = vadd.f32 %v507, %v622
      %v624 = vpop.f32.mrf.mxu0
      %v625 = vadd.f32 %v507, %v624
      %626 = vmatprep.mubr.f32.mxu0 0.0
      %627 = vmatmul.mubr.f32.gmra.mxu0 %v535
      %v628 = vpop.f32.mrf.mxu0
      %v629 = vadd.f32 %v512, %v628
      %v630 = vpop.f32.mrf.mxu0
      %v631 = vadd.f32 %v512, %v630
      %632 = vmatprep.mubr.f32.mxu0 0.0
      %633 = vmatmul.mubr.f32.gmra.mxu0 %v538
      %v634 = vpop.f32.mrf.mxu0
      %v635 = vadd.f32 %v517, %v634
      %v636 = vpop.f32.mrf.mxu0
      %v637 = vadd.f32 %v517, %v636
      %638 = vmatprep.mubr.f32.mxu0 0.0
      %639 = vmatmul.mubr.f32.gmra.mxu0 %v541
      %v640 = vpop.f32.mrf.mxu0
      %v641 = vadd.f32 %v522, %v640
      %v642 = vpop.f32.mrf.mxu0
      %v643 = vadd.f32 %v522, %v642
      %644 = vdwg.mxu0
      %645 = vmatprep.subr.mxu0 0.0
      %646 = vmatpush1.msra.mxu0 0.0
      %647 = vmatprep.subr.mxu0 0.0
      %648 = vmatpush1.msra.mxu0 0.0
      %649 = vmatprep.subr.mxu0 0.0
      %650 = vmatpush1.msra.mxu0 0.0
      %651 = vmatprep.subr.mxu0 0.0
      %652 = vmatpush1.msra.mxu0 0.0
      %653 = vmatprep.subr.mxu0 0.0
      %654 = vmatpush1.msra.mxu0 0.0
      %655 = vmatprep.subr.mxu0 0.0
      %656 = vmatpush1.msra.mxu0 0.0
      %657 = vmatprep.subr.mxu0 0.0
      %658 = vmatpush1.msra.mxu0 0.0
      %659 = vmatprep.subr.mxu0 0.0
      %660 = vmatpush1.msra.mxu0 0.0
      %661 = vmatprep.subr.mxu0 0.0
      %662 = vmatpush1.msra.mxu0 0.0
      %663 = vmatprep.subr.mxu0 0.0
      %664 = vmatpush1.msra.mxu0 0.0
      %665 = vmatprep.subr.mxu0 0.0
      %666 = vmatpush1.msra.mxu0 0.0
      %667 = vmatprep.subr.mxu0 0.0
      %668 = vmatpush1.msra.mxu0 0.0
      %669 = vmatprep.subr.mxu0 0.0
      %670 = vmatpush1.msra.mxu0 0.0
      %671 = vmatprep.subr.mxu0 0.0
      %672 = vmatpush1.msra.mxu0 0.0
      %673 = vmatprep.subr.mxu0 0.0
      %674 = vmatpush1.msra.mxu0 0.0
      %675 = vmatprep.subr.mxu0 0.0
      %676 = vmatpush1.msra.mxu0 %v548
      %677 = vmatprep.subr.mxu0 0.0
      %678 = vmatpush2.msra.mxu0 0.0
      %679 = vmatprep.subr.mxu0 0.0
      %680 = vmatpush2.msra.mxu0 0.0
      %681 = vmatprep.subr.mxu0 0.0
      %682 = vmatpush2.msra.mxu0 0.0
      %683 = vmatprep.subr.mxu0 0.0
      %684 = vmatpush2.msra.mxu0 0.0
      %685 = vmatprep.subr.mxu0 0.0
      %686 = vmatpush2.msra.mxu0 0.0
      %687 = vmatprep.subr.mxu0 0.0
      %688 = vmatpush2.msra.mxu0 0.0
      %689 = vmatprep.subr.mxu0 0.0
      %690 = vmatpush2.msra.mxu0 0.0
      %691 = vmatprep.subr.mxu0 0.0
      %692 = vmatpush2.msra.mxu0 0.0
      %693 = vmatprep.subr.mxu0 0.0
      %694 = vmatpush2.msra.mxu0 0.0
      %695 = vmatprep.subr.mxu0 0.0
      %696 = vmatpush2.msra.mxu0 0.0
      %697 = vmatprep.subr.mxu0 0.0
      %698 = vmatpush2.msra.mxu0 0.0
      %699 = vmatprep.subr.mxu0 0.0
      %700 = vmatpush2.msra.mxu0 0.0
      %701 = vmatprep.subr.mxu0 0.0
      %702 = vmatpush2.msra.mxu0 0.0
      %703 = vmatprep.subr.mxu0 0.0
      %704 = vmatpush2.msra.mxu0 0.0
      %705 = vmatprep.subr.mxu0 0.0
      %706 = vmatpush2.msra.mxu0 0.0
      %707 = vmatprep.subr.mxu0 0.0
      %708 = vmatpush2.msra.mxu0 0.0
      %709 = vmatprep.mubr.f32.mxu0 0.0
      %710 = vmatmul.mubr.f32.gmra.mxu0 %v529
      %v711 = vpop.f32.mrf.mxu0
      %v712 = vadd.f32 %v502, %v711
      %v713 = vpop.f32.mrf.mxu0
      %714 = vmatprep.mubr.f32.mxu0 0.0
      %715 = vmatmul.mubr.f32.gmra.mxu0 %v532
      %v716 = vpop.f32.mrf.mxu0
      %v717 = vadd.f32 %v507, %v716
      %v718 = vpop.f32.mrf.mxu0
      %719 = vmatprep.mubr.f32.mxu0 0.0
      %720 = vmatmul.mubr.f32.gmra.mxu0 %v535
      %v721 = vpop.f32.mrf.mxu0
      %v722 = vadd.f32 %v512, %v721
      %v723 = vpop.f32.mrf.mxu0
      %724 = vmatprep.mubr.f32.mxu0 0.0
      %725 = vmatmul.mubr.f32.gmra.mxu0 %v538
      %v726 = vpop.f32.mrf.mxu0
      %v727 = vadd.f32 %v517, %v726
      %v728 = vpop.f32.mrf.mxu0
      %729 = vmatprep.mubr.f32.mxu0 0.0
      %730 = vmatmul.mubr.f32.gmra.mxu0 %v541
      %v731 = vpop.f32.mrf.mxu0
      %v732 = vadd.f32 %v522, %v731
      %v733 = vpop.f32.mrf.mxu0
      %734 = vdwg.mxu0
      %v735 = vld [vmem:[%s462] sm:$0xff]
      %v736 = vld [vmem:[%s462 + $0x8] sm:$0xff]
      %v739 = vcombine.high %v735, %v735
      %v740 = vcombine.high %v736, %v736
      %741 = vrot.lane.b32.xlu0 %v735, 19
      %v742 = vpop.permute.xlu0 %741
      %743 = vrot.lane.b32.xlu0 %v739, 19
      %v744 = vpop.permute.xlu0 %743
      %745 = vrot.lane.b32.xlu0 %v736, 19
      %v746 = vpop.permute.xlu0 %745
      %747 = vrot.lane.b32.xlu0 %v740, 19
      %v748 = vpop.permute.xlu0 %747
      %vm749 = vcmask 154624
      %v750 = vsel %vm749, %v742, %v744
      %v751 = vsel %vm749, %v744, %v746
      %v752 = vsel %vm749, %v746, %v748
      %756 = vst [vmem:[#allocation5] sm:$0xf] %v750
      %757 = vst [vmem:[#allocation5 + $0x8] sm:$0xf] %v751
      %758 = vst [vmem:[#allocation5 + $0x10] sm:$0xf] %v752
      %v759 = vld [vmem:[%s462] sm:$0xff]
      %v760 = vld [vmem:[%s462 + $0x8] sm:$0xff]
      %v763 = vcombine.low %v759, %v759
      %v764 = vcombine.low %v760, %v760
      %765 = vrot.lane.b32.xlu0 %v763, 18
      %v766 = vpop.permute.xlu0 %765
      %767 = vrot.lane.b32.xlu0 %v759, 18
      %v768 = vpop.permute.xlu0 %767
      %769 = vrot.lane.b32.xlu0 %v764, 18
      %v770 = vpop.permute.xlu0 %769
      %771 = vrot.lane.b32.xlu0 %v760, 18
      %v772 = vpop.permute.xlu0 %771
      %vm773 = vcmask 146432
      %v774 = vsel %vm773, %v766, %v768
      %v775 = vsel %vm773, %v768, %v770
      %v776 = vsel %vm773, %v770, %v772
      %780 = vst [vmem:[#allocation5] sm:$0xf0] %v774
      %781 = vst [vmem:[#allocation5 + $0x8] sm:$0xf0] %v775
      %782 = vst [vmem:[#allocation5 + $0x10] sm:$0xf0] %v776
      %v783 = vld [vmem:[%s462] sm:$0xff]
      %v784 = vld [vmem:[%s462 + $0x8] sm:$0xff]
      %v787 = vcombine.high %v783, %v783
      %v788 = vcombine.high %v784, %v784
      %789 = vrot.lane.b32.xlu0 %v783, 17
      %v790 = vpop.permute.xlu0 %789
      %791 = vrot.lane.b32.xlu0 %v787, 17
      %v792 = vpop.permute.xlu0 %791
      %793 = vrot.lane.b32.xlu0 %v784, 17
      %v794 = vpop.permute.xlu0 %793
      %795 = vrot.lane.b32.xlu0 %v788, 17
      %v796 = vpop.permute.xlu0 %795
      %vm797 = vcmask 138240
      %v798 = vsel %vm797, %v790, %v792
      %v799 = vsel %vm797, %v792, %v794
      %v800 = vsel %vm797, %v794, %v796
      %804 = vst [vmem:[#allocation5 + $0x18] sm:$0xf] %v798
      %805 = vst [vmem:[#allocation5 + $0x20] sm:$0xf] %v799
      %806 = vst [vmem:[#allocation5 + $0x28] sm:$0xf] %v800
      %v807 = vld [vmem:[%s462] sm:$0xff]
      %v808 = vld [vmem:[%s462 + $0x8] sm:$0xff]
      %v811 = vcombine.low %v807, %v807
      %v812 = vcombine.low %v808, %v808
      %813 = vrot.lane.b32.xlu0 %v811, 1
      %v814 = vpop.permute.xlu0 %813
      %815 = vrot.lane.b32.xlu0 %v807, 1
      %v816 = vpop.permute.xlu0 %815
      %817 = vrot.lane.b32.xlu0 %v812, 1
      %v818 = vpop.permute.xlu0 %817
      %819 = vrot.lane.b32.xlu0 %v808, 1
      %v820 = vpop.permute.xlu0 %819
      %vm821 = vcmask 7168
      %v822 = vsel %vm821, %v814, %v816
      %v823 = vsel %vm821, %v816, %v818
      %v824 = vsel %vm821, %v818, %v820
      %828 = vst [vmem:[#allocation5 + $0x18] sm:$0xf0] %v822
      %829 = vst [vmem:[#allocation5 + $0x20] sm:$0xf0] %v823
      %830 = vst [vmem:[#allocation5 + $0x28] sm:$0xf0] %v824
      %v831 = vld [vmem:[%s462 + $0x4] sm:$0xff]
      %v832 = vld [vmem:[%s462 + $0xc] sm:$0xf]
      %v834 = vcombine.high %v831, %v831
      %836 = vst [vmem:[#allocation5 + $0x30] sm:$0xf] %v831
      %837 = vst [vmem:[#allocation5 + $0x38] sm:$0xf] %v834
      %838 = vst [vmem:[#allocation5 + $0x40] sm:$0xf] %v832
      %v839 = vld [vmem:[%s462 + $0x4] sm:$0xff]
      %v840 = vld [vmem:[%s462 + $0xc] sm:$0xff]
      %v843 = vcombine.low %v839, %v839
      %v844 = vcombine.low %v840, %v840
      %845 = vrot.lane.b32.xlu0 %v843, 127
      %v846 = vpop.permute.xlu0 %845
      %847 = vrot.lane.b32.xlu0 %v839, 127
      %v848 = vpop.permute.xlu0 %847
      %849 = vrot.lane.b32.xlu0 %v844, 127
      %v850 = vpop.permute.xlu0 %849
      %851 = vrot.lane.b32.xlu0 %v840, 127
      %v852 = vpop.permute.xlu0 %851
      %vm853 = vcmask 1039360
      %v854 = vsel %vm853, %v846, %v848
      %v855 = vsel %vm853, %v848, %v850
      %v856 = vsel %vm853, %v850, %v852
      %860 = vst [vmem:[#allocation5 + $0x30] sm:$0xf0] %v854
      %861 = vst [vmem:[#allocation5 + $0x38] sm:$0xf0] %v855
      %862 = vst [vmem:[#allocation5 + $0x40] sm:$0xf0] %v856
      %v863 = vld [vmem:[%s462 + $0x4] sm:$0xff]
      %v864 = vld [vmem:[%s462 + $0xc] sm:$0xff]
      %v867 = vcombine.high %v863, %v863
      %v868 = vcombine.high %v864, %v864
      %869 = vrot.lane.b32.xlu0 %v863, 111
      %v870 = vpop.permute.xlu0 %869
      %871 = vrot.lane.b32.xlu0 %v867, 111
      %v872 = vpop.permute.xlu0 %871
      %873 = vrot.lane.b32.xlu0 %v864, 111
      %v874 = vpop.permute.xlu0 %873
      %875 = vrot.lane.b32.xlu0 %v868, 111
      %v876 = vpop.permute.xlu0 %875
      %vm877 = vcmask 908288
      %v878 = vsel %vm877, %v870, %v872
      %v879 = vsel %vm877, %v872, %v874
      %v880 = vsel %vm877, %v874, %v876
      %884 = vst [vmem:[#allocation5 + $0x48] sm:$0xf] %v878
      %885 = vst [vmem:[#allocation5 + $0x50] sm:$0xf] %v879
      %886 = vst [vmem:[#allocation5 + $0x58] sm:$0xf] %v880
      %v887 = vld [vmem:[%s462 + $0x4] sm:$0xff]
      %v888 = vld [vmem:[%s462 + $0xc] sm:$0xff]
      %v891 = vcombine.low %v887, %v887
      %v892 = vcombine.low %v888, %v888
      %893 = vrot.lane.b32.xlu0 %v891, 110
      %v894 = vpop.permute.xlu0 %893
      %895 = vrot.lane.b32.xlu0 %v887, 110
      %v896 = vpop.permute.xlu0 %895
      %897 = vrot.lane.b32.xlu0 %v892, 110
      %v898 = vpop.permute.xlu0 %897
      %899 = vrot.lane.b32.xlu0 %v888, 110
      %v900 = vpop.permute.xlu0 %899
      %vm901 = vcmask 900096
      %v902 = vsel %vm901, %v894, %v896
      %v903 = vsel %vm901, %v896, %v898
      %v904 = vsel %vm901, %v898, %v900
      %908 = vst [vmem:[#allocation5 + $0x48] sm:$0xf0] %v902
      %909 = vst [vmem:[#allocation5 + $0x50] sm:$0xf0] %v903
      %910 = vst [vmem:[#allocation5 + $0x58] sm:$0xf0] %v904
      %v911 = vld [vmem:[%s462 + $0x4] sm:$0xff]
      %v912 = vld [vmem:[%s462 + $0xc] sm:$0xff]
      %v915 = vcombine.high %v911, %v911
      %v916 = vcombine.high %v912, %v912
      %917 = vrot.lane.b32.xlu0 %v911, 109
      %v918 = vpop.permute.xlu0 %917
      %919 = vrot.lane.b32.xlu0 %v915, 109
      %v920 = vpop.permute.xlu0 %919
      %921 = vrot.lane.b32.xlu0 %v912, 109
      %v922 = vpop.permute.xlu0 %921
      %923 = vrot.lane.b32.xlu0 %v916, 109
      %v924 = vpop.permute.xlu0 %923
      %vm925 = vcmask 891904
      %v926 = vsel %vm925, %v918, %v920
      %v927 = vsel %vm925, %v920, %v922
      %v928 = vsel %vm925, %v922, %v924
      %932 = vst [vmem:[#allocation5 + $0x60] sm:$0xf] %v926
      %933 = vst [vmem:[#allocation5 + $0x68] sm:$0xf] %v927
      %934 = vst [vmem:[#allocation5 + $0x70] sm:$0xf] %v928
      %v935 = vld [vmem:[%s4] sm:$0xff]
      %v936 = vld [vmem:[%s4 + $0x8] sm:$0xff]
      %v937 = vld [vmem:[%s4 + $0x10] sm:$0xff]
      %v938 = vld [vmem:[%s4 + $0x18] sm:$0xff]
      %v939 = vld [vmem:[#allocation5] sm:$0xff]
      %v940 = vld [vmem:[#allocation5 + $0x8] sm:$0xff]
      %v941 = vld [vmem:[#allocation5 + $0x10] sm:$0xff]
      %v942 = vld [vmem:[#allocation5 + $0x18] sm:$0xff]
      %v943 = vld [vmem:[#allocation5 + $0x20] sm:$0xff]
      %v944 = vld [vmem:[#allocation5 + $0x28] sm:$0xff]
      %v945 = vld [vmem:[#allocation5 + $0x30] sm:$0xff]
      %v946 = vld [vmem:[#allocation5 + $0x38] sm:$0xff]
      %v947 = vld [vmem:[#allocation5 + $0x40] sm:$0xff]
      %v948 = vld [vmem:[#allocation5 + $0x48] sm:$0xff]
      %v949 = vld [vmem:[#allocation5 + $0x50] sm:$0xff]
      %v950 = vld [vmem:[#allocation5 + $0x58] sm:$0xff]
      %v951 = vld [vmem:[#allocation5 + $0x60] sm:$0xf]
      %v952 = vld [vmem:[#allocation5 + $0x68] sm:$0xf]
      %v953 = vld [vmem:[#allocation5 + $0x70] sm:$0xf]
      %v954 = vld [vmem:[%s5] sm:$0xff]
      %v955 = vld [vmem:[%s5 + $0x8] sm:$0xff]
      %v956 = vld [vmem:[%s5 + $0x10] sm:$0xff]
      %v957 = vld [vmem:[%s5 + $0x18] sm:$0xff]
      %959 = vset.pattern.permute.xlu0 0
      %960 = vperm.xlu0 %959, %v954
      %v961 = vpop.permute.xlu0 %960
      %964 = vset.pattern.permute.xlu0 0
      %965 = vperm.xlu0 %964, %v955
      %v966 = vpop.permute.xlu0 %965
      %969 = vset.pattern.permute.xlu0 0
      %970 = vperm.xlu0 %969, %v956
      %v971 = vpop.permute.xlu0 %970
      %974 = vset.pattern.permute.xlu0 0
      %975 = vperm.xlu0 %974, %v957
      %v976 = vpop.permute.xlu0 %975
      %vm978 = vcmask 293888
      %v980 = vsel %vm978, %v935, 0
      %v983 = vsel %vm978, %v936, 0
      %v986 = vsel %vm978, %v937, 0
      %v989 = vsel %vm978, %v938, 0
      %v992 = vsel %vm543, %v951, 0
      %v995 = vsel %vm543, %v952, 0
      %v998 = vsel %vm543, %v953, 0
      %1000 = vmatprep.subr.mxu0 0.0
      %1001 = vmatpush1.msra.mxu0 0.0
      %1002 = vmatprep.subr.mxu0 0.0
      %1003 = vmatpush1.msra.mxu0 0.0
      %1004 = vmatprep.subr.mxu0 0.0
      %1005 = vmatpush1.msra.mxu0 0.0
      %1006 = vmatprep.subr.mxu0 0.0
      %1007 = vmatpush1.msra.mxu0 0.0
      %1008 = vmatprep.subr.mxu0 0.0
      %1009 = vmatpush1.msra.mxu0 0.0
      %1010 = vmatprep.subr.mxu0 0.0
      %1011 = vmatpush1.msra.mxu0 0.0
      %1012 = vmatprep.subr.mxu0 0.0
      %1013 = vmatpush1.msra.mxu0 0.0
      %1014 = vmatprep.subr.mxu0 0.0
      %1015 = vmatpush1.msra.mxu0 0.0
      %1016 = vmatprep.subr.mxu0 0.0
      %1017 = vmatpush1.msra.mxu0 0.0
      %1018 = vmatprep.subr.mxu0 0.0
      %1019 = vmatpush1.msra.mxu0 0.0
      %1020 = vmatprep.subr.mxu0 0.0
      %1021 = vmatpush1.msra.mxu0 0.0
      %1022 = vmatprep.subr.mxu0 %v995
      %1023 = vmatpush1.msra.mxu0 %v992
      %1024 = vmatprep.subr.mxu0 %v949
      %1025 = vmatpush1.msra.mxu0 %v948
      %1026 = vmatprep.subr.mxu0 %v946
      %1027 = vmatpush1.msra.mxu0 %v945
      %1028 = vmatprep.subr.mxu0 %v943
      %1029 = vmatpush1.msra.mxu0 %v942
      %1030 = vmatprep.subr.mxu0 %v940
      %1031 = vmatpush1.msra.mxu0 %v939
      %1032 = vmatprep.subr.mxu0 0.0
      %1033 = vmatpush2.msra.mxu0 0.0
      %1034 = vmatprep.subr.mxu0 0.0
      %1035 = vmatpush2.msra.mxu0 0.0
      %1036 = vmatprep.subr.mxu0 0.0
      %1037 = vmatpush2.msra.mxu0 0.0
      %1038 = vmatprep.subr.mxu0 0.0
      %1039 = vmatpush2.msra.mxu0 0.0
      %1040 = vmatprep.subr.mxu0 0.0
      %1041 = vmatpush2.msra.mxu0 0.0
      %1042 = vmatprep.subr.mxu0 0.0
      %1043 = vmatpush2.msra.mxu0 0.0
      %1044 = vmatprep.subr.mxu0 0.0
      %1045 = vmatpush2.msra.mxu0 0.0
      %1046 = vmatprep.subr.mxu0 0.0
      %1047 = vmatpush2.msra.mxu0 0.0
      %1048 = vmatprep.subr.mxu0 0.0
      %1049 = vmatpush2.msra.mxu0 0.0
      %1050 = vmatprep.subr.mxu0 0.0
      %1051 = vmatpush2.msra.mxu0 0.0
      %1052 = vmatprep.subr.mxu0 0.0
      %1053 = vmatpush2.msra.mxu0 0.0
      %1054 = vmatprep.subr.mxu0 0.0
      %1055 = vmatpush2.msra.mxu0 0.0
      %1056 = vmatprep.subr.mxu0 0.0
      %1057 = vmatpush2.msra.mxu0 0.0
      %1058 = vmatprep.subr.mxu0 0.0
      %1059 = vmatpush2.msra.mxu0 0.0
      %1060 = vmatprep.subr.mxu0 0.0
      %1061 = vmatpush2.msra.mxu0 0.0
      %1062 = vmatprep.subr.mxu0 0.0
      %1063 = vmatpush2.msra.mxu0 0.0
      %1064 = vmatprep.mubr.f32.mxu0 0.0
      %1065 = vmatmul.mubr.f32.gmra.mxu0 %v980
      %v1066 = vpop.f32.mrf.mxu0
      %v1067 = vadd.f32 %v961, %v1066
      %v1068 = vpop.f32.mrf.mxu0
      %v1069 = vadd.f32 %v961, %v1068
      %1070 = vmatprep.mubr.f32.mxu0 0.0
      %1071 = vmatmul.mubr.f32.gmra.mxu0 %v983
      %v1072 = vpop.f32.mrf.mxu0
      %v1073 = vadd.f32 %v966, %v1072
      %v1074 = vpop.f32.mrf.mxu0
      %v1075 = vadd.f32 %v966, %v1074
      %1076 = vmatprep.mubr.f32.mxu0 0.0
      %1077 = vmatmul.mubr.f32.gmra.mxu0 %v986
      %v1078 = vpop.f32.mrf.mxu0
      %v1079 = vadd.f32 %v971, %v1078
      %v1080 = vpop.f32.mrf.mxu0
      %v1081 = vadd.f32 %v971, %v1080
      %1082 = vmatprep.mubr.f32.mxu0 0.0
      %1083 = vmatmul.mubr.f32.gmra.mxu0 %v989
      %v1084 = vpop.f32.mrf.mxu0
      %v1085 = vadd.f32 %v976, %v1084
      %v1086 = vpop.f32.mrf.mxu0
      %v1087 = vadd.f32 %v976, %v1086
      %1088 = vdwg.mxu0
      %1089 = vmatprep.subr.mxu0 0.0
      %1090 = vmatpush1.msra.mxu0 0.0
      %1091 = vmatprep.subr.mxu0 0.0
      %1092 = vmatpush1.msra.mxu0 0.0
      %1093 = vmatprep.subr.mxu0 0.0
      %1094 = vmatpush1.msra.mxu0 0.0
      %1095 = vmatprep.subr.mxu0 0.0
      %1096 = vmatpush1.msra.mxu0 0.0
      %1097 = vmatprep.subr.mxu0 0.0
      %1098 = vmatpush1.msra.mxu0 0.0
      %1099 = vmatprep.subr.mxu0 0.0
      %1100 = vmatpush1.msra.mxu0 0.0
      %1101 = vmatprep.subr.mxu0 0.0
      %1102 = vmatpush1.msra.mxu0 0.0
      %1103 = vmatprep.subr.mxu0 0.0
      %1104 = vmatpush1.msra.mxu0 0.0
      %1105 = vmatprep.subr.mxu0 0.0
      %1106 = vmatpush1.msra.mxu0 0.0
      %1107 = vmatprep.subr.mxu0 0.0
      %1108 = vmatpush1.msra.mxu0 0.0
      %1109 = vmatprep.subr.mxu0 0.0
      %1110 = vmatpush1.msra.mxu0 0.0
      %1111 = vmatprep.subr.mxu0 0.0
      %1112 = vmatpush1.msra.mxu0 %v998
      %1113 = vmatprep.subr.mxu0 0.0
      %1114 = vmatpush1.msra.mxu0 %v950
      %1115 = vmatprep.subr.mxu0 0.0
      %1116 = vmatpush1.msra.mxu0 %v947
      %1117 = vmatprep.subr.mxu0 0.0
      %1118 = vmatpush1.msra.mxu0 %v944
      %1119 = vmatprep.subr.mxu0 0.0
      %1120 = vmatpush1.msra.mxu0 %v941
      %1121 = vmatprep.subr.mxu0 0.0
      %1122 = vmatpush2.msra.mxu0 0.0
      %1123 = vmatprep.subr.mxu0 0.0
      %1124 = vmatpush2.msra.mxu0 0.0
      %1125 = vmatprep.subr.mxu0 0.0
      %1126 = vmatpush2.msra.mxu0 0.0
      %1127 = vmatprep.subr.mxu0 0.0
      %1128 = vmatpush2.msra.mxu0 0.0
      %1129 = vmatprep.subr.mxu0 0.0
      %1130 = vmatpush2.msra.mxu0 0.0
      %1131 = vmatprep.subr.mxu0 0.0
      %1132 = vmatpush2.msra.mxu0 0.0
      %1133 = vmatprep.subr.mxu0 0.0
      %1134 = vmatpush2.msra.mxu0 0.0
      %1135 = vmatprep.subr.mxu0 0.0
      %1136 = vmatpush2.msra.mxu0 0.0
      %1137 = vmatprep.subr.mxu0 0.0
      %1138 = vmatpush2.msra.mxu0 0.0
      %1139 = vmatprep.subr.mxu0 0.0
      %1140 = vmatpush2.msra.mxu0 0.0
      %1141 = vmatprep.subr.mxu0 0.0
      %1142 = vmatpush2.msra.mxu0 0.0
      %1143 = vmatprep.subr.mxu0 0.0
      %1144 = vmatpush2.msra.mxu0 0.0
      %1145 = vmatprep.subr.mxu0 0.0
      %1146 = vmatpush2.msra.mxu0 0.0
      %1147 = vmatprep.subr.mxu0 0.0
      %1148 = vmatpush2.msra.mxu0 0.0
      %1149 = vmatprep.subr.mxu0 0.0
      %1150 = vmatpush2.msra.mxu0 0.0
      %1151 = vmatprep.subr.mxu0 0.0
      %1152 = vmatpush2.msra.mxu0 0.0
      %1153 = vmatprep.mubr.f32.mxu0 0.0
      %1154 = vmatmul.mubr.f32.gmra.mxu0 %v980
      %v1155 = vpop.f32.mrf.mxu0
      %v1156 = vadd.f32 %v961, %v1155
      %v1157 = vpop.f32.mrf.mxu0
      %1158 = vmatprep.mubr.f32.mxu0 0.0
      %1159 = vmatmul.mubr.f32.gmra.mxu0 %v983
      %v1160 = vpop.f32.mrf.mxu0
      %v1161 = vadd.f32 %v966, %v1160
      %v1162 = vpop.f32.mrf.mxu0
      %1163 = vmatprep.mubr.f32.mxu0 0.0
      %1164 = vmatmul.mubr.f32.gmra.mxu0 %v986
      %v1165 = vpop.f32.mrf.mxu0
      %v1166 = vadd.f32 %v971, %v1165
      %v1167 = vpop.f32.mrf.mxu0
      %1168 = vmatprep.mubr.f32.mxu0 0.0
      %1169 = vmatmul.mubr.f32.gmra.mxu0 %v989
      %v1170 = vpop.f32.mrf.mxu0
      %v1171 = vadd.f32 %v976, %v1170
      %v1172 = vpop.f32.mrf.mxu0
      %1173 = vdwg.mxu0
      %vm1174 = vcmp.ge.f32.partialorder %v1067, 0.0
      %vm1175 = vcmp.ge.f32.partialorder %v1069, 0.0
      %vm1176 = vcmp.ge.f32.partialorder %v1156, 0.0
      %vm1177 = vcmp.ge.f32.partialorder %v1073, 0.0
      %vm1178 = vcmp.ge.f32.partialorder %v1075, 0.0
      %vm1179 = vcmp.ge.f32.partialorder %v1161, 0.0
      %vm1180 = vcmp.ge.f32.partialorder %v1079, 0.0
      %vm1181 = vcmp.ge.f32.partialorder %v1081, 0.0
      %vm1182 = vcmp.ge.f32.partialorder %v1166, 0.0
      %vm1183 = vcmp.ge.f32.partialorder %v1085, 0.0
      %vm1184 = vcmp.ge.f32.partialorder %v1087, 0.0
      %vm1185 = vcmp.ge.f32.partialorder %v1171, 0.0
      %v1186 = vmul.f32 %v1067, 0.2
      %v1187 = vmul.f32 %v1069, 0.2
      %v1188 = vmul.f32 %v1156, 0.2
      %v1189 = vmul.f32 %v1073, 0.2
      %v1190 = vmul.f32 %v1075, 0.2
      %v1191 = vmul.f32 %v1161, 0.2
      %v1192 = vmul.f32 %v1079, 0.2
      %v1193 = vmul.f32 %v1081, 0.2
      %v1194 = vmul.f32 %v1166, 0.2
      %v1195 = vmul.f32 %v1085, 0.2
      %v1196 = vmul.f32 %v1087, 0.2
      %v1197 = vmul.f32 %v1171, 0.2
      %v1198 = vsel %vm1174, %v1067, %v1186
      %v1199 = vsel %vm1175, %v1069, %v1187
      %v1200 = vsel %vm1176, %v1156, %v1188
      %v1201 = vsel %vm1177, %v1073, %v1189
      %v1202 = vsel %vm1178, %v1075, %v1190
      %v1203 = vsel %vm1179, %v1161, %v1191
      %v1204 = vsel %vm1180, %v1079, %v1192
      %v1205 = vsel %vm1181, %v1081, %v1193
      %v1206 = vsel %vm1182, %v1166, %v1194
      %v1207 = vsel %vm1183, %v1085, %v1195
      %v1208 = vsel %vm1184, %v1087, %v1196
      %v1209 = vsel %vm1185, %v1171, %v1197
      %v1211 = vlaneseq
      %v1212 = vshrl.u32 %v1211, 7
      %v1213 = vsub.s32 0, %v1212
      %v1214 = vrot.slane %v486, %v1213
      %v1215 = vlaneseq
      %v1216 = vshrl.u32 %v1215, 7
      %v1217 = vsub.s32 1, %v1216
      %v1218 = vrot.slane %v486, %v1217
      %v1219 = vlaneseq
      %v1220 = vshrl.u32 %v1219, 7
      %v1221 = vsub.s32 2, %v1220
      %v1222 = vrot.slane %v486, %v1221
      %v1226 = vmul.f32 %v1198, %v1214
      %v1227 = vmul.f32 %v1199, %v1218
      %v1228 = vmul.f32 %v1200, %v1222
      %v1229 = vmul.f32 %v1201, %v1214
      %v1230 = vmul.f32 %v1202, %v1218
      %v1231 = vmul.f32 %v1203, %v1222
      %v1232 = vmul.f32 %v1204, %v1214
      %v1233 = vmul.f32 %v1205, %v1218
      %v1234 = vmul.f32 %v1206, %v1222
      %v1235 = vmul.f32 %v1207, %v1214
      %v1236 = vmul.f32 %v1208, %v1218
      %v1237 = vmul.f32 %v1209, %v1222
      %1238 = vst [vmem:[#allocation2 + $0x8] sm:$0xff] %v1226
      %1239 = vst [vmem:[#allocation2 + $0x10] sm:$0xff] %v1227
      %1240 = vst [vmem:[#allocation2 + $0x18] sm:$0xff] %v1228
      %1241 = vst [vmem:[#allocation2 + $0x30] sm:$0xff] %v1229
      %1242 = vst [vmem:[#allocation2 + $0x38] sm:$0xff] %v1230
      %1243 = vst [vmem:[#allocation2 + $0x40] sm:$0xff] %v1231
      %1244 = vst [vmem:[#allocation2 + $0x58] sm:$0xff] %v1232
      %1245 = vst [vmem:[#allocation2 + $0x60] sm:$0xff] %v1233
      %1246 = vst [vmem:[#allocation2 + $0x68] sm:$0xff] %v1234
      %1247 = vst [vmem:[#allocation2 + $0x80] sm:$0xff] %v1235
      %1248 = vst [vmem:[#allocation2 + $0x88] sm:$0xff] %v1236
      %1249 = vst [vmem:[#allocation2 + $0x90] sm:$0xff] %v1237
      %v1250 = vld [vmem:[#allocation2] sm:$0xff]
      %v1251 = vld [vmem:[#allocation2 + $0x8] sm:$0xff]
      %v1252 = vld [vmem:[#allocation2 + $0x10] sm:$0xff]
      %v1253 = vld [vmem:[#allocation2 + $0x18] sm:$0xff]
      %v1254 = vld [vmem:[#allocation2 + $0x28] sm:$0xff]
      %v1255 = vld [vmem:[#allocation2 + $0x30] sm:$0xff]
      %v1256 = vld [vmem:[#allocation2 + $0x38] sm:$0xff]
      %v1257 = vld [vmem:[#allocation2 + $0x40] sm:$0xff]
      %v1258 = vld [vmem:[#allocation2 + $0x50] sm:$0xff]
      %v1259 = vld [vmem:[#allocation2 + $0x58] sm:$0xff]
      %v1260 = vld [vmem:[#allocation2 + $0x60] sm:$0xff]
      %v1261 = vld [vmem:[#allocation2 + $0x68] sm:$0xff]
      %v1262 = vld [vmem:[#allocation2 + $0x78] sm:$0xff]
      %v1263 = vld [vmem:[#allocation2 + $0x80] sm:$0xff]
      %v1264 = vld [vmem:[#allocation2 + $0x88] sm:$0xff]
      %v1265 = vld [vmem:[#allocation2 + $0x90] sm:$0xff]
      %1282 = vrot.lane.b32.xlu0 %v1250, 19
      %v1283 = vpop.permute.xlu0 %1282
      %1284 = vrot.lane.b32.xlu0 %v1251, 19
      %v1285 = vpop.permute.xlu0 %1284
      %1286 = vrot.lane.b32.xlu0 %v1252, 19
      %v1287 = vpop.permute.xlu0 %1286
      %1288 = vrot.lane.b32.xlu0 %v1253, 19
      %v1289 = vpop.permute.xlu0 %1288
      %1290 = vrot.lane.b32.xlu0 %v1254, 19
      %v1291 = vpop.permute.xlu0 %1290
      %1292 = vrot.lane.b32.xlu0 %v1255, 19
      %v1293 = vpop.permute.xlu0 %1292
      %1294 = vrot.lane.b32.xlu0 %v1256, 19
      %v1295 = vpop.permute.xlu0 %1294
      %1296 = vrot.lane.b32.xlu0 %v1257, 19
      %v1297 = vpop.permute.xlu0 %1296
      %1298 = vrot.lane.b32.xlu0 %v1258, 19
      %v1299 = vpop.permute.xlu0 %1298
      %1300 = vrot.lane.b32.xlu0 %v1259, 19
      %v1301 = vpop.permute.xlu0 %1300
      %1302 = vrot.lane.b32.xlu0 %v1260, 19
      %v1303 = vpop.permute.xlu0 %1302
      %1304 = vrot.lane.b32.xlu0 %v1261, 19
      %v1305 = vpop.permute.xlu0 %1304
      %1306 = vrot.lane.b32.xlu0 %v1262, 19
      %v1307 = vpop.permute.xlu0 %1306
      %1308 = vrot.lane.b32.xlu0 %v1263, 19
      %v1309 = vpop.permute.xlu0 %1308
      %1310 = vrot.lane.b32.xlu0 %v1264, 19
      %v1311 = vpop.permute.xlu0 %1310
      %1312 = vrot.lane.b32.xlu0 %v1265, 19
      %v1313 = vpop.permute.xlu0 %1312
      %v1314 = vsel %vm749, %v1283, %v1285
      %v1315 = vsel %vm749, %v1285, %v1287
      %v1316 = vsel %vm749, %v1287, %v1289
      %v1317 = vsel %vm749, %v1291, %v1293
      %v1318 = vsel %vm749, %v1293, %v1295
      %v1319 = vsel %vm749, %v1295, %v1297
      %v1320 = vsel %vm749, %v1299, %v1301
      %v1321 = vsel %vm749, %v1301, %v1303
      %v1322 = vsel %vm749, %v1303, %v1305
      %v1323 = vsel %vm749, %v1307, %v1309
      %v1324 = vsel %vm749, %v1309, %v1311
      %v1325 = vsel %vm749, %v1311, %v1313
      %1338 = vst [vmem:[#allocation5] sm:$0xff] %v1314
      %1339 = vst [vmem:[#allocation5 + $0x8] sm:$0xff] %v1315
      %1340 = vst [vmem:[#allocation5 + $0x10] sm:$0xff] %v1316
      %1341 = vst [vmem:[#allocation5 + $0x18] sm:$0xff] %v1317
      %1342 = vst [vmem:[#allocation5 + $0x20] sm:$0xff] %v1318
      %1343 = vst [vmem:[#allocation5 + $0x28] sm:$0xff] %v1319
      %1344 = vst [vmem:[#allocation5 + $0x30] sm:$0xff] %v1320
      %1345 = vst [vmem:[#allocation5 + $0x38] sm:$0xff] %v1321
      %1346 = vst [vmem:[#allocation5 + $0x40] sm:$0xff] %v1322
      %1347 = vst [vmem:[#allocation5 + $0x48] sm:$0xff] %v1323
      %1348 = vst [vmem:[#allocation5 + $0x50] sm:$0xff] %v1324
      %1349 = vst [vmem:[#allocation5 + $0x58] sm:$0xff] %v1325
      %v1350 = vld [vmem:[#allocation2] sm:$0xff]
      %v1351 = vld [vmem:[#allocation2 + $0x8] sm:$0xff]
      %v1352 = vld [vmem:[#allocation2 + $0x10] sm:$0xff]
      %v1353 = vld [vmem:[#allocation2 + $0x18] sm:$0xff]
      %v1354 = vld [vmem:[#allocation2 + $0x28] sm:$0xff]
      %v1355 = vld [vmem:[#allocation2 + $0x30] sm:$0xff]
      %v1356 = vld [vmem:[#allocation2 + $0x38] sm:$0xff]
      %v1357 = vld [vmem:[#allocation2 + $0x40] sm:$0xff]
      %v1358 = vld [vmem:[#allocation2 + $0x50] sm:$0xff]
      %v1359 = vld [vmem:[#allocation2 + $0x58] sm:$0xff]
      %v1360 = vld [vmem:[#allocation2 + $0x60] sm:$0xff]
      %v1361 = vld [vmem:[#allocation2 + $0x68] sm:$0xff]
      %v1362 = vld [vmem:[#allocation2 + $0x78] sm:$0xff]
      %v1363 = vld [vmem:[#allocation2 + $0x80] sm:$0xff]
      %v1364 = vld [vmem:[#allocation2 + $0x88] sm:$0xff]
      %v1365 = vld [vmem:[#allocation2 + $0x90] sm:$0xff]
      %1382 = vrot.lane.b32.xlu0 %v1350, 18
      %v1383 = vpop.permute.xlu0 %1382
      %1384 = vrot.lane.b32.xlu0 %v1351, 18
      %v1385 = vpop.permute.xlu0 %1384
      %1386 = vrot.lane.b32.xlu0 %v1352, 18
      %v1387 = vpop.permute.xlu0 %1386
      %1388 = vrot.lane.b32.xlu0 %v1353, 18
      %v1389 = vpop.permute.xlu0 %1388
      %1390 = vrot.lane.b32.xlu0 %v1354, 18
      %v1391 = vpop.permute.xlu0 %1390
      %1392 = vrot.lane.b32.xlu0 %v1355, 18
      %v1393 = vpop.permute.xlu0 %1392
      %1394 = vrot.lane.b32.xlu0 %v1356, 18
      %v1395 = vpop.permute.xlu0 %1394
      %1396 = vrot.lane.b32.xlu0 %v1357, 18
      %v1397 = vpop.permute.xlu0 %1396
      %1398 = vrot.lane.b32.xlu0 %v1358, 18
      %v1399 = vpop.permute.xlu0 %1398
      %1400 = vrot.lane.b32.xlu0 %v1359, 18
      %v1401 = vpop.permute.xlu0 %1400
      %1402 = vrot.lane.b32.xlu0 %v1360, 18
      %v1403 = vpop.permute.xlu0 %1402
      %1404 = vrot.lane.b32.xlu0 %v1361, 18
      %v1405 = vpop.permute.xlu0 %1404
      %1406 = vrot.lane.b32.xlu0 %v1362, 18
      %v1407 = vpop.permute.xlu0 %1406
      %1408 = vrot.lane.b32.xlu0 %v1363, 18
      %v1409 = vpop.permute.xlu0 %1408
      %1410 = vrot.lane.b32.xlu0 %v1364, 18
      %v1411 = vpop.permute.xlu0 %1410
      %1412 = vrot.lane.b32.xlu0 %v1365, 18
      %v1413 = vpop.permute.xlu0 %1412
      %v1414 = vsel %vm773, %v1383, %v1385
      %v1415 = vsel %vm773, %v1385, %v1387
      %v1416 = vsel %vm773, %v1387, %v1389
      %v1417 = vsel %vm773, %v1391, %v1393
      %v1418 = vsel %vm773, %v1393, %v1395
      %v1419 = vsel %vm773, %v1395, %v1397
      %v1420 = vsel %vm773, %v1399, %v1401
      %v1421 = vsel %vm773, %v1401, %v1403
      %v1422 = vsel %vm773, %v1403, %v1405
      %v1423 = vsel %vm773, %v1407, %v1409
      %v1424 = vsel %vm773, %v1409, %v1411
      %v1425 = vsel %vm773, %v1411, %v1413
      %1438 = vst [vmem:[#allocation5 + $0x60] sm:$0xff] %v1414
      %1439 = vst [vmem:[#allocation5 + $0x68] sm:$0xff] %v1415
      %1440 = vst [vmem:[#allocation5 + $0x70] sm:$0xff] %v1416
      %1441 = vst [vmem:[#allocation5 + $0x78] sm:$0xff] %v1417
      %1442 = vst [vmem:[#allocation5 + $0x80] sm:$0xff] %v1418
      %1443 = vst [vmem:[#allocation5 + $0x88] sm:$0xff] %v1419
      %1444 = vst [vmem:[#allocation5 + $0x90] sm:$0xff] %v1420
      %1445 = vst [vmem:[#allocation5 + $0x98] sm:$0xff] %v1421
      %1446 = vst [vmem:[#allocation5 + $0xa0] sm:$0xff] %v1422
      %1447 = vst [vmem:[#allocation5 + $0xa8] sm:$0xff] %v1423
      %1448 = vst [vmem:[#allocation5 + $0xb0] sm:$0xff] %v1424
      %1449 = vst [vmem:[#allocation5 + $0xb8] sm:$0xff] %v1425
      %v1450 = vld [vmem:[#allocation2] sm:$0xff]
      %v1451 = vld [vmem:[#allocation2 + $0x8] sm:$0xff]
      %v1452 = vld [vmem:[#allocation2 + $0x10] sm:$0xff]
      %v1453 = vld [vmem:[#allocation2 + $0x18] sm:$0xff]
      %v1454 = vld [vmem:[#allocation2 + $0x28] sm:$0xff]
      %v1455 = vld [vmem:[#allocation2 + $0x30] sm:$0xff]
      %v1456 = vld [vmem:[#allocation2 + $0x38] sm:$0xff]
      %v1457 = vld [vmem:[#allocation2 + $0x40] sm:$0xff]
      %v1458 = vld [vmem:[#allocation2 + $0x50] sm:$0xff]
      %v1459 = vld [vmem:[#allocation2 + $0x58] sm:$0xff]
      %v1460 = vld [vmem:[#allocation2 + $0x60] sm:$0xff]
      %v1461 = vld [vmem:[#allocation2 + $0x68] sm:$0xff]
      %v1462 = vld [vmem:[#allocation2 + $0x78] sm:$0xff]
      %v1463 = vld [vmem:[#allocation2 + $0x80] sm:$0xff]
      %v1464 = vld [vmem:[#allocation2 + $0x88] sm:$0xff]
      %v1465 = vld [vmem:[#allocation2 + $0x90] sm:$0xff]
      %1482 = vrot.lane.b32.xlu0 %v1450, 17
      %v1483 = vpop.permute.xlu0 %1482
      %1484 = vrot.lane.b32.xlu0 %v1451, 17
      %v1485 = vpop.permute.xlu0 %1484
      %1486 = vrot.lane.b32.xlu0 %v1452, 17
      %v1487 = vpop.permute.xlu0 %1486
      %1488 = vrot.lane.b32.xlu0 %v1453, 17
      %v1489 = vpop.permute.xlu0 %1488
      %1490 = vrot.lane.b32.xlu0 %v1454, 17
      %v1491 = vpop.permute.xlu0 %1490
      %1492 = vrot.lane.b32.xlu0 %v1455, 17
      %v1493 = vpop.permute.xlu0 %1492
      %1494 = vrot.lane.b32.xlu0 %v1456, 17
      %v1495 = vpop.permute.xlu0 %1494
      %1496 = vrot.lane.b32.xlu0 %v1457, 17
      %v1497 = vpop.permute.xlu0 %1496
      %1498 = vrot.lane.b32.xlu0 %v1458, 17
      %v1499 = vpop.permute.xlu0 %1498
      %1500 = vrot.lane.b32.xlu0 %v1459, 17
      %v1501 = vpop.permute.xlu0 %1500
      %1502 = vrot.lane.b32.xlu0 %v1460, 17
      %v1503 = vpop.permute.xlu0 %1502
      %1504 = vrot.lane.b32.xlu0 %v1461, 17
      %v1505 = vpop.permute.xlu0 %1504
      %1506 = vrot.lane.b32.xlu0 %v1462, 17
      %v1507 = vpop.permute.xlu0 %1506
      %1508 = vrot.lane.b32.xlu0 %v1463, 17
      %v1509 = vpop.permute.xlu0 %1508
      %1510 = vrot.lane.b32.xlu0 %v1464, 17
      %v1511 = vpop.permute.xlu0 %1510
      %1512 = vrot.lane.b32.xlu0 %v1465, 17
      %v1513 = vpop.permute.xlu0 %1512
      %v1514 = vsel %vm797, %v1483, %v1485
      %v1515 = vsel %vm797, %v1485, %v1487
      %v1516 = vsel %vm797, %v1487, %v1489
      %v1517 = vsel %vm797, %v1491, %v1493
      %v1518 = vsel %vm797, %v1493, %v1495
      %v1519 = vsel %vm797, %v1495, %v1497
      %v1520 = vsel %vm797, %v1499, %v1501
      %v1521 = vsel %vm797, %v1501, %v1503
      %v1522 = vsel %vm797, %v1503, %v1505
      %v1523 = vsel %vm797, %v1507, %v1509
      %v1524 = vsel %vm797, %v1509, %v1511
      %v1525 = vsel %vm797, %v1511, %v1513
      %1538 = vst [vmem:[#allocation5 + $0xc0] sm:$0xff] %v1514
      %1539 = vst [vmem:[#allocation5 + $0xc8] sm:$0xff] %v1515
      %1540 = vst [vmem:[#allocation5 + $0xd0] sm:$0xff] %v1516
      %1541 = vst [vmem:[#allocation5 + $0xd8] sm:$0xff] %v1517
      %1542 = vst [vmem:[#allocation5 + $0xe0] sm:$0xff] %v1518
      %1543 = vst [vmem:[#allocation5 + $0xe8] sm:$0xff] %v1519
      %1544 = vst [vmem:[#allocation5 + $0xf0] sm:$0xff] %v1520
      %1545 = vst [vmem:[#allocation5 + $0xf8] sm:$0xff] %v1521
      %1546 = vst [vmem:[#allocation5 + $0x100] sm:$0xff] %v1522
      %1547 = vst [vmem:[#allocation5 + $0x108] sm:$0xff] %v1523
      %1548 = vst [vmem:[#allocation5 + $0x110] sm:$0xff] %v1524
      %1549 = vst [vmem:[#allocation5 + $0x118] sm:$0xff] %v1525
      %v1550 = vld [vmem:[#allocation2] sm:$0xff]
      %v1551 = vld [vmem:[#allocation2 + $0x8] sm:$0xff]
      %v1552 = vld [vmem:[#allocation2 + $0x10] sm:$0xff]
      %v1553 = vld [vmem:[#allocation2 + $0x18] sm:$0xff]
      %v1554 = vld [vmem:[#allocation2 + $0x28] sm:$0xff]
      %v1555 = vld [vmem:[#allocation2 + $0x30] sm:$0xff]
      %v1556 = vld [vmem:[#allocation2 + $0x38] sm:$0xff]
      %v1557 = vld [vmem:[#allocation2 + $0x40] sm:$0xff]
      %v1558 = vld [vmem:[#allocation2 + $0x50] sm:$0xff]
      %v1559 = vld [vmem:[#allocation2 + $0x58] sm:$0xff]
      %v1560 = vld [vmem:[#allocation2 + $0x60] sm:$0xff]
      %v1561 = vld [vmem:[#allocation2 + $0x68] sm:$0xff]
      %v1562 = vld [vmem:[#allocation2 + $0x78] sm:$0xff]
      %v1563 = vld [vmem:[#allocation2 + $0x80] sm:$0xff]
      %v1564 = vld [vmem:[#allocation2 + $0x88] sm:$0xff]
      %v1565 = vld [vmem:[#allocation2 + $0x90] sm:$0xff]
      %1582 = vrot.lane.b32.xlu0 %v1550, 1
      %v1583 = vpop.permute.xlu0 %1582
      %1584 = vrot.lane.b32.xlu0 %v1551, 1
      %v1585 = vpop.permute.xlu0 %1584
      %1586 = vrot.lane.b32.xlu0 %v1552, 1
      %v1587 = vpop.permute.xlu0 %1586
      %1588 = vrot.lane.b32.xlu0 %v1553, 1
      %v1589 = vpop.permute.xlu0 %1588
      %1590 = vrot.lane.b32.xlu0 %v1554, 1
      %v1591 = vpop.permute.xlu0 %1590
      %1592 = vrot.lane.b32.xlu0 %v1555, 1
      %v1593 = vpop.permute.xlu0 %1592
      %1594 = vrot.lane.b32.xlu0 %v1556, 1
      %v1595 = vpop.permute.xlu0 %1594
      %1596 = vrot.lane.b32.xlu0 %v1557, 1
      %v1597 = vpop.permute.xlu0 %1596
      %1598 = vrot.lane.b32.xlu0 %v1558, 1
      %v1599 = vpop.permute.xlu0 %1598
      %1600 = vrot.lane.b32.xlu0 %v1559, 1
      %v1601 = vpop.permute.xlu0 %1600
      %1602 = vrot.lane.b32.xlu0 %v1560, 1
      %v1603 = vpop.permute.xlu0 %1602
      %1604 = vrot.lane.b32.xlu0 %v1561, 1
      %v1605 = vpop.permute.xlu0 %1604
      %1606 = vrot.lane.b32.xlu0 %v1562, 1
      %v1607 = vpop.permute.xlu0 %1606
      %1608 = vrot.lane.b32.xlu0 %v1563, 1
      %v1609 = vpop.permute.xlu0 %1608
      %1610 = vrot.lane.b32.xlu0 %v1564, 1
      %v1611 = vpop.permute.xlu0 %1610
      %1612 = vrot.lane.b32.xlu0 %v1565, 1
      %v1613 = vpop.permute.xlu0 %1612
      %v1614 = vsel %vm821, %v1583, %v1585
      %v1615 = vsel %vm821, %v1585, %v1587
      %v1616 = vsel %vm821, %v1587, %v1589
      %v1617 = vsel %vm821, %v1591, %v1593
      %v1618 = vsel %vm821, %v1593, %v1595
      %v1619 = vsel %vm821, %v1595, %v1597
      %v1620 = vsel %vm821, %v1599, %v1601
      %v1621 = vsel %vm821, %v1601, %v1603
      %v1622 = vsel %vm821, %v1603, %v1605
      %v1623 = vsel %vm821, %v1607, %v1609
      %v1624 = vsel %vm821, %v1609, %v1611
      %v1625 = vsel %vm821, %v1611, %v1613
      %1638 = vst [vmem:[#allocation5 + $0x120] sm:$0xff] %v1614
      %1639 = vst [vmem:[#allocation5 + $0x128] sm:$0xff] %v1615
      %1640 = vst [vmem:[#allocation5 + $0x130] sm:$0xff] %v1616
      %1641 = vst [vmem:[#allocation5 + $0x138] sm:$0xff] %v1617
      %1642 = vst [vmem:[#allocation5 + $0x140] sm:$0xff] %v1618
      %1643 = vst [vmem:[#allocation5 + $0x148] sm:$0xff] %v1619
      %1644 = vst [vmem:[#allocation5 + $0x150] sm:$0xff] %v1620
      %1645 = vst [vmem:[#allocation5 + $0x158] sm:$0xff] %v1621
      %1646 = vst [vmem:[#allocation5 + $0x160] sm:$0xff] %v1622
      %1647 = vst [vmem:[#allocation5 + $0x168] sm:$0xff] %v1623
      %1648 = vst [vmem:[#allocation5 + $0x170] sm:$0xff] %v1624
      %1649 = vst [vmem:[#allocation5 + $0x178] sm:$0xff] %v1625
      %v1650 = vld [vmem:[#allocation2 + $0x8] sm:$0xff]
      %v1651 = vld [vmem:[#allocation2 + $0x10] sm:$0xff]
      %v1652 = vld [vmem:[#allocation2 + $0x18] sm:$0xff]
      %v1653 = vld [vmem:[#allocation2 + $0x30] sm:$0xff]
      %v1654 = vld [vmem:[#allocation2 + $0x38] sm:$0xff]
      %v1655 = vld [vmem:[#allocation2 + $0x40] sm:$0xff]
      %v1656 = vld [vmem:[#allocation2 + $0x58] sm:$0xff]
      %v1657 = vld [vmem:[#allocation2 + $0x60] sm:$0xff]
      %v1658 = vld [vmem:[#allocation2 + $0x68] sm:$0xff]
      %v1659 = vld [vmem:[#allocation2 + $0x80] sm:$0xff]
      %v1660 = vld [vmem:[#allocation2 + $0x88] sm:$0xff]
      %v1661 = vld [vmem:[#allocation2 + $0x90] sm:$0xff]
      %1662 = vst [vmem:[#allocation5 + $0x180] sm:$0xff] %v1650
      %1663 = vst [vmem:[#allocation5 + $0x188] sm:$0xff] %v1651
      %1664 = vst [vmem:[#allocation5 + $0x190] sm:$0xff] %v1652
      %1665 = vst [vmem:[#allocation5 + $0x198] sm:$0xff] %v1653
      %1666 = vst [vmem:[#allocation5 + $0x1a0] sm:$0xff] %v1654
      %1667 = vst [vmem:[#allocation5 + $0x1a8] sm:$0xff] %v1655
      %1668 = vst [vmem:[#allocation5 + $0x1b0] sm:$0xff] %v1656
      %1669 = vst [vmem:[#allocation5 + $0x1b8] sm:$0xff] %v1657
      %1670 = vst [vmem:[#allocation5 + $0x1c0] sm:$0xff] %v1658
      %1671 = vst [vmem:[#allocation5 + $0x1c8] sm:$0xff] %v1659
      %1672 = vst [vmem:[#allocation5 + $0x1d0] sm:$0xff] %v1660
      %1673 = vst [vmem:[#allocation5 + $0x1d8] sm:$0xff] %v1661
      %v1674 = vld [vmem:[#allocation2 + $0x8] sm:$0xff]
      %v1675 = vld [vmem:[#allocation2 + $0x10] sm:$0xff]
      %v1676 = vld [vmem:[#allocation2 + $0x18] sm:$0xff]
      %v1677 = vld [vmem:[#allocation2 + $0x20] sm:$0xff]
      %v1678 = vld [vmem:[#allocation2 + $0x30] sm:$0xff]
      %v1679 = vld [vmem:[#allocation2 + $0x38] sm:$0xff]
      %v1680 = vld [vmem:[#allocation2 + $0x40] sm:$0xff]
      %v1681 = vld [vmem:[#allocation2 + $0x48] sm:$0xff]
      %v1682 = vld [vmem:[#allocation2 + $0x58] sm:$0xff]
      %v1683 = vld [vmem:[#allocation2 + $0x60] sm:$0xff]
      %v1684 = vld [vmem:[#allocation2 + $0x68] sm:$0xff]
      %v1685 = vld [vmem:[#allocation2 + $0x70] sm:$0xff]
      %v1686 = vld [vmem:[#allocation2 + $0x80] sm:$0xff]
      %v1687 = vld [vmem:[#allocation2 + $0x88] sm:$0xff]
      %v1688 = vld [vmem:[#allocation2 + $0x90] sm:$0xff]
      %v1689 = vld [vmem:[#allocation2 + $0x98] sm:$0xff]
      %1706 = vrot.lane.b32.xlu0 %v1674, 127
      %v1707 = vpop.permute.xlu0 %1706
      %1708 = vrot.lane.b32.xlu0 %v1675, 127
      %v1709 = vpop.permute.xlu0 %1708
      %1710 = vrot.lane.b32.xlu0 %v1676, 127
      %v1711 = vpop.permute.xlu0 %1710
      %1712 = vrot.lane.b32.xlu0 %v1677, 127
      %v1713 = vpop.permute.xlu0 %1712
      %1714 = vrot.lane.b32.xlu0 %v1678, 127
      %v1715 = vpop.permute.xlu0 %1714
      %1716 = vrot.lane.b32.xlu0 %v1679, 127
      %v1717 = vpop.permute.xlu0 %1716
      %1718 = vrot.lane.b32.xlu0 %v1680, 127
      %v1719 = vpop.permute.xlu0 %1718
      %1720 = vrot.lane.b32.xlu0 %v1681, 127
      %v1721 = vpop.permute.xlu0 %1720
      %1722 = vrot.lane.b32.xlu0 %v1682, 127
      %v1723 = vpop.permute.xlu0 %1722
      %1724 = vrot.lane.b32.xlu0 %v1683, 127
      %v1725 = vpop.permute.xlu0 %1724
      %1726 = vrot.lane.b32.xlu0 %v1684, 127
      %v1727 = vpop.permute.xlu0 %1726
      %1728 = vrot.lane.b32.xlu0 %v1685, 127
      %v1729 = vpop.permute.xlu0 %1728
      %1730 = vrot.lane.b32.xlu0 %v1686, 127
      %v1731 = vpop.permute.xlu0 %1730
      %1732 = vrot.lane.b32.xlu0 %v1687, 127
      %v1733 = vpop.permute.xlu0 %1732
      %1734 = vrot.lane.b32.xlu0 %v1688, 127
      %v1735 = vpop.permute.xlu0 %1734
      %1736 = vrot.lane.b32.xlu0 %v1689, 127
      %v1737 = vpop.permute.xlu0 %1736
      %v1738 = vsel %vm853, %v1707, %v1709
      %v1739 = vsel %vm853, %v1709, %v1711
      %v1740 = vsel %vm853, %v1711, %v1713
      %v1741 = vsel %vm853, %v1715, %v1717
      %v1742 = vsel %vm853, %v1717, %v1719
      %v1743 = vsel %vm853, %v1719, %v1721
      %v1744 = vsel %vm853, %v1723, %v1725
      %v1745 = vsel %vm853, %v1725, %v1727
      %v1746 = vsel %vm853, %v1727, %v1729
      %v1747 = vsel %vm853, %v1731, %v1733
      %v1748 = vsel %vm853, %v1733, %v1735
      %v1749 = vsel %vm853, %v1735, %v1737
      %1762 = vst [vmem:[#allocation5 + $0x1e0] sm:$0xff] %v1738
      %1763 = vst [vmem:[#allocation5 + $0x1e8] sm:$0xff] %v1739
      %1764 = vst [vmem:[#allocation5 + $0x1f0] sm:$0xff] %v1740
      %1765 = vst [vmem:[#allocation5 + $0x1f8] sm:$0xff] %v1741
      %1766 = vst [vmem:[#allocation5 + $0x200] sm:$0xff] %v1742
      %1767 = vst [vmem:[#allocation5 + $0x208] sm:$0xff] %v1743
      %1768 = vst [vmem:[#allocation5 + $0x210] sm:$0xff] %v1744
      %1769 = vst [vmem:[#allocation5 + $0x218] sm:$0xff] %v1745
      %1770 = vst [vmem:[#allocation5 + $0x220] sm:$0xff] %v1746
      %1771 = vst [vmem:[#allocation5 + $0x228] sm:$0xff] %v1747
      %1772 = vst [vmem:[#allocation5 + $0x230] sm:$0xff] %v1748
      %1773 = vst [vmem:[#allocation5 + $0x238] sm:$0xff] %v1749
      %v1774 = vld [vmem:[#allocation2 + $0x8] sm:$0xff]
      %v1775 = vld [vmem:[#allocation2 + $0x10] sm:$0xff]
      %v1776 = vld [vmem:[#allocation2 + $0x18] sm:$0xff]
      %v1777 = vld [vmem:[#allocation2 + $0x20] sm:$0xff]
      %v1778 = vld [vmem:[#allocation2 + $0x30] sm:$0xff]
      %v1779 = vld [vmem:[#allocation2 + $0x38] sm:$0xff]
      %v1780 = vld [vmem:[#allocation2 + $0x40] sm:$0xff]
      %v1781 = vld [vmem:[#allocation2 + $0x48] sm:$0xff]
      %v1782 = vld [vmem:[#allocation2 + $0x58] sm:$0xff]
      %v1783 = vld [vmem:[#allocation2 + $0x60] sm:$0xff]
      %v1784 = vld [vmem:[#allocation2 + $0x68] sm:$0xff]
      %v1785 = vld [vmem:[#allocation2 + $0x70] sm:$0xff]
      %v1786 = vld [vmem:[#allocation2 + $0x80] sm:$0xff]
      %v1787 = vld [vmem:[#allocation2 + $0x88] sm:$0xff]
      %v1788 = vld [vmem:[#allocation2 + $0x90] sm:$0xff]
      %v1789 = vld [vmem:[#allocation2 + $0x98] sm:$0xff]
      %1806 = vrot.lane.b32.xlu0 %v1774, 111
      %v1807 = vpop.permute.xlu0 %1806
      %1808 = vrot.lane.b32.xlu0 %v1775, 111
      %v1809 = vpop.permute.xlu0 %1808
      %1810 = vrot.lane.b32.xlu0 %v1776, 111
      %v1811 = vpop.permute.xlu0 %1810
      %1812 = vrot.lane.b32.xlu0 %v1777, 111
      %v1813 = vpop.permute.xlu0 %1812
      %1814 = vrot.lane.b32.xlu0 %v1778, 111
      %v1815 = vpop.permute.xlu0 %1814
      %1816 = vrot.lane.b32.xlu0 %v1779, 111
      %v1817 = vpop.permute.xlu0 %1816
      %1818 = vrot.lane.b32.xlu0 %v1780, 111
      %v1819 = vpop.permute.xlu0 %1818
      %1820 = vrot.lane.b32.xlu0 %v1781, 111
      %v1821 = vpop.permute.xlu0 %1820
      %1822 = vrot.lane.b32.xlu0 %v1782, 111
      %v1823 = vpop.permute.xlu0 %1822
      %1824 = vrot.lane.b32.xlu0 %v1783, 111
      %v1825 = vpop.permute.xlu0 %1824
      %1826 = vrot.lane.b32.xlu0 %v1784, 111
      %v1827 = vpop.permute.xlu0 %1826
      %1828 = vrot.lane.b32.xlu0 %v1785, 111
      %v1829 = vpop.permute.xlu0 %1828
      %1830 = vrot.lane.b32.xlu0 %v1786, 111
      %v1831 = vpop.permute.xlu0 %1830
      %1832 = vrot.lane.b32.xlu0 %v1787, 111
      %v1833 = vpop.permute.xlu0 %1832
      %1834 = vrot.lane.b32.xlu0 %v1788, 111
      %v1835 = vpop.permute.xlu0 %1834
      %1836 = vrot.lane.b32.xlu0 %v1789, 111
      %v1837 = vpop.permute.xlu0 %1836
      %v1838 = vsel %vm877, %v1807, %v1809
      %v1839 = vsel %vm877, %v1809, %v1811
      %v1840 = vsel %vm877, %v1811, %v1813
      %v1841 = vsel %vm877, %v1815, %v1817
      %v1842 = vsel %vm877, %v1817, %v1819
      %v1843 = vsel %vm877, %v1819, %v1821
      %v1844 = vsel %vm877, %v1823, %v1825
      %v1845 = vsel %vm877, %v1825, %v1827
      %v1846 = vsel %vm877, %v1827, %v1829
      %v1847 = vsel %vm877, %v1831, %v1833
      %v1848 = vsel %vm877, %v1833, %v1835
      %v1849 = vsel %vm877, %v1835, %v1837
      %1862 = vst [vmem:[#allocation5 + $0x240] sm:$0xff] %v1838
      %1863 = vst [vmem:[#allocation5 + $0x248] sm:$0xff] %v1839
      %1864 = vst [vmem:[#allocation5 + $0x250] sm:$0xff] %v1840
      %1865 = vst [vmem:[#allocation5 + $0x258] sm:$0xff] %v1841
      %1866 = vst [vmem:[#allocation5 + $0x260] sm:$0xff] %v1842
      %1867 = vst [vmem:[#allocation5 + $0x268] sm:$0xff] %v1843
      %1868 = vst [vmem:[#allocation5 + $0x270] sm:$0xff] %v1844
      %1869 = vst [vmem:[#allocation5 + $0x278] sm:$0xff] %v1845
      %1870 = vst [vmem:[#allocation5 + $0x280] sm:$0xff] %v1846
      %1871 = vst [vmem:[#allocation5 + $0x288] sm:$0xff] %v1847
      %1872 = vst [vmem:[#allocation5 + $0x290] sm:$0xff] %v1848
      %1873 = vst [vmem:[#allocation5 + $0x298] sm:$0xff] %v1849
      %v1874 = vld [vmem:[#allocation2 + $0x8] sm:$0xff]
      %v1875 = vld [vmem:[#allocation2 + $0x10] sm:$0xff]
      %v1876 = vld [vmem:[#allocation2 + $0x18] sm:$0xff]
      %v1877 = vld [vmem:[#allocation2 + $0x20] sm:$0xff]
      %v1878 = vld [vmem:[#allocation2 + $0x30] sm:$0xff]
      %v1879 = vld [vmem:[#allocation2 + $0x38] sm:$0xff]
      %v1880 = vld [vmem:[#allocation2 + $0x40] sm:$0xff]
      %v1881 = vld [vmem:[#allocation2 + $0x48] sm:$0xff]
      %v1882 = vld [vmem:[#allocation2 + $0x58] sm:$0xff]
      %v1883 = vld [vmem:[#allocation2 + $0x60] sm:$0xff]
      %v1884 = vld [vmem:[#allocation2 + $0x68] sm:$0xff]
      %v1885 = vld [vmem:[#allocation2 + $0x70] sm:$0xff]
      %v1886 = vld [vmem:[#allocation2 + $0x80] sm:$0xff]
      %v1887 = vld [vmem:[#allocation2 + $0x88] sm:$0xff]
      %v1888 = vld [vmem:[#allocation2 + $0x90] sm:$0xff]
      %v1889 = vld [vmem:[#allocation2 + $0x98] sm:$0xff]
      %1906 = vrot.lane.b32.xlu0 %v1874, 110
      %v1907 = vpop.permute.xlu0 %1906
      %1908 = vrot.lane.b32.xlu0 %v1875, 110
      %v1909 = vpop.permute.xlu0 %1908
      %1910 = vrot.lane.b32.xlu0 %v1876, 110
      %v1911 = vpop.permute.xlu0 %1910
      %1912 = vrot.lane.b32.xlu0 %v1877, 110
      %v1913 = vpop.permute.xlu0 %1912
      %1914 = vrot.lane.b32.xlu0 %v1878, 110
      %v1915 = vpop.permute.xlu0 %1914
      %1916 = vrot.lane.b32.xlu0 %v1879, 110
      %v1917 = vpop.permute.xlu0 %1916
      %1918 = vrot.lane.b32.xlu0 %v1880, 110
      %v1919 = vpop.permute.xlu0 %1918
      %1920 = vrot.lane.b32.xlu0 %v1881, 110
      %v1921 = vpop.permute.xlu0 %1920
      %1922 = vrot.lane.b32.xlu0 %v1882, 110
      %v1923 = vpop.permute.xlu0 %1922
      %1924 = vrot.lane.b32.xlu0 %v1883, 110
      %v1925 = vpop.permute.xlu0 %1924
      %1926 = vrot.lane.b32.xlu0 %v1884, 110
      %v1927 = vpop.permute.xlu0 %1926
      %1928 = vrot.lane.b32.xlu0 %v1885, 110
      %v1929 = vpop.permute.xlu0 %1928
      %1930 = vrot.lane.b32.xlu0 %v1886, 110
      %v1931 = vpop.permute.xlu0 %1930
      %1932 = vrot.lane.b32.xlu0 %v1887, 110
      %v1933 = vpop.permute.xlu0 %1932
      %1934 = vrot.lane.b32.xlu0 %v1888, 110
      %v1935 = vpop.permute.xlu0 %1934
      %1936 = vrot.lane.b32.xlu0 %v1889, 110
      %v1937 = vpop.permute.xlu0 %1936
      %v1938 = vsel %vm901, %v1907, %v1909
      %v1939 = vsel %vm901, %v1909, %v1911
      %v1940 = vsel %vm901, %v1911, %v1913
      %v1941 = vsel %vm901, %v1915, %v1917
      %v1942 = vsel %vm901, %v1917, %v1919
      %v1943 = vsel %vm901, %v1919, %v1921
      %v1944 = vsel %vm901, %v1923, %v1925
      %v1945 = vsel %vm901, %v1925, %v1927
      %v1946 = vsel %vm901, %v1927, %v1929
      %v1947 = vsel %vm901, %v1931, %v1933
      %v1948 = vsel %vm901, %v1933, %v1935
      %v1949 = vsel %vm901, %v1935, %v1937
      %1962 = vst [vmem:[#allocation5 + $0x2a0] sm:$0xff] %v1938
      %1963 = vst [vmem:[#allocation5 + $0x2a8] sm:$0xff] %v1939
      %1964 = vst [vmem:[#allocation5 + $0x2b0] sm:$0xff] %v1940
      %1965 = vst [vmem:[#allocation5 + $0x2b8] sm:$0xff] %v1941
      %1966 = vst [vmem:[#allocation5 + $0x2c0] sm:$0xff] %v1942
      %1967 = vst [vmem:[#allocation5 + $0x2c8] sm:$0xff] %v1943
      %1968 = vst [vmem:[#allocation5 + $0x2d0] sm:$0xff] %v1944
      %1969 = vst [vmem:[#allocation5 + $0x2d8] sm:$0xff] %v1945
      %1970 = vst [vmem:[#allocation5 + $0x2e0] sm:$0xff] %v1946
      %1971 = vst [vmem:[#allocation5 + $0x2e8] sm:$0xff] %v1947
      %1972 = vst [vmem:[#allocation5 + $0x2f0] sm:$0xff] %v1948
      %1973 = vst [vmem:[#allocation5 + $0x2f8] sm:$0xff] %v1949
      %v1974 = vld [vmem:[#allocation2 + $0x8] sm:$0xff]
      %v1975 = vld [vmem:[#allocation2 + $0x10] sm:$0xff]
      %v1976 = vld [vmem:[#allocation2 + $0x18] sm:$0xff]
      %v1977 = vld [vmem:[#allocation2 + $0x20] sm:$0xff]
      %v1978 = vld [vmem:[#allocation2 + $0x30] sm:$0xff]
      %v1979 = vld [vmem:[#allocation2 + $0x38] sm:$0xff]
      %v1980 = vld [vmem:[#allocation2 + $0x40] sm:$0xff]
      %v1981 = vld [vmem:[#allocation2 + $0x48] sm:$0xff]
      %v1982 = vld [vmem:[#allocation2 + $0x58] sm:$0xff]
      %v1983 = vld [vmem:[#allocation2 + $0x60] sm:$0xff]
      %v1984 = vld [vmem:[#allocation2 + $0x68] sm:$0xff]
      %v1985 = vld [vmem:[#allocation2 + $0x70] sm:$0xff]
      %v1986 = vld [vmem:[#allocation2 + $0x80] sm:$0xff]
      %v1987 = vld [vmem:[#allocation2 + $0x88] sm:$0xff]
      %v1988 = vld [vmem:[#allocation2 + $0x90] sm:$0xff]
      %v1989 = vld [vmem:[#allocation2 + $0x98] sm:$0xff]
      %2006 = vrot.lane.b32.xlu0 %v1974, 109
      %v2007 = vpop.permute.xlu0 %2006
      %2008 = vrot.lane.b32.xlu0 %v1975, 109
      %v2009 = vpop.permute.xlu0 %2008
      %2010 = vrot.lane.b32.xlu0 %v1976, 109
      %v2011 = vpop.permute.xlu0 %2010
      %2012 = vrot.lane.b32.xlu0 %v1977, 109
      %v2013 = vpop.permute.xlu0 %2012
      %2014 = vrot.lane.b32.xlu0 %v1978, 109
      %v2015 = vpop.permute.xlu0 %2014
      %2016 = vrot.lane.b32.xlu0 %v1979, 109
      %v2017 = vpop.permute.xlu0 %2016
      %2018 = vrot.lane.b32.xlu0 %v1980, 109
      %v2019 = vpop.permute.xlu0 %2018
      %2020 = vrot.lane.b32.xlu0 %v1981, 109
      %v2021 = vpop.permute.xlu0 %2020
      %2022 = vrot.lane.b32.xlu0 %v1982, 109
      %v2023 = vpop.permute.xlu0 %2022
      %2024 = vrot.lane.b32.xlu0 %v1983, 109
      %v2025 = vpop.permute.xlu0 %2024
      %2026 = vrot.lane.b32.xlu0 %v1984, 109
      %v2027 = vpop.permute.xlu0 %2026
      %2028 = vrot.lane.b32.xlu0 %v1985, 109
      %v2029 = vpop.permute.xlu0 %2028
      %2030 = vrot.lane.b32.xlu0 %v1986, 109
      %v2031 = vpop.permute.xlu0 %2030
      %2032 = vrot.lane.b32.xlu0 %v1987, 109
      %v2033 = vpop.permute.xlu0 %2032
      %2034 = vrot.lane.b32.xlu0 %v1988, 109
      %v2035 = vpop.permute.xlu0 %2034
      %2036 = vrot.lane.b32.xlu0 %v1989, 109
      %v2037 = vpop.permute.xlu0 %2036
      %v2038 = vsel %vm925, %v2007, %v2009
      %v2039 = vsel %vm925, %v2009, %v2011
      %v2040 = vsel %vm925, %v2011, %v2013
      %v2041 = vsel %vm925, %v2015, %v2017
      %v2042 = vsel %vm925, %v2017, %v2019
      %v2043 = vsel %vm925, %v2019, %v2021
      %v2044 = vsel %vm925, %v2023, %v2025
      %v2045 = vsel %vm925, %v2025, %v2027
      %v2046 = vsel %vm925, %v2027, %v2029
      %v2047 = vsel %vm925, %v2031, %v2033
      %v2048 = vsel %vm925, %v2033, %v2035
      %v2049 = vsel %vm925, %v2035, %v2037
      %2062 = vst [vmem:[#allocation5 + $0x300] sm:$0xff] %v2038
      %2063 = vst [vmem:[#allocation5 + $0x308] sm:$0xff] %v2039
      %2064 = vst [vmem:[#allocation5 + $0x310] sm:$0xff] %v2040
      %2065 = vst [vmem:[#allocation5 + $0x318] sm:$0xff] %v2041
      %2066 = vst [vmem:[#allocation5 + $0x320] sm:$0xff] %v2042
      %2067 = vst [vmem:[#allocation5 + $0x328] sm:$0xff] %v2043
      %2068 = vst [vmem:[#allocation5 + $0x330] sm:$0xff] %v2044
      %2069 = vst [vmem:[#allocation5 + $0x338] sm:$0xff] %v2045
      %2070 = vst [vmem:[#allocation5 + $0x340] sm:$0xff] %v2046
      %2071 = vst [vmem:[#allocation5 + $0x348] sm:$0xff] %v2047
      %2072 = vst [vmem:[#allocation5 + $0x350] sm:$0xff] %v2048
      %2073 = vst [vmem:[#allocation5 + $0x358] sm:$0xff] %v2049
      %v2074 = vld [vmem:[%s6] sm:$0xff]
      %v2075 = vld [vmem:[%s6 + $0x8] sm:$0xff]
      %v2076 = vld [vmem:[%s6 + $0x10] sm:$0xff]
      %v2077 = vld [vmem:[%s6 + $0x18] sm:$0xff]
      %v2078 = vld [vmem:[%s6 + $0x20] sm:$0xff]
      %v2079 = vld [vmem:[%s6 + $0x28] sm:$0xff]
      %v2080 = vld [vmem:[%s6 + $0x30] sm:$0xff]
      %v2081 = vld [vmem:[%s6 + $0x38] sm:$0xff]
      %v2082 = vld [vmem:[%s6 + $0x40] sm:$0xff]
      %v2083 = vld [vmem:[%s6 + $0x48] sm:$0xff]
      %v2084 = vld [vmem:[%s6 + $0x50] sm:$0xff]
      %v2085 = vld [vmem:[%s6 + $0x58] sm:$0xff]
      %v2086 = vld [vmem:[#allocation5] sm:$0xff]
      %v2087 = vld [vmem:[#allocation5 + $0x8] sm:$0xff]
      %v2088 = vld [vmem:[#allocation5 + $0x10] sm:$0xff]
      %v2089 = vld [vmem:[#allocation5 + $0x18] sm:$0xff]
      %v2090 = vld [vmem:[#allocation5 + $0x20] sm:$0xff]
      %v2091 = vld [vmem:[#allocation5 + $0x28] sm:$0xff]
      %v2092 = vld [vmem:[#allocation5 + $0x30] sm:$0xff]
      %v2093 = vld [vmem:[#allocation5 + $0x38] sm:$0xff]
      %v2094 = vld [vmem:[#allocation5 + $0x40] sm:$0xff]
      %v2095 = vld [vmem:[#allocation5 + $0x48] sm:$0xff]
      %v2096 = vld [vmem:[#allocation5 + $0x50] sm:$0xff]
      %v2097 = vld [vmem:[#allocation5 + $0x58] sm:$0xff]
      %v2098 = vld [vmem:[#allocation5 + $0x60] sm:$0xff]
      %v2099 = vld [vmem:[#allocation5 + $0x68] sm:$0xff]
      %v2100 = vld [vmem:[#allocation5 + $0x70] sm:$0xff]
      %v2101 = vld [vmem:[#allocation5 + $0x78] sm:$0xff]
      %v2102 = vld [vmem:[#allocation5 + $0x80] sm:$0xff]
      %v2103 = vld [vmem:[#allocation5 + $0x88] sm:$0xff]
      %v2104 = vld [vmem:[#allocation5 + $0x90] sm:$0xff]
      %v2105 = vld [vmem:[#allocation5 + $0x98] sm:$0xff]
      %v2106 = vld [vmem:[#allocation5 + $0xa0] sm:$0xff]
      %v2107 = vld [vmem:[#allocation5 + $0xa8] sm:$0xff]
      %v2108 = vld [vmem:[#allocation5 + $0xb0] sm:$0xff]
      %v2109 = vld [vmem:[#allocation5 + $0xb8] sm:$0xff]
      %v2110 = vld [vmem:[#allocation5 + $0xc0] sm:$0xff]
      %v2111 = vld [vmem:[#allocation5 + $0xc8] sm:$0xff]
      %v2112 = vld [vmem:[#allocation5 + $0xd0] sm:$0xff]
      %v2113 = vld [vmem:[#allocation5 + $0xd8] sm:$0xff]
      %v2114 = vld [vmem:[#allocation5 + $0xe0] sm:$0xff]
      %v2115 = vld [vmem:[#allocation5 + $0xe8] sm:$0xff]
      %v2116 = vld [vmem:[#allocation5 + $0xf0] sm:$0xff]
      %v2117 = vld [vmem:[#allocation5 + $0xf8] sm:$0xff]
      %v2118 = vld [vmem:[#allocation5 + $0x100] sm:$0xff]
      %v2119 = vld [vmem:[#allocation5 + $0x108] sm:$0xff]
      %v2120 = vld [vmem:[#allocation5 + $0x110] sm:$0xff]
      %v2121 = vld [vmem:[#allocation5 + $0x118] sm:$0xff]
      %v2122 = vld [vmem:[#allocation5 + $0x120] sm:$0xff]
      %v2123 = vld [vmem:[#allocation5 + $0x128] sm:$0xff]
      %v2124 = vld [vmem:[#allocation5 + $0x130] sm:$0xff]
      %v2125 = vld [vmem:[#allocation5 + $0x138] sm:$0xff]
      %v2126 = vld [vmem:[#allocation5 + $0x140] sm:$0xff]
      %v2127 = vld [vmem:[#allocation5 + $0x148] sm:$0xff]
      %v2128 = vld [vmem:[#allocation5 + $0x150] sm:$0xff]
      %v2129 = vld [vmem:[#allocation5 + $0x158] sm:$0xff]
      %v2130 = vld [vmem:[#allocation5 + $0x160] sm:$0xff]
      %v2131 = vld [vmem:[#allocation5 + $0x168] sm:$0xff]
      %v2132 = vld [vmem:[#allocation5 + $0x170] sm:$0xff]
      %v2133 = vld [vmem:[#allocation5 + $0x178] sm:$0xff]
      %v2134 = vld [vmem:[#allocation5 + $0x180] sm:$0xff]
      %v2135 = vld [vmem:[#allocation5 + $0x188] sm:$0xff]
      %v2136 = vld [vmem:[#allocation5 + $0x190] sm:$0xff]
      %v2137 = vld [vmem:[#allocation5 + $0x198] sm:$0xff]
      %v2138 = vld [vmem:[#allocation5 + $0x1a0] sm:$0xff]
      %v2139 = vld [vmem:[#allocation5 + $0x1a8] sm:$0xff]
      %v2140 = vld [vmem:[#allocation5 + $0x1b0] sm:$0xff]
      %v2141 = vld [vmem:[#allocation5 + $0x1b8] sm:$0xff]
      %v2142 = vld [vmem:[#allocation5 + $0x1c0] sm:$0xff]
      %v2143 = vld [vmem:[#allocation5 + $0x1c8] sm:$0xff]
      %v2144 = vld [vmem:[#allocation5 + $0x1d0] sm:$0xff]
      %v2145 = vld [vmem:[#allocation5 + $0x1d8] sm:$0xff]
      %v2146 = vld [vmem:[#allocation5 + $0x1e0] sm:$0xff]
      %v2147 = vld [vmem:[#allocation5 + $0x1e8] sm:$0xff]
      %v2148 = vld [vmem:[#allocation5 + $0x1f0] sm:$0xff]
      %v2149 = vld [vmem:[#allocation5 + $0x1f8] sm:$0xff]
      %v2150 = vld [vmem:[#allocation5 + $0x200] sm:$0xff]
      %v2151 = vld [vmem:[#allocation5 + $0x208] sm:$0xff]
      %v2152 = vld [vmem:[#allocation5 + $0x210] sm:$0xff]
      %v2153 = vld [vmem:[#allocation5 + $0x218] sm:$0xff]
      %v2154 = vld [vmem:[#allocation5 + $0x220] sm:$0xff]
      %v2155 = vld [vmem:[#allocation5 + $0x228] sm:$0xff]
      %v2156 = vld [vmem:[#allocation5 + $0x230] sm:$0xff]
      %v2157 = vld [vmem:[#allocation5 + $0x238] sm:$0xff]
      %v2158 = vld [vmem:[#allocation5 + $0x240] sm:$0xff]
      %v2159 = vld [vmem:[#allocation5 + $0x248] sm:$0xff]
      %v2160 = vld [vmem:[#allocation5 + $0x250] sm:$0xff]
      %v2161 = vld [vmem:[#allocation5 + $0x258] sm:$0xff]
      %v2162 = vld [vmem:[#allocation5 + $0x260] sm:$0xff]
      %v2163 = vld [vmem:[#allocation5 + $0x268] sm:$0xff]
      %v2164 = vld [vmem:[#allocation5 + $0x270] sm:$0xff]
      %v2165 = vld [vmem:[#allocation5 + $0x278] sm:$0xff]
      %v2166 = vld [vmem:[#allocation5 + $0x280] sm:$0xff]
      %v2167 = vld [vmem:[#allocation5 + $0x288] sm:$0xff]
      %v2168 = vld [vmem:[#allocation5 + $0x290] sm:$0xff]
      %v2169 = vld [vmem:[#allocation5 + $0x298] sm:$0xff]
      %v2170 = vld [vmem:[#allocation5 + $0x2a0] sm:$0xff]
      %v2171 = vld [vmem:[#allocation5 + $0x2a8] sm:$0xff]
      %v2172 = vld [vmem:[#allocation5 + $0x2b0] sm:$0xff]
      %v2173 = vld [vmem:[#allocation5 + $0x2b8] sm:$0xff]
      %v2174 = vld [vmem:[#allocation5 + $0x2c0] sm:$0xff]
      %v2175 = vld [vmem:[#allocation5 + $0x2c8] sm:$0xff]
      %v2176 = vld [vmem:[#allocation5 + $0x2d0] sm:$0xff]
      %v2177 = vld [vmem:[#allocation5 + $0x2d8] sm:$0xff]
      %v2178 = vld [vmem:[#allocation5 + $0x2e0] sm:$0xff]
      %v2179 = vld [vmem:[#allocation5 + $0x2e8] sm:$0xff]
      %v2180 = vld [vmem:[#allocation5 + $0x2f0] sm:$0xff]
      %v2181 = vld [vmem:[#allocation5 + $0x2f8] sm:$0xff]
      %v2182 = vld [vmem:[#allocation5 + $0x300] sm:$0xff]
      %v2183 = vld [vmem:[#allocation5 + $0x308] sm:$0xff]
      %v2184 = vld [vmem:[#allocation5 + $0x310] sm:$0xff]
      %v2185 = vld [vmem:[#allocation5 + $0x318] sm:$0xff]
      %v2186 = vld [vmem:[#allocation5 + $0x320] sm:$0xff]
      %v2187 = vld [vmem:[#allocation5 + $0x328] sm:$0xff]
      %v2188 = vld [vmem:[#allocation5 + $0x330] sm:$0xff]
      %v2189 = vld [vmem:[#allocation5 + $0x338] sm:$0xff]
      %v2190 = vld [vmem:[#allocation5 + $0x340] sm:$0xff]
      %v2191 = vld [vmem:[#allocation5 + $0x348] sm:$0xff]
      %v2192 = vld [vmem:[#allocation5 + $0x350] sm:$0xff]
      %v2193 = vld [vmem:[#allocation5 + $0x358] sm:$0xff]
      %v2194 = vld [vmem:[%s7] sm:$0xff]
      %v2195 = vld [vmem:[%s7 + $0x8] sm:$0xff]
      %v2196 = vld [vmem:[%s7 + $0x10] sm:$0xff]
      %v2197 = vld [vmem:[%s7 + $0x18] sm:$0xff]
      %2199 = vset.pattern.permute.xlu0 0
      %2200 = vperm.xlu0 %2199, %v2194
      %v2201 = vpop.permute.xlu0 %2200
      %2204 = vset.pattern.permute.xlu0 0
      %2205 = vperm.xlu0 %2204, %v2195
      %v2206 = vpop.permute.xlu0 %2205
      %2209 = vset.pattern.permute.xlu0 0
      %2210 = vperm.xlu0 %2209, %v2196
      %v2211 = vpop.permute.xlu0 %2210
      %2214 = vset.pattern.permute.xlu0 0
      %2215 = vperm.xlu0 %2214, %v2197
      %v2216 = vpop.permute.xlu0 %2215
      %vm2218 = vcmask 261120
      %v2220 = vsel %vm2218, %v2076, 0
      %v2223 = vsel %vm2218, %v2079, 0
      %v2226 = vsel %vm2218, %v2082, 0
      %v2229 = vsel %vm2218, %v2085, 0
      %2231 = vmatprep.subr.mxu0 %v2132
      %2232 = vmatpush1.msra.mxu0 %v2131
      %2233 = vmatprep.subr.mxu0 %v2129
      %2234 = vmatpush1.msra.mxu0 %v2128
      %2235 = vmatprep.subr.mxu0 %v2126
      %2236 = vmatpush1.msra.mxu0 %v2125
      %2237 = vmatprep.subr.mxu0 %v2123
      %2238 = vmatpush1.msra.mxu0 %v2122
      %2239 = vmatprep.subr.mxu0 %v2120
      %2240 = vmatpush1.msra.mxu0 %v2119
      %2241 = vmatprep.subr.mxu0 %v2117
      %2242 = vmatpush1.msra.mxu0 %v2116
      %2243 = vmatprep.subr.mxu0 %v2114
      %2244 = vmatpush1.msra.mxu0 %v2113
      %2245 = vmatprep.subr.mxu0 %v2111
      %2246 = vmatpush1.msra.mxu0 %v2110
      %2247 = vmatprep.subr.mxu0 %v2108
      %2248 = vmatpush1.msra.mxu0 %v2107
      %2249 = vmatprep.subr.mxu0 %v2105
      %2250 = vmatpush1.msra.mxu0 %v2104
      %2251 = vmatprep.subr.mxu0 %v2102
      %2252 = vmatpush1.msra.mxu0 %v2101
      %2253 = vmatprep.subr.mxu0 %v2099
      %2254 = vmatpush1.msra.mxu0 %v2098
      %2255 = vmatprep.subr.mxu0 %v2096
      %2256 = vmatpush1.msra.mxu0 %v2095
      %2257 = vmatprep.subr.mxu0 %v2093
      %2258 = vmatpush1.msra.mxu0 %v2092
      %2259 = vmatprep.subr.mxu0 %v2090
      %2260 = vmatpush1.msra.mxu0 %v2089
      %2261 = vmatprep.subr.mxu0 %v2087
      %2262 = vmatpush1.msra.mxu0 %v2086
      %2263 = vmatprep.subr.mxu0 %v2180
      %2264 = vmatpush2.msra.mxu0 %v2179
      %2265 = vmatprep.subr.mxu0 %v2177
      %2266 = vmatpush2.msra.mxu0 %v2176
      %2267 = vmatprep.subr.mxu0 %v2174
      %2268 = vmatpush2.msra.mxu0 %v2173
      %2269 = vmatprep.subr.mxu0 %v2171
      %2270 = vmatpush2.msra.mxu0 %v2170
      %2271 = vmatprep.subr.mxu0 %v2168
      %2272 = vmatpush2.msra.mxu0 %v2167
      %2273 = vmatprep.subr.mxu0 %v2165
      %2274 = vmatpush2.msra.mxu0 %v2164
      %2275 = vmatprep.subr.mxu0 %v2162
      %2276 = vmatpush2.msra.mxu0 %v2161
      %2277 = vmatprep.subr.mxu0 %v2159
      %2278 = vmatpush2.msra.mxu0 %v2158
      %2279 = vmatprep.subr.mxu0 %v2156
      %2280 = vmatpush2.msra.mxu0 %v2155
      %2281 = vmatprep.subr.mxu0 %v2153
      %2282 = vmatpush2.msra.mxu0 %v2152
      %2283 = vmatprep.subr.mxu0 %v2150
      %2284 = vmatpush2.msra.mxu0 %v2149
      %2285 = vmatprep.subr.mxu0 %v2147
      %2286 = vmatpush2.msra.mxu0 %v2146
      %2287 = vmatprep.subr.mxu0 %v2144
      %2288 = vmatpush2.msra.mxu0 %v2143
      %2289 = vmatprep.subr.mxu0 %v2141
      %2290 = vmatpush2.msra.mxu0 %v2140
      %2291 = vmatprep.subr.mxu0 %v2138
      %2292 = vmatpush2.msra.mxu0 %v2137
      %2293 = vmatprep.subr.mxu0 %v2135
      %2294 = vmatpush2.msra.mxu0 %v2134
      %2295 = vmatprep.mubr.f32.mxu0 %v2075
      %2296 = vmatmul.mubr.f32.gmra.mxu0 %v2074
      %v2297 = vpop.f32.mrf.mxu0
      %v2298 = vadd.f32 %v2201, %v2297
      %v2299 = vpop.f32.mrf.mxu0
      %v2300 = vadd.f32 %v2201, %v2299
      %2301 = vmatprep.mubr.f32.mxu0 %v2078
      %2302 = vmatmul.mubr.f32.gmra.mxu0 %v2077
      %v2303 = vpop.f32.mrf.mxu0
      %v2304 = vadd.f32 %v2206, %v2303
      %v2305 = vpop.f32.mrf.mxu0
      %v2306 = vadd.f32 %v2206, %v2305
      %2307 = vmatprep.mubr.f32.mxu0 %v2081
      %2308 = vmatmul.mubr.f32.gmra.mxu0 %v2080
      %v2309 = vpop.f32.mrf.mxu0
      %v2310 = vadd.f32 %v2211, %v2309
      %v2311 = vpop.f32.mrf.mxu0
      %v2312 = vadd.f32 %v2211, %v2311
      %2313 = vmatprep.mubr.f32.mxu0 %v2084
      %2314 = vmatmul.mubr.f32.gmra.mxu0 %v2083
      %v2315 = vpop.f32.mrf.mxu0
      %v2316 = vadd.f32 %v2216, %v2315
      %v2317 = vpop.f32.mrf.mxu0
      %v2318 = vadd.f32 %v2216, %v2317
      %2319 = vdwg.mxu0
      %2320 = vmatprep.subr.mxu0 0.0
      %2321 = vmatpush1.msra.mxu0 0.0
      %2322 = vmatprep.subr.mxu0 0.0
      %2323 = vmatpush1.msra.mxu0 0.0
      %2324 = vmatprep.subr.mxu0 0.0
      %2325 = vmatpush1.msra.mxu0 0.0
      %2326 = vmatprep.subr.mxu0 0.0
      %2327 = vmatpush1.msra.mxu0 0.0
      %2328 = vmatprep.subr.mxu0 0.0
      %2329 = vmatpush1.msra.mxu0 0.0
      %2330 = vmatprep.subr.mxu0 0.0
      %2331 = vmatpush1.msra.mxu0 0.0
      %2332 = vmatprep.subr.mxu0 0.0
      %2333 = vmatpush1.msra.mxu0 0.0
      %2334 = vmatprep.subr.mxu0 0.0
      %2335 = vmatpush1.msra.mxu0 0.0
      %2336 = vmatprep.subr.mxu0 0.0
      %2337 = vmatpush1.msra.mxu0 0.0
      %2338 = vmatprep.subr.mxu0 0.0
      %2339 = vmatpush1.msra.mxu0 0.0
      %2340 = vmatprep.subr.mxu0 0.0
      %2341 = vmatpush1.msra.mxu0 0.0
      %2342 = vmatprep.subr.mxu0 0.0
      %2343 = vmatpush1.msra.mxu0 0.0
      %2344 = vmatprep.subr.mxu0 %v2192
      %2345 = vmatpush1.msra.mxu0 %v2191
      %2346 = vmatprep.subr.mxu0 %v2189
      %2347 = vmatpush1.msra.mxu0 %v2188
      %2348 = vmatprep.subr.mxu0 %v2186
      %2349 = vmatpush1.msra.mxu0 %v2185
      %2350 = vmatprep.subr.mxu0 %v2183
      %2351 = vmatpush1.msra.mxu0 %v2182
      %2352 = vmatprep.subr.mxu0 0.0
      %2353 = vmatpush2.msra.mxu0 0.0
      %2354 = vmatprep.subr.mxu0 0.0
      %2355 = vmatpush2.msra.mxu0 0.0
      %2356 = vmatprep.subr.mxu0 0.0
      %2357 = vmatpush2.msra.mxu0 0.0
      %2358 = vmatprep.subr.mxu0 0.0
      %2359 = vmatpush2.msra.mxu0 0.0
      %2360 = vmatprep.subr.mxu0 0.0
      %2361 = vmatpush2.msra.mxu0 0.0
      %2362 = vmatprep.subr.mxu0 0.0
      %2363 = vmatpush2.msra.mxu0 0.0
      %2364 = vmatprep.subr.mxu0 0.0
      %2365 = vmatpush2.msra.mxu0 0.0
      %2366 = vmatprep.subr.mxu0 0.0
      %2367 = vmatpush2.msra.mxu0 0.0
      %2368 = vmatprep.subr.mxu0 0.0
      %2369 = vmatpush2.msra.mxu0 0.0
      %2370 = vmatprep.subr.mxu0 0.0
      %2371 = vmatpush2.msra.mxu0 0.0
      %2372 = vmatprep.subr.mxu0 0.0
      %2373 = vmatpush2.msra.mxu0 0.0
      %2374 = vmatprep.subr.mxu0 0.0
      %2375 = vmatpush2.msra.mxu0 0.0
      %2376 = vmatprep.subr.mxu0 0.0
      %2377 = vmatpush2.msra.mxu0 0.0
      %2378 = vmatprep.subr.mxu0 0.0
      %2379 = vmatpush2.msra.mxu0 0.0
      %2380 = vmatprep.subr.mxu0 0.0
      %2381 = vmatpush2.msra.mxu0 0.0
      %2382 = vmatprep.subr.mxu0 0.0
      %2383 = vmatpush2.msra.mxu0 0.0
      %2384 = vmatprep.mubr.f32.mxu0 0.0
      %2385 = vmatmul.mubr.f32.gmra.mxu0 %v2220
      %v2386 = vpop.f32.mrf.mxu0
      %v2387 = vadd.f32 %v2298, %v2386
      %v2388 = vpop.f32.mrf.mxu0
      %v2389 = vadd.f32 %v2300, %v2388
      %2390 = vmatprep.mubr.f32.mxu0 0.0
      %2391 = vmatmul.mubr.f32.gmra.mxu0 %v2223
      %v2392 = vpop.f32.mrf.mxu0
      %v2393 = vadd.f32 %v2304, %v2392
      %v2394 = vpop.f32.mrf.mxu0
      %v2395 = vadd.f32 %v2306, %v2394
      %2396 = vmatprep.mubr.f32.mxu0 0.0
      %2397 = vmatmul.mubr.f32.gmra.mxu0 %v2226
      %v2398 = vpop.f32.mrf.mxu0
      %v2399 = vadd.f32 %v2310, %v2398
      %v2400 = vpop.f32.mrf.mxu0
      %v2401 = vadd.f32 %v2312, %v2400
      %2402 = vmatprep.mubr.f32.mxu0 0.0
      %2403 = vmatmul.mubr.f32.gmra.mxu0 %v2229
      %v2404 = vpop.f32.mrf.mxu0
      %v2405 = vadd.f32 %v2316, %v2404
      %v2406 = vpop.f32.mrf.mxu0
      %v2407 = vadd.f32 %v2318, %v2406
      %2408 = vdwg.mxu0
      %2409 = vmatprep.subr.mxu0 0.0
      %2410 = vmatpush1.msra.mxu0 %v2133
      %2411 = vmatprep.subr.mxu0 0.0
      %2412 = vmatpush1.msra.mxu0 %v2130
      %2413 = vmatprep.subr.mxu0 0.0
      %2414 = vmatpush1.msra.mxu0 %v2127
      %2415 = vmatprep.subr.mxu0 0.0
      %2416 = vmatpush1.msra.mxu0 %v2124
      %2417 = vmatprep.subr.mxu0 0.0
      %2418 = vmatpush1.msra.mxu0 %v2121
      %2419 = vmatprep.subr.mxu0 0.0
      %2420 = vmatpush1.msra.mxu0 %v2118
      %2421 = vmatprep.subr.mxu0 0.0
      %2422 = vmatpush1.msra.mxu0 %v2115
      %2423 = vmatprep.subr.mxu0 0.0
      %2424 = vmatpush1.msra.mxu0 %v2112
      %2425 = vmatprep.subr.mxu0 0.0
      %2426 = vmatpush1.msra.mxu0 %v2109
      %2427 = vmatprep.subr.mxu0 0.0
      %2428 = vmatpush1.msra.mxu0 %v2106
      %2429 = vmatprep.subr.mxu0 0.0
      %2430 = vmatpush1.msra.mxu0 %v2103
      %2431 = vmatprep.subr.mxu0 0.0
      %2432 = vmatpush1.msra.mxu0 %v2100
      %2433 = vmatprep.subr.mxu0 0.0
      %2434 = vmatpush1.msra.mxu0 %v2097
      %2435 = vmatprep.subr.mxu0 0.0
      %2436 = vmatpush1.msra.mxu0 %v2094
      %2437 = vmatprep.subr.mxu0 0.0
      %2438 = vmatpush1.msra.mxu0 %v2091
      %2439 = vmatprep.subr.mxu0 0.0
      %2440 = vmatpush1.msra.mxu0 %v2088
      %2441 = vmatprep.subr.mxu0 0.0
      %2442 = vmatpush2.msra.mxu0 %v2181
      %2443 = vmatprep.subr.mxu0 0.0
      %2444 = vmatpush2.msra.mxu0 %v2178
      %2445 = vmatprep.subr.mxu0 0.0
      %2446 = vmatpush2.msra.mxu0 %v2175
      %2447 = vmatprep.subr.mxu0 0.0
      %2448 = vmatpush2.msra.mxu0 %v2172
      %2449 = vmatprep.subr.mxu0 0.0
      %2450 = vmatpush2.msra.mxu0 %v2169
      %2451 = vmatprep.subr.mxu0 0.0
      %2452 = vmatpush2.msra.mxu0 %v2166
      %2453 = vmatprep.subr.mxu0 0.0
      %2454 = vmatpush2.msra.mxu0 %v2163
      %2455 = vmatprep.subr.mxu0 0.0
      %2456 = vmatpush2.msra.mxu0 %v2160
      %2457 = vmatprep.subr.mxu0 0.0
      %2458 = vmatpush2.msra.mxu0 %v2157
      %2459 = vmatprep.subr.mxu0 0.0
      %2460 = vmatpush2.msra.mxu0 %v2154
      %2461 = vmatprep.subr.mxu0 0.0
      %2462 = vmatpush2.msra.mxu0 %v2151
      %2463 = vmatprep.subr.mxu0 0.0
      %2464 = vmatpush2.msra.mxu0 %v2148
      %2465 = vmatprep.subr.mxu0 0.0
      %2466 = vmatpush2.msra.mxu0 %v2145
      %2467 = vmatprep.subr.mxu0 0.0
      %2468 = vmatpush2.msra.mxu0 %v2142
      %2469 = vmatprep.subr.mxu0 0.0
      %2470 = vmatpush2.msra.mxu0 %v2139
      %2471 = vmatprep.subr.mxu0 0.0
      %2472 = vmatpush2.msra.mxu0 %v2136
      %2473 = vmatprep.mubr.f32.mxu0 %v2075
      %2474 = vmatmul.mubr.f32.gmra.mxu0 %v2074
      %v2475 = vpop.f32.mrf.mxu0
      %v2476 = vadd.f32 %v2201, %v2475
      %v2477 = vpop.f32.mrf.mxu0
      %2478 = vmatprep.mubr.f32.mxu0 %v2078
      %2479 = vmatmul.mubr.f32.gmra.mxu0 %v2077
      %v2480 = vpop.f32.mrf.mxu0
      %v2481 = vadd.f32 %v2206, %v2480
      %v2482 = vpop.f32.mrf.mxu0
      %2483 = vmatprep.mubr.f32.mxu0 %v2081
      %2484 = vmatmul.mubr.f32.gmra.mxu0 %v2080
      %v2485 = vpop.f32.mrf.mxu0
      %v2486 = vadd.f32 %v2211, %v2485
      %v2487 = vpop.f32.mrf.mxu0
      %2488 = vmatprep.mubr.f32.mxu0 %v2084
      %2489 = vmatmul.mubr.f32.gmra.mxu0 %v2083
      %v2490 = vpop.f32.mrf.mxu0
      %v2491 = vadd.f32 %v2216, %v2490
      %v2492 = vpop.f32.mrf.mxu0
      %2493 = vdwg.mxu0
      %2494 = vmatprep.subr.mxu0 0.0
      %2495 = vmatpush1.msra.mxu0 0.0
      %2496 = vmatprep.subr.mxu0 0.0
      %2497 = vmatpush1.msra.mxu0 0.0
      %2498 = vmatprep.subr.mxu0 0.0
      %2499 = vmatpush1.msra.mxu0 0.0
      %2500 = vmatprep.subr.mxu0 0.0
      %2501 = vmatpush1.msra.mxu0 0.0
      %2502 = vmatprep.subr.mxu0 0.0
      %2503 = vmatpush1.msra.mxu0 0.0
      %2504 = vmatprep.subr.mxu0 0.0
      %2505 = vmatpush1.msra.mxu0 0.0
      %2506 = vmatprep.subr.mxu0 0.0
      %2507 = vmatpush1.msra.mxu0 0.0
      %2508 = vmatprep.subr.mxu0 0.0
      %2509 = vmatpush1.msra.mxu0 0.0
      %2510 = vmatprep.subr.mxu0 0.0
      %2511 = vmatpush1.msra.mxu0 0.0
      %2512 = vmatprep.subr.mxu0 0.0
      %2513 = vmatpush1.msra.mxu0 0.0
      %2514 = vmatprep.subr.mxu0 0.0
      %2515 = vmatpush1.msra.mxu0 0.0
      %2516 = vmatprep.subr.mxu0 0.0
      %2517 = vmatpush1.msra.mxu0 0.0
      %2518 = vmatprep.subr.mxu0 0.0
      %2519 = vmatpush1.msra.mxu0 %v2193
      %2520 = vmatprep.subr.mxu0 0.0
      %2521 = vmatpush1.msra.mxu0 %v2190
      %2522 = vmatprep.subr.mxu0 0.0
      %2523 = vmatpush1.msra.mxu0 %v2187
      %2524 = vmatprep.subr.mxu0 0.0
      %2525 = vmatpush1.msra.mxu0 %v2184
      %2526 = vmatprep.subr.mxu0 0.0
      %2527 = vmatpush2.msra.mxu0 0.0
      %2528 = vmatprep.subr.mxu0 0.0
      %2529 = vmatpush2.msra.mxu0 0.0
      %2530 = vmatprep.subr.mxu0 0.0
      %2531 = vmatpush2.msra.mxu0 0.0
      %2532 = vmatprep.subr.mxu0 0.0
      %2533 = vmatpush2.msra.mxu0 0.0
      %2534 = vmatprep.subr.mxu0 0.0
      %2535 = vmatpush2.msra.mxu0 0.0
      %2536 = vmatprep.subr.mxu0 0.0
      %2537 = vmatpush2.msra.mxu0 0.0
      %2538 = vmatprep.subr.mxu0 0.0
      %2539 = vmatpush2.msra.mxu0 0.0
      %2540 = vmatprep.subr.mxu0 0.0
      %2541 = vmatpush2.msra.mxu0 0.0
      %2542 = vmatprep.subr.mxu0 0.0
      %2543 = vmatpush2.msra.mxu0 0.0
      %2544 = vmatprep.subr.mxu0 0.0
      %2545 = vmatpush2.msra.mxu0 0.0
      %2546 = vmatprep.subr.mxu0 0.0
      %2547 = vmatpush2.msra.mxu0 0.0
      %2548 = vmatprep.subr.mxu0 0.0
      %2549 = vmatpush2.msra.mxu0 0.0
      %2550 = vmatprep.subr.mxu0 0.0
      %2551 = vmatpush2.msra.mxu0 0.0
      %2552 = vmatprep.subr.mxu0 0.0
      %2553 = vmatpush2.msra.mxu0 0.0
      %2554 = vmatprep.subr.mxu0 0.0
      %2555 = vmatpush2.msra.mxu0 0.0
      %2556 = vmatprep.subr.mxu0 0.0
      %2557 = vmatpush2.msra.mxu0 0.0
      %2558 = vmatprep.mubr.f32.mxu0 0.0
      %2559 = vmatmul.mubr.f32.gmra.mxu0 %v2220
      %v2560 = vpop.f32.mrf.mxu0
      %v2561 = vadd.f32 %v2476, %v2560
      %v2562 = vpop.f32.mrf.mxu0
      %2563 = vmatprep.mubr.f32.mxu0 0.0
      %2564 = vmatmul.mubr.f32.gmra.mxu0 %v2223
      %v2565 = vpop.f32.mrf.mxu0
      %v2566 = vadd.f32 %v2481, %v2565
      %v2567 = vpop.f32.mrf.mxu0
      %2568 = vmatprep.mubr.f32.mxu0 0.0
      %2569 = vmatmul.mubr.f32.gmra.mxu0 %v2226
      %v2570 = vpop.f32.mrf.mxu0
      %v2571 = vadd.f32 %v2486, %v2570
      %v2572 = vpop.f32.mrf.mxu0
      %2573 = vmatprep.mubr.f32.mxu0 0.0
      %2574 = vmatmul.mubr.f32.gmra.mxu0 %v2229
      %v2575 = vpop.f32.mrf.mxu0
      %v2576 = vadd.f32 %v2491, %v2575
      %v2577 = vpop.f32.mrf.mxu0
      %2578 = vdwg.mxu0
      %vm2579 = vcmp.ge.f32.partialorder %v2387, 0.0
      %vm2580 = vcmp.ge.f32.partialorder %v2389, 0.0
      %vm2581 = vcmp.ge.f32.partialorder %v2561, 0.0
      %vm2582 = vcmp.ge.f32.partialorder %v2393, 0.0
      %vm2583 = vcmp.ge.f32.partialorder %v2395, 0.0
      %vm2584 = vcmp.ge.f32.partialorder %v2566, 0.0
      %vm2585 = vcmp.ge.f32.partialorder %v2399, 0.0
      %vm2586 = vcmp.ge.f32.partialorder %v2401, 0.0
      %vm2587 = vcmp.ge.f32.partialorder %v2571, 0.0
      %vm2588 = vcmp.ge.f32.partialorder %v2405, 0.0
      %vm2589 = vcmp.ge.f32.partialorder %v2407, 0.0
      %vm2590 = vcmp.ge.f32.partialorder %v2576, 0.0
      %v2591 = vmul.f32 %v2387, 0.2
      %v2592 = vmul.f32 %v2389, 0.2
      %v2593 = vmul.f32 %v2561, 0.2
      %v2594 = vmul.f32 %v2393, 0.2
      %v2595 = vmul.f32 %v2395, 0.2
      %v2596 = vmul.f32 %v2566, 0.2
      %v2597 = vmul.f32 %v2399, 0.2
      %v2598 = vmul.f32 %v2401, 0.2
      %v2599 = vmul.f32 %v2571, 0.2
      %v2600 = vmul.f32 %v2405, 0.2
      %v2601 = vmul.f32 %v2407, 0.2
      %v2602 = vmul.f32 %v2576, 0.2
      %v2603 = vsel %vm2579, %v2387, %v2591
      %v2604 = vsel %vm2580, %v2389, %v2592
      %v2605 = vsel %vm2581, %v2561, %v2593
      %v2606 = vsel %vm2582, %v2393, %v2594
      %v2607 = vsel %vm2583, %v2395, %v2595
      %v2608 = vsel %vm2584, %v2566, %v2596
      %v2609 = vsel %vm2585, %v2399, %v2597
      %v2610 = vsel %vm2586, %v2401, %v2598
      %v2611 = vsel %vm2587, %v2571, %v2599
      %v2612 = vsel %vm2588, %v2405, %v2600
      %v2613 = vsel %vm2589, %v2407, %v2601
      %v2614 = vsel %vm2590, %v2576, %v2602
      %v2630 = vrot.slane %v617, 4
      %v2631 = vrot.slane %v623, 4
      %v2632 = vsel %vm543, %v2630, %v2631
      %v2633 = vrot.slane %v619, 4
      %v2634 = vrot.slane %v625, 4
      %v2635 = vsel %vm543, %v2633, %v2634
      %v2636 = vrot.slane %v712, 4
      %v2637 = vrot.slane %v717, 4
      %v2638 = vsel %vm543, %v2636, %v2637
      %v2639 = vrot.slane %v629, 4
      %v2640 = vsel %vm543, %v2631, %v2639
      %v2641 = vrot.slane %v631, 4
      %v2642 = vsel %vm543, %v2634, %v2641
      %v2643 = vrot.slane %v722, 4
      %v2644 = vsel %vm543, %v2637, %v2643
      %v2645 = vrot.slane %v635, 4
      %v2646 = vsel %vm543, %v2639, %v2645
      %v2647 = vrot.slane %v637, 4
      %v2648 = vsel %vm543, %v2641, %v2647
      %v2649 = vrot.slane %v727, 4
      %v2650 = vsel %vm543, %v2643, %v2649
      %v2651 = vrot.slane %v641, 4
      %v2652 = vsel %vm543, %v2645, %v2651
      %v2653 = vrot.slane %v643, 4
      %v2654 = vsel %vm543, %v2647, %v2653
      %v2655 = vrot.slane %v732, 4
      %v2656 = vsel %vm543, %v2649, %v2655
      %v2669 = vadd.f32 %v2603, %v2632
      %v2670 = vadd.f32 %v2604, %v2635
      %v2671 = vadd.f32 %v2605, %v2638
      %v2672 = vadd.f32 %v2606, %v2640
      %v2673 = vadd.f32 %v2607, %v2642
      %v2674 = vadd.f32 %v2608, %v2644
      %v2675 = vadd.f32 %v2609, %v2646
      %v2676 = vadd.f32 %v2610, %v2648
      %v2677 = vadd.f32 %v2611, %v2650
      %v2678 = vadd.f32 %v2612, %v2652
      %v2679 = vadd.f32 %v2613, %v2654
      %v2680 = vadd.f32 %v2614, %v2656
      %v2681 = vmul.f32 %v2669, %v1214
      %v2682 = vmul.f32 %v2670, %v1218
      %v2683 = vmul.f32 %v2671, %v1222
      %v2684 = vmul.f32 %v2672, %v1214
      %v2685 = vmul.f32 %v2673, %v1218
      %v2686 = vmul.f32 %v2674, %v1222
      %v2687 = vmul.f32 %v2675, %v1214
      %v2688 = vmul.f32 %v2676, %v1218
      %v2689 = vmul.f32 %v2677, %v1222
      %v2690 = vmul.f32 %v2678, %v1214
      %v2691 = vmul.f32 %v2679, %v1218
      %v2692 = vmul.f32 %v2680, %v1222
      %2693 = vst [vmem:[#allocation3 + $0x8] sm:$0xff] %v2681
      %2694 = vst [vmem:[#allocation3 + $0x10] sm:$0xff] %v2682
      %2695 = vst [vmem:[#allocation3 + $0x18] sm:$0xff] %v2683
      %2696 = vst [vmem:[#allocation3 + $0x30] sm:$0xff] %v2684
      %2697 = vst [vmem:[#allocation3 + $0x38] sm:$0xff] %v2685
      %2698 = vst [vmem:[#allocation3 + $0x40] sm:$0xff] %v2686
      %2699 = vst [vmem:[#allocation3 + $0x58] sm:$0xff] %v2687
      %2700 = vst [vmem:[#allocation3 + $0x60] sm:$0xff] %v2688
      %2701 = vst [vmem:[#allocation3 + $0x68] sm:$0xff] %v2689
      %2702 = vst [vmem:[#allocation3 + $0x80] sm:$0xff] %v2690
      %2703 = vst [vmem:[#allocation3 + $0x88] sm:$0xff] %v2691
      %2704 = vst [vmem:[#allocation3 + $0x90] sm:$0xff] %v2692
      %v2705 = vld [vmem:[%s12] sm:$0xf]
      %v2706 = vld [vmem:[%s13] sm:$0xf]
      %2708 = vset.pattern.permute.xlu0 0
      %2709 = vperm.xlu0 %2708, %v2706
      %v2710 = vpop.permute.xlu0 %2709
      %v2713 = vsel %vm2218, %v2705, 0
      %2715 = vmatprep.subr.mxu0 0.0
      %2716 = vmatpush1.msra.mxu0 0.0
      %2717 = vmatprep.subr.mxu0 0.0
      %2718 = vmatpush1.msra.mxu0 0.0
      %2719 = vmatprep.subr.mxu0 0.0
      %2720 = vmatpush1.msra.mxu0 0.0
      %2721 = vmatprep.subr.mxu0 0.0
      %2722 = vmatpush1.msra.mxu0 0.0
      %2723 = vmatprep.subr.mxu0 0.0
      %2724 = vmatpush1.msra.mxu0 0.0
      %2725 = vmatprep.subr.mxu0 0.0
      %2726 = vmatpush1.msra.mxu0 0.0
      %2727 = vmatprep.subr.mxu0 0.0
      %2728 = vmatpush1.msra.mxu0 0.0
      %2729 = vmatprep.subr.mxu0 0.0
      %2730 = vmatpush1.msra.mxu0 0.0
      %2731 = vmatprep.subr.mxu0 0.0
      %2732 = vmatpush1.msra.mxu0 0.0
      %2733 = vmatprep.subr.mxu0 0.0
      %2734 = vmatpush1.msra.mxu0 0.0
      %2735 = vmatprep.subr.mxu0 0.0
      %2736 = vmatpush1.msra.mxu0 0.0
      %2737 = vmatprep.subr.mxu0 0.0
      %2738 = vmatpush1.msra.mxu0 0.0
      %2739 = vmatprep.subr.mxu0 %v2691
      %2740 = vmatpush1.msra.mxu0 %v2690
      %2741 = vmatprep.subr.mxu0 %v2688
      %2742 = vmatpush1.msra.mxu0 %v2687
      %2743 = vmatprep.subr.mxu0 %v2685
      %2744 = vmatpush1.msra.mxu0 %v2684
      %2745 = vmatprep.subr.mxu0 %v2682
      %2746 = vmatpush1.msra.mxu0 %v2681
      %2747 = vmatprep.subr.mxu0 0.0
      %2748 = vmatpush2.msra.mxu0 0.0
      %2749 = vmatprep.subr.mxu0 0.0
      %2750 = vmatpush2.msra.mxu0 0.0
      %2751 = vmatprep.subr.mxu0 0.0
      %2752 = vmatpush2.msra.mxu0 0.0
      %2753 = vmatprep.subr.mxu0 0.0
      %2754 = vmatpush2.msra.mxu0 0.0
      %2755 = vmatprep.subr.mxu0 0.0
      %2756 = vmatpush2.msra.mxu0 0.0
      %2757 = vmatprep.subr.mxu0 0.0
      %2758 = vmatpush2.msra.mxu0 0.0
      %2759 = vmatprep.subr.mxu0 0.0
      %2760 = vmatpush2.msra.mxu0 0.0
      %2761 = vmatprep.subr.mxu0 0.0
      %2762 = vmatpush2.msra.mxu0 0.0
      %2763 = vmatprep.subr.mxu0 0.0
      %2764 = vmatpush2.msra.mxu0 0.0
      %2765 = vmatprep.subr.mxu0 0.0
      %2766 = vmatpush2.msra.mxu0 0.0
      %2767 = vmatprep.subr.mxu0 0.0
      %2768 = vmatpush2.msra.mxu0 0.0
      %2769 = vmatprep.subr.mxu0 0.0
      %2770 = vmatpush2.msra.mxu0 0.0
      %2771 = vmatprep.subr.mxu0 0.0
      %2772 = vmatpush2.msra.mxu0 0.0
      %2773 = vmatprep.subr.mxu0 0.0
      %2774 = vmatpush2.msra.mxu0 0.0
      %2775 = vmatprep.subr.mxu0 0.0
      %2776 = vmatpush2.msra.mxu0 0.0
      %2777 = vmatprep.subr.mxu0 0.0
      %2778 = vmatpush2.msra.mxu0 0.0
      %2779 = vmatprep.mubr.f32.mxu0 0.0
      %2780 = vmatmul.mubr.f32.gmra.mxu0 %v2713
      %v2781 = vpop.f32.mrf.mxu0
      %v2782 = vadd.f32 %v2710, %v2781
      %v2783 = vpop.f32.mrf.mxu0
      %v2784 = vadd.f32 %v2710, %v2783
      %2785 = vdwg.mxu0
      %2786 = vmatprep.subr.mxu0 0.0
      %2787 = vmatpush1.msra.mxu0 0.0
      %2788 = vmatprep.subr.mxu0 0.0
      %2789 = vmatpush1.msra.mxu0 0.0
      %2790 = vmatprep.subr.mxu0 0.0
      %2791 = vmatpush1.msra.mxu0 0.0
      %2792 = vmatprep.subr.mxu0 0.0
      %2793 = vmatpush1.msra.mxu0 0.0
      %2794 = vmatprep.subr.mxu0 0.0
      %2795 = vmatpush1.msra.mxu0 0.0
      %2796 = vmatprep.subr.mxu0 0.0
      %2797 = vmatpush1.msra.mxu0 0.0
      %2798 = vmatprep.subr.mxu0 0.0
      %2799 = vmatpush1.msra.mxu0 0.0
      %2800 = vmatprep.subr.mxu0 0.0
      %2801 = vmatpush1.msra.mxu0 0.0
      %2802 = vmatprep.subr.mxu0 0.0
      %2803 = vmatpush1.msra.mxu0 0.0
      %2804 = vmatprep.subr.mxu0 0.0
      %2805 = vmatpush1.msra.mxu0 0.0
      %2806 = vmatprep.subr.mxu0 0.0
      %2807 = vmatpush1.msra.mxu0 0.0
      %2808 = vmatprep.subr.mxu0 0.0
      %2809 = vmatpush1.msra.mxu0 0.0
      %2810 = vmatprep.subr.mxu0 0.0
      %2811 = vmatpush1.msra.mxu0 %v2692
      %2812 = vmatprep.subr.mxu0 0.0
      %2813 = vmatpush1.msra.mxu0 %v2689
      %2814 = vmatprep.subr.mxu0 0.0
      %2815 = vmatpush1.msra.mxu0 %v2686
      %2816 = vmatprep.subr.mxu0 0.0
      %2817 = vmatpush1.msra.mxu0 %v2683
      %2818 = vmatprep.subr.mxu0 0.0
      %2819 = vmatpush2.msra.mxu0 0.0
      %2820 = vmatprep.subr.mxu0 0.0
      %2821 = vmatpush2.msra.mxu0 0.0
      %2822 = vmatprep.subr.mxu0 0.0
      %2823 = vmatpush2.msra.mxu0 0.0
      %2824 = vmatprep.subr.mxu0 0.0
      %2825 = vmatpush2.msra.mxu0 0.0
      %2826 = vmatprep.subr.mxu0 0.0
      %2827 = vmatpush2.msra.mxu0 0.0
      %2828 = vmatprep.subr.mxu0 0.0
      %2829 = vmatpush2.msra.mxu0 0.0
      %2830 = vmatprep.subr.mxu0 0.0
      %2831 = vmatpush2.msra.mxu0 0.0
      %2832 = vmatprep.subr.mxu0 0.0
      %2833 = vmatpush2.msra.mxu0 0.0
      %2834 = vmatprep.subr.mxu0 0.0
      %2835 = vmatpush2.msra.mxu0 0.0
      %2836 = vmatprep.subr.mxu0 0.0
      %2837 = vmatpush2.msra.mxu0 0.0
      %2838 = vmatprep.subr.mxu0 0.0
      %2839 = vmatpush2.msra.mxu0 0.0
      %2840 = vmatprep.subr.mxu0 0.0
      %2841 = vmatpush2.msra.mxu0 0.0
      %2842 = vmatprep.subr.mxu0 0.0
      %2843 = vmatpush2.msra.mxu0 0.0
      %2844 = vmatprep.subr.mxu0 0.0
      %2845 = vmatpush2.msra.mxu0 0.0
      %2846 = vmatprep.subr.mxu0 0.0
      %2847 = vmatpush2.msra.mxu0 0.0
      %2848 = vmatprep.subr.mxu0 0.0
      %2849 = vmatpush2.msra.mxu0 0.0
      %2850 = vmatprep.mubr.f32.mxu0 0.0
      %2851 = vmatmul.mubr.f32.gmra.mxu0 %v2713
      %v2852 = vpop.f32.mrf.mxu0
      %v2853 = vadd.f32 %v2710, %v2852
      %v2854 = vpop.f32.mrf.mxu0
      %2855 = vdwg.mxu0
      %v2856 = vld [vmem:[#allocation3] sm:$0xff]
      %v2857 = vld [vmem:[#allocation3 + $0x8] sm:$0xff]
      %v2858 = vld [vmem:[#allocation3 + $0x10] sm:$0xff]
      %v2859 = vld [vmem:[#allocation3 + $0x18] sm:$0xff]
      %v2860 = vld [vmem:[#allocation3 + $0x28] sm:$0xff]
      %v2861 = vld [vmem:[#allocation3 + $0x30] sm:$0xff]
      %v2862 = vld [vmem:[#allocation3 + $0x38] sm:$0xff]
      %v2863 = vld [vmem:[#allocation3 + $0x40] sm:$0xff]
      %v2864 = vld [vmem:[#allocation3 + $0x50] sm:$0xff]
      %v2865 = vld [vmem:[#allocation3 + $0x58] sm:$0xff]
      %v2866 = vld [vmem:[#allocation3 + $0x60] sm:$0xff]
      %v2867 = vld [vmem:[#allocation3 + $0x68] sm:$0xff]
      %v2868 = vld [vmem:[#allocation3 + $0x78] sm:$0xff]
      %v2869 = vld [vmem:[#allocation3 + $0x80] sm:$0xff]
      %v2870 = vld [vmem:[#allocation3 + $0x88] sm:$0xff]
      %v2871 = vld [vmem:[#allocation3 + $0x90] sm:$0xff]
      %2888 = vrot.lane.b32.xlu0 %v2856, 19
      %v2889 = vpop.permute.xlu0 %2888
      %2890 = vrot.lane.b32.xlu0 %v2857, 19
      %v2891 = vpop.permute.xlu0 %2890
      %2892 = vrot.lane.b32.xlu0 %v2858, 19
      %v2893 = vpop.permute.xlu0 %2892
      %2894 = vrot.lane.b32.xlu0 %v2859, 19
      %v2895 = vpop.permute.xlu0 %2894
      %2896 = vrot.lane.b32.xlu0 %v2860, 19
      %v2897 = vpop.permute.xlu0 %2896
      %2898 = vrot.lane.b32.xlu0 %v2861, 19
      %v2899 = vpop.permute.xlu0 %2898
      %2900 = vrot.lane.b32.xlu0 %v2862, 19
      %v2901 = vpop.permute.xlu0 %2900
      %2902 = vrot.lane.b32.xlu0 %v2863, 19
      %v2903 = vpop.permute.xlu0 %2902
      %2904 = vrot.lane.b32.xlu0 %v2864, 19
      %v2905 = vpop.permute.xlu0 %2904
      %2906 = vrot.lane.b32.xlu0 %v2865, 19
      %v2907 = vpop.permute.xlu0 %2906
      %2908 = vrot.lane.b32.xlu0 %v2866, 19
      %v2909 = vpop.permute.xlu0 %2908
      %2910 = vrot.lane.b32.xlu0 %v2867, 19
      %v2911 = vpop.permute.xlu0 %2910
      %2912 = vrot.lane.b32.xlu0 %v2868, 19
      %v2913 = vpop.permute.xlu0 %2912
      %2914 = vrot.lane.b32.xlu0 %v2869, 19
      %v2915 = vpop.permute.xlu0 %2914
      %2916 = vrot.lane.b32.xlu0 %v2870, 19
      %v2917 = vpop.permute.xlu0 %2916
      %2918 = vrot.lane.b32.xlu0 %v2871, 19
      %v2919 = vpop.permute.xlu0 %2918
      %v2920 = vsel %vm749, %v2889, %v2891
      %v2921 = vsel %vm749, %v2891, %v2893
      %v2922 = vsel %vm749, %v2893, %v2895
      %v2923 = vsel %vm749, %v2897, %v2899
      %v2924 = vsel %vm749, %v2899, %v2901
      %v2925 = vsel %vm749, %v2901, %v2903
      %v2926 = vsel %vm749, %v2905, %v2907
      %v2927 = vsel %vm749, %v2907, %v2909
      %v2928 = vsel %vm749, %v2909, %v2911
      %v2929 = vsel %vm749, %v2913, %v2915
      %v2930 = vsel %vm749, %v2915, %v2917
      %v2931 = vsel %vm749, %v2917, %v2919
      %2944 = vst [vmem:[#allocation5] sm:$0xff] %v2920
      %2945 = vst [vmem:[#allocation5 + $0x8] sm:$0xff] %v2921
      %2946 = vst [vmem:[#allocation5 + $0x10] sm:$0xff] %v2922
      %2947 = vst [vmem:[#allocation5 + $0x18] sm:$0xff] %v2923
      %2948 = vst [vmem:[#allocation5 + $0x20] sm:$0xff] %v2924
      %2949 = vst [vmem:[#allocation5 + $0x28] sm:$0xff] %v2925
      %2950 = vst [vmem:[#allocation5 + $0x30] sm:$0xff] %v2926
      %2951 = vst [vmem:[#allocation5 + $0x38] sm:$0xff] %v2927
      %2952 = vst [vmem:[#allocation5 + $0x40] sm:$0xff] %v2928
      %2953 = vst [vmem:[#allocation5 + $0x48] sm:$0xff] %v2929
      %2954 = vst [vmem:[#allocation5 + $0x50] sm:$0xff] %v2930
      %2955 = vst [vmem:[#allocation5 + $0x58] sm:$0xff] %v2931
      %v2956 = vld [vmem:[#allocation3] sm:$0xff]
      %v2957 = vld [vmem:[#allocation3 + $0x8] sm:$0xff]
      %v2958 = vld [vmem:[#allocation3 + $0x10] sm:$0xff]
      %v2959 = vld [vmem:[#allocation3 + $0x18] sm:$0xff]
      %v2960 = vld [vmem:[#allocation3 + $0x28] sm:$0xff]
      %v2961 = vld [vmem:[#allocation3 + $0x30] sm:$0xff]
      %v2962 = vld [vmem:[#allocation3 + $0x38] sm:$0xff]
      %v2963 = vld [vmem:[#allocation3 + $0x40] sm:$0xff]
      %v2964 = vld [vmem:[#allocation3 + $0x50] sm:$0xff]
      %v2965 = vld [vmem:[#allocation3 + $0x58] sm:$0xff]
      %v2966 = vld [vmem:[#allocation3 + $0x60] sm:$0xff]
      %v2967 = vld [vmem:[#allocation3 + $0x68] sm:$0xff]
      %v2968 = vld [vmem:[#allocation3 + $0x78] sm:$0xff]
      %v2969 = vld [vmem:[#allocation3 + $0x80] sm:$0xff]
      %v2970 = vld [vmem:[#allocation3 + $0x88] sm:$0xff]
      %v2971 = vld [vmem:[#allocation3 + $0x90] sm:$0xff]
      %2988 = vrot.lane.b32.xlu0 %v2956, 18
      %v2989 = vpop.permute.xlu0 %2988
      %2990 = vrot.lane.b32.xlu0 %v2957, 18
      %v2991 = vpop.permute.xlu0 %2990
      %2992 = vrot.lane.b32.xlu0 %v2958, 18
      %v2993 = vpop.permute.xlu0 %2992
      %2994 = vrot.lane.b32.xlu0 %v2959, 18
      %v2995 = vpop.permute.xlu0 %2994
      %2996 = vrot.lane.b32.xlu0 %v2960, 18
      %v2997 = vpop.permute.xlu0 %2996
      %2998 = vrot.lane.b32.xlu0 %v2961, 18
      %v2999 = vpop.permute.xlu0 %2998
      %3000 = vrot.lane.b32.xlu0 %v2962, 18
      %v3001 = vpop.permute.xlu0 %3000
      %3002 = vrot.lane.b32.xlu0 %v2963, 18
      %v3003 = vpop.permute.xlu0 %3002
      %3004 = vrot.lane.b32.xlu0 %v2964, 18
      %v3005 = vpop.permute.xlu0 %3004
      %3006 = vrot.lane.b32.xlu0 %v2965, 18
      %v3007 = vpop.permute.xlu0 %3006
      %3008 = vrot.lane.b32.xlu0 %v2966, 18
      %v3009 = vpop.permute.xlu0 %3008
      %3010 = vrot.lane.b32.xlu0 %v2967, 18
      %v3011 = vpop.permute.xlu0 %3010
      %3012 = vrot.lane.b32.xlu0 %v2968, 18
      %v3013 = vpop.permute.xlu0 %3012
      %3014 = vrot.lane.b32.xlu0 %v2969, 18
      %v3015 = vpop.permute.xlu0 %3014
      %3016 = vrot.lane.b32.xlu0 %v2970, 18
      %v3017 = vpop.permute.xlu0 %3016
      %3018 = vrot.lane.b32.xlu0 %v2971, 18
      %v3019 = vpop.permute.xlu0 %3018
      %v3020 = vsel %vm773, %v2989, %v2991
      %v3021 = vsel %vm773, %v2991, %v2993
      %v3022 = vsel %vm773, %v2993, %v2995
      %v3023 = vsel %vm773, %v2997, %v2999
      %v3024 = vsel %vm773, %v2999, %v3001
      %v3025 = vsel %vm773, %v3001, %v3003
      %v3026 = vsel %vm773, %v3005, %v3007
      %v3027 = vsel %vm773, %v3007, %v3009
      %v3028 = vsel %vm773, %v3009, %v3011
      %v3029 = vsel %vm773, %v3013, %v3015
      %v3030 = vsel %vm773, %v3015, %v3017
      %v3031 = vsel %vm773, %v3017, %v3019
      %3044 = vst [vmem:[#allocation5 + $0x60] sm:$0xff] %v3020
      %3045 = vst [vmem:[#allocation5 + $0x68] sm:$0xff] %v3021
      %3046 = vst [vmem:[#allocation5 + $0x70] sm:$0xff] %v3022
      %3047 = vst [vmem:[#allocation5 + $0x78] sm:$0xff] %v3023
      %3048 = vst [vmem:[#allocation5 + $0x80] sm:$0xff] %v3024
      %3049 = vst [vmem:[#allocation5 + $0x88] sm:$0xff] %v3025
      %3050 = vst [vmem:[#allocation5 + $0x90] sm:$0xff] %v3026
      %3051 = vst [vmem:[#allocation5 + $0x98] sm:$0xff] %v3027
      %3052 = vst [vmem:[#allocation5 + $0xa0] sm:$0xff] %v3028
      %3053 = vst [vmem:[#allocation5 + $0xa8] sm:$0xff] %v3029
      %3054 = vst [vmem:[#allocation5 + $0xb0] sm:$0xff] %v3030
      %3055 = vst [vmem:[#allocation5 + $0xb8] sm:$0xff] %v3031
      %v3056 = vld [vmem:[#allocation3] sm:$0xff]
      %v3057 = vld [vmem:[#allocation3 + $0x8] sm:$0xff]
      %v3058 = vld [vmem:[#allocation3 + $0x10] sm:$0xff]
      %v3059 = vld [vmem:[#allocation3 + $0x18] sm:$0xff]
      %v3060 = vld [vmem:[#allocation3 + $0x28] sm:$0xff]
      %v3061 = vld [vmem:[#allocation3 + $0x30] sm:$0xff]
      %v3062 = vld [vmem:[#allocation3 + $0x38] sm:$0xff]
      %v3063 = vld [vmem:[#allocation3 + $0x40] sm:$0xff]
      %v3064 = vld [vmem:[#allocation3 + $0x50] sm:$0xff]
      %v3065 = vld [vmem:[#allocation3 + $0x58] sm:$0xff]
      %v3066 = vld [vmem:[#allocation3 + $0x60] sm:$0xff]
      %v3067 = vld [vmem:[#allocation3 + $0x68] sm:$0xff]
      %v3068 = vld [vmem:[#allocation3 + $0x78] sm:$0xff]
      %v3069 = vld [vmem:[#allocation3 + $0x80] sm:$0xff]
      %v3070 = vld [vmem:[#allocation3 + $0x88] sm:$0xff]
      %v3071 = vld [vmem:[#allocation3 + $0x90] sm:$0xff]
      %3088 = vrot.lane.b32.xlu0 %v3056, 17
      %v3089 = vpop.permute.xlu0 %3088
      %3090 = vrot.lane.b32.xlu0 %v3057, 17
      %v3091 = vpop.permute.xlu0 %3090
      %3092 = vrot.lane.b32.xlu0 %v3058, 17
      %v3093 = vpop.permute.xlu0 %3092
      %3094 = vrot.lane.b32.xlu0 %v3059, 17
      %v3095 = vpop.permute.xlu0 %3094
      %3096 = vrot.lane.b32.xlu0 %v3060, 17
      %v3097 = vpop.permute.xlu0 %3096
      %3098 = vrot.lane.b32.xlu0 %v3061, 17
      %v3099 = vpop.permute.xlu0 %3098
      %3100 = vrot.lane.b32.xlu0 %v3062, 17
      %v3101 = vpop.permute.xlu0 %3100
      %3102 = vrot.lane.b32.xlu0 %v3063, 17
      %v3103 = vpop.permute.xlu0 %3102
      %3104 = vrot.lane.b32.xlu0 %v3064, 17
      %v3105 = vpop.permute.xlu0 %3104
      %3106 = vrot.lane.b32.xlu0 %v3065, 17
      %v3107 = vpop.permute.xlu0 %3106
      %3108 = vrot.lane.b32.xlu0 %v3066, 17
      %v3109 = vpop.permute.xlu0 %3108
      %3110 = vrot.lane.b32.xlu0 %v3067, 17
      %v3111 = vpop.permute.xlu0 %3110
      %3112 = vrot.lane.b32.xlu0 %v3068, 17
      %v3113 = vpop.permute.xlu0 %3112
      %3114 = vrot.lane.b32.xlu0 %v3069, 17
      %v3115 = vpop.permute.xlu0 %3114
      %3116 = vrot.lane.b32.xlu0 %v3070, 17
      %v3117 = vpop.permute.xlu0 %3116
      %3118 = vrot.lane.b32.xlu0 %v3071, 17
      %v3119 = vpop.permute.xlu0 %3118
      %v3120 = vsel %vm797, %v3089, %v3091
      %v3121 = vsel %vm797, %v3091, %v3093
      %v3122 = vsel %vm797, %v3093, %v3095
      %v3123 = vsel %vm797, %v3097, %v3099
      %v3124 = vsel %vm797, %v3099, %v3101
      %v3125 = vsel %vm797, %v3101, %v3103
      %v3126 = vsel %vm797, %v3105, %v3107
      %v3127 = vsel %vm797, %v3107, %v3109
      %v3128 = vsel %vm797, %v3109, %v3111
      %v3129 = vsel %vm797, %v3113, %v3115
      %v3130 = vsel %vm797, %v3115, %v3117
      %v3131 = vsel %vm797, %v3117, %v3119
      %3144 = vst [vmem:[#allocation5 + $0xc0] sm:$0xff] %v3120
      %3145 = vst [vmem:[#allocation5 + $0xc8] sm:$0xff] %v3121
      %3146 = vst [vmem:[#allocation5 + $0xd0] sm:$0xff] %v3122
      %3147 = vst [vmem:[#allocation5 + $0xd8] sm:$0xff] %v3123
      %3148 = vst [vmem:[#allocation5 + $0xe0] sm:$0xff] %v3124
      %3149 = vst [vmem:[#allocation5 + $0xe8] sm:$0xff] %v3125
      %3150 = vst [vmem:[#allocation5 + $0xf0] sm:$0xff] %v3126
      %3151 = vst [vmem:[#allocation5 + $0xf8] sm:$0xff] %v3127
      %3152 = vst [vmem:[#allocation5 + $0x100] sm:$0xff] %v3128
      %3153 = vst [vmem:[#allocation5 + $0x108] sm:$0xff] %v3129
      %3154 = vst [vmem:[#allocation5 + $0x110] sm:$0xff] %v3130
      %3155 = vst [vmem:[#allocation5 + $0x118] sm:$0xff] %v3131
      %v3156 = vld [vmem:[#allocation3] sm:$0xff]
      %v3157 = vld [vmem:[#allocation3 + $0x8] sm:$0xff]
      %v3158 = vld [vmem:[#allocation3 + $0x10] sm:$0xff]
      %v3159 = vld [vmem:[#allocation3 + $0x18] sm:$0xff]
      %v3160 = vld [vmem:[#allocation3 + $0x28] sm:$0xff]
      %v3161 = vld [vmem:[#allocation3 + $0x30] sm:$0xff]
      %v3162 = vld [vmem:[#allocation3 + $0x38] sm:$0xff]
      %v3163 = vld [vmem:[#allocation3 + $0x40] sm:$0xff]
      %v3164 = vld [vmem:[#allocation3 + $0x50] sm:$0xff]
      %v3165 = vld [vmem:[#allocation3 + $0x58] sm:$0xff]
      %v3166 = vld [vmem:[#allocation3 + $0x60] sm:$0xff]
      %v3167 = vld [vmem:[#allocation3 + $0x68] sm:$0xff]
      %v3168 = vld [vmem:[#allocation3 + $0x78] sm:$0xff]
      %v3169 = vld [vmem:[#allocation3 + $0x80] sm:$0xff]
      %v3170 = vld [vmem:[#allocation3 + $0x88] sm:$0xff]
      %v3171 = vld [vmem:[#allocation3 + $0x90] sm:$0xff]
      %3188 = vrot.lane.b32.xlu0 %v3156, 1
      %v3189 = vpop.permute.xlu0 %3188
      %3190 = vrot.lane.b32.xlu0 %v3157, 1
      %v3191 = vpop.permute.xlu0 %3190
      %3192 = vrot.lane.b32.xlu0 %v3158, 1
      %v3193 = vpop.permute.xlu0 %3192
      %3194 = vrot.lane.b32.xlu0 %v3159, 1
      %v3195 = vpop.permute.xlu0 %3194
      %3196 = vrot.lane.b32.xlu0 %v3160, 1
      %v3197 = vpop.permute.xlu0 %3196
      %3198 = vrot.lane.b32.xlu0 %v3161, 1
      %v3199 = vpop.permute.xlu0 %3198
      %3200 = vrot.lane.b32.xlu0 %v3162, 1
      %v3201 = vpop.permute.xlu0 %3200
      %3202 = vrot.lane.b32.xlu0 %v3163, 1
      %v3203 = vpop.permute.xlu0 %3202
      %3204 = vrot.lane.b32.xlu0 %v3164, 1
      %v3205 = vpop.permute.xlu0 %3204
      %3206 = vrot.lane.b32.xlu0 %v3165, 1
      %v3207 = vpop.permute.xlu0 %3206
      %3208 = vrot.lane.b32.xlu0 %v3166, 1
      %v3209 = vpop.permute.xlu0 %3208
      %3210 = vrot.lane.b32.xlu0 %v3167, 1
      %v3211 = vpop.permute.xlu0 %3210
      %3212 = vrot.lane.b32.xlu0 %v3168, 1
      %v3213 = vpop.permute.xlu0 %3212
      %3214 = vrot.lane.b32.xlu0 %v3169, 1
      %v3215 = vpop.permute.xlu0 %3214
      %3216 = vrot.lane.b32.xlu0 %v3170, 1
      %v3217 = vpop.permute.xlu0 %3216
      %3218 = vrot.lane.b32.xlu0 %v3171, 1
      %v3219 = vpop.permute.xlu0 %3218
      %v3220 = vsel %vm821, %v3189, %v3191
      %v3221 = vsel %vm821, %v3191, %v3193
      %v3222 = vsel %vm821, %v3193, %v3195
      %v3223 = vsel %vm821, %v3197, %v3199
      %v3224 = vsel %vm821, %v3199, %v3201
      %v3225 = vsel %vm821, %v3201, %v3203
      %v3226 = vsel %vm821, %v3205, %v3207
      %v3227 = vsel %vm821, %v3207, %v3209
      %v3228 = vsel %vm821, %v3209, %v3211
      %v3229 = vsel %vm821, %v3213, %v3215
      %v3230 = vsel %vm821, %v3215, %v3217
      %v3231 = vsel %vm821, %v3217, %v3219
      %3244 = vst [vmem:[#allocation5 + $0x120] sm:$0xff] %v3220
      %3245 = vst [vmem:[#allocation5 + $0x128] sm:$0xff] %v3221
      %3246 = vst [vmem:[#allocation5 + $0x130] sm:$0xff] %v3222
      %3247 = vst [vmem:[#allocation5 + $0x138] sm:$0xff] %v3223
      %3248 = vst [vmem:[#allocation5 + $0x140] sm:$0xff] %v3224
      %3249 = vst [vmem:[#allocation5 + $0x148] sm:$0xff] %v3225
      %3250 = vst [vmem:[#allocation5 + $0x150] sm:$0xff] %v3226
      %3251 = vst [vmem:[#allocation5 + $0x158] sm:$0xff] %v3227
      %3252 = vst [vmem:[#allocation5 + $0x160] sm:$0xff] %v3228
      %3253 = vst [vmem:[#allocation5 + $0x168] sm:$0xff] %v3229
      %3254 = vst [vmem:[#allocation5 + $0x170] sm:$0xff] %v3230
      %3255 = vst [vmem:[#allocation5 + $0x178] sm:$0xff] %v3231
      %v3256 = vld [vmem:[#allocation3 + $0x8] sm:$0xff]
      %v3257 = vld [vmem:[#allocation3 + $0x10] sm:$0xff]
      %v3258 = vld [vmem:[#allocation3 + $0x18] sm:$0xff]
      %v3259 = vld [vmem:[#allocation3 + $0x30] sm:$0xff]
      %v3260 = vld [vmem:[#allocation3 + $0x38] sm:$0xff]
      %v3261 = vld [vmem:[#allocation3 + $0x40] sm:$0xff]
      %v3262 = vld [vmem:[#allocation3 + $0x58] sm:$0xff]
      %v3263 = vld [vmem:[#allocation3 + $0x60] sm:$0xff]
      %v3264 = vld [vmem:[#allocation3 + $0x68] sm:$0xff]
      %v3265 = vld [vmem:[#allocation3 + $0x80] sm:$0xff]
      %v3266 = vld [vmem:[#allocation3 + $0x88] sm:$0xff]
      %v3267 = vld [vmem:[#allocation3 + $0x90] sm:$0xff]
      %3268 = vst [vmem:[#allocation5 + $0x180] sm:$0xff] %v3256
      %3269 = vst [vmem:[#allocation5 + $0x188] sm:$0xff] %v3257
      %3270 = vst [vmem:[#allocation5 + $0x190] sm:$0xff] %v3258
      %3271 = vst [vmem:[#allocation5 + $0x198] sm:$0xff] %v3259
      %3272 = vst [vmem:[#allocation5 + $0x1a0] sm:$0xff] %v3260
      %3273 = vst [vmem:[#allocation5 + $0x1a8] sm:$0xff] %v3261
      %3274 = vst [vmem:[#allocation5 + $0x1b0] sm:$0xff] %v3262
      %3275 = vst [vmem:[#allocation5 + $0x1b8] sm:$0xff] %v3263
      %3276 = vst [vmem:[#allocation5 + $0x1c0] sm:$0xff] %v3264
      %3277 = vst [vmem:[#allocation5 + $0x1c8] sm:$0xff] %v3265
      %3278 = vst [vmem:[#allocation5 + $0x1d0] sm:$0xff] %v3266
      %3279 = vst [vmem:[#allocation5 + $0x1d8] sm:$0xff] %v3267
      %v3280 = vld [vmem:[#allocation3 + $0x8] sm:$0xff]
      %v3281 = vld [vmem:[#allocation3 + $0x10] sm:$0xff]
      %v3282 = vld [vmem:[#allocation3 + $0x18] sm:$0xff]
      %v3283 = vld [vmem:[#allocation3 + $0x20] sm:$0xff]
      %v3284 = vld [vmem:[#allocation3 + $0x30] sm:$0xff]
      %v3285 = vld [vmem:[#allocation3 + $0x38] sm:$0xff]
      %v3286 = vld [vmem:[#allocation3 + $0x40] sm:$0xff]
      %v3287 = vld [vmem:[#allocation3 + $0x48] sm:$0xff]
      %v3288 = vld [vmem:[#allocation3 + $0x58] sm:$0xff]
      %v3289 = vld [vmem:[#allocation3 + $0x60] sm:$0xff]
      %v3290 = vld [vmem:[#allocation3 + $0x68] sm:$0xff]
      %v3291 = vld [vmem:[#allocation3 + $0x70] sm:$0xff]
      %v3292 = vld [vmem:[#allocation3 + $0x80] sm:$0xff]
      %v3293 = vld [vmem:[#allocation3 + $0x88] sm:$0xff]
      %v3294 = vld [vmem:[#allocation3 + $0x90] sm:$0xff]
      %v3295 = vld [vmem:[#allocation3 + $0x98] sm:$0xff]
      %3312 = vrot.lane.b32.xlu0 %v3280, 127
      %v3313 = vpop.permute.xlu0 %3312
      %3314 = vrot.lane.b32.xlu0 %v3281, 127
      %v3315 = vpop.permute.xlu0 %3314
      %3316 = vrot.lane.b32.xlu0 %v3282, 127
      %v3317 = vpop.permute.xlu0 %3316
      %3318 = vrot.lane.b32.xlu0 %v3283, 127
      %v3319 = vpop.permute.xlu0 %3318
      %3320 = vrot.lane.b32.xlu0 %v3284, 127
      %v3321 = vpop.permute.xlu0 %3320
      %3322 = vrot.lane.b32.xlu0 %v3285, 127
      %v3323 = vpop.permute.xlu0 %3322
      %3324 = vrot.lane.b32.xlu0 %v3286, 127
      %v3325 = vpop.permute.xlu0 %3324
      %3326 = vrot.lane.b32.xlu0 %v3287, 127
      %v3327 = vpop.permute.xlu0 %3326
      %3328 = vrot.lane.b32.xlu0 %v3288, 127
      %v3329 = vpop.permute.xlu0 %3328
      %3330 = vrot.lane.b32.xlu0 %v3289, 127
      %v3331 = vpop.permute.xlu0 %3330
      %3332 = vrot.lane.b32.xlu0 %v3290, 127
      %v3333 = vpop.permute.xlu0 %3332
      %3334 = vrot.lane.b32.xlu0 %v3291, 127
      %v3335 = vpop.permute.xlu0 %3334
      %3336 = vrot.lane.b32.xlu0 %v3292, 127
      %v3337 = vpop.permute.xlu0 %3336
      %3338 = vrot.lane.b32.xlu0 %v3293, 127
      %v3339 = vpop.permute.xlu0 %3338
      %3340 = vrot.lane.b32.xlu0 %v3294, 127
      %v3341 = vpop.permute.xlu0 %3340
      %3342 = vrot.lane.b32.xlu0 %v3295, 127
      %v3343 = vpop.permute.xlu0 %3342
      %v3344 = vsel %vm853, %v3313, %v3315
      %v3345 = vsel %vm853, %v3315, %v3317
      %v3346 = vsel %vm853, %v3317, %v3319
      %v3347 = vsel %vm853, %v3321, %v3323
      %v3348 = vsel %vm853, %v3323, %v3325
      %v3349 = vsel %vm853, %v3325, %v3327
      %v3350 = vsel %vm853, %v3329, %v3331
      %v3351 = vsel %vm853, %v3331, %v3333
      %v3352 = vsel %vm853, %v3333, %v3335
      %v3353 = vsel %vm853, %v3337, %v3339
      %v3354 = vsel %vm853, %v3339, %v3341
      %v3355 = vsel %vm853, %v3341, %v3343
      %3368 = vst [vmem:[#allocation5 + $0x1e0] sm:$0xff] %v3344
      %3369 = vst [vmem:[#allocation5 + $0x1e8] sm:$0xff] %v3345
      %3370 = vst [vmem:[#allocation5 + $0x1f0] sm:$0xff] %v3346
      %3371 = vst [vmem:[#allocation5 + $0x1f8] sm:$0xff] %v3347
      %3372 = vst [vmem:[#allocation5 + $0x200] sm:$0xff] %v3348
      %3373 = vst [vmem:[#allocation5 + $0x208] sm:$0xff] %v3349
      %3374 = vst [vmem:[#allocation5 + $0x210] sm:$0xff] %v3350
      %3375 = vst [vmem:[#allocation5 + $0x218] sm:$0xff] %v3351
      %3376 = vst [vmem:[#allocation5 + $0x220] sm:$0xff] %v3352
      %3377 = vst [vmem:[#allocation5 + $0x228] sm:$0xff] %v3353
      %3378 = vst [vmem:[#allocation5 + $0x230] sm:$0xff] %v3354
      %3379 = vst [vmem:[#allocation5 + $0x238] sm:$0xff] %v3355
      %v3380 = vld [vmem:[#allocation3 + $0x8] sm:$0xff]
      %v3381 = vld [vmem:[#allocation3 + $0x10] sm:$0xff]
      %v3382 = vld [vmem:[#allocation3 + $0x18] sm:$0xff]
      %v3383 = vld [vmem:[#allocation3 + $0x20] sm:$0xff]
      %v3384 = vld [vmem:[#allocation3 + $0x30] sm:$0xff]
      %v3385 = vld [vmem:[#allocation3 + $0x38] sm:$0xff]
      %v3386 = vld [vmem:[#allocation3 + $0x40] sm:$0xff]
      %v3387 = vld [vmem:[#allocation3 + $0x48] sm:$0xff]
      %v3388 = vld [vmem:[#allocation3 + $0x58] sm:$0xff]
      %v3389 = vld [vmem:[#allocation3 + $0x60] sm:$0xff]
      %v3390 = vld [vmem:[#allocation3 + $0x68] sm:$0xff]
      %v3391 = vld [vmem:[#allocation3 + $0x70] sm:$0xff]
      %v3392 = vld [vmem:[#allocation3 + $0x80] sm:$0xff]
      %v3393 = vld [vmem:[#allocation3 + $0x88] sm:$0xff]
      %v3394 = vld [vmem:[#allocation3 + $0x90] sm:$0xff]
      %v3395 = vld [vmem:[#allocation3 + $0x98] sm:$0xff]
      %3412 = vrot.lane.b32.xlu0 %v3380, 111
      %v3413 = vpop.permute.xlu0 %3412
      %3414 = vrot.lane.b32.xlu0 %v3381, 111
      %v3415 = vpop.permute.xlu0 %3414
      %3416 = vrot.lane.b32.xlu0 %v3382, 111
      %v3417 = vpop.permute.xlu0 %3416
      %3418 = vrot.lane.b32.xlu0 %v3383, 111
      %v3419 = vpop.permute.xlu0 %3418
      %3420 = vrot.lane.b32.xlu0 %v3384, 111
      %v3421 = vpop.permute.xlu0 %3420
      %3422 = vrot.lane.b32.xlu0 %v3385, 111
      %v3423 = vpop.permute.xlu0 %3422
      %3424 = vrot.lane.b32.xlu0 %v3386, 111
      %v3425 = vpop.permute.xlu0 %3424
      %3426 = vrot.lane.b32.xlu0 %v3387, 111
      %v3427 = vpop.permute.xlu0 %3426
      %3428 = vrot.lane.b32.xlu0 %v3388, 111
      %v3429 = vpop.permute.xlu0 %3428
      %3430 = vrot.lane.b32.xlu0 %v3389, 111
      %v3431 = vpop.permute.xlu0 %3430
      %3432 = vrot.lane.b32.xlu0 %v3390, 111
      %v3433 = vpop.permute.xlu0 %3432
      %3434 = vrot.lane.b32.xlu0 %v3391, 111
      %v3435 = vpop.permute.xlu0 %3434
      %3436 = vrot.lane.b32.xlu0 %v3392, 111
      %v3437 = vpop.permute.xlu0 %3436
      %3438 = vrot.lane.b32.xlu0 %v3393, 111
      %v3439 = vpop.permute.xlu0 %3438
      %3440 = vrot.lane.b32.xlu0 %v3394, 111
      %v3441 = vpop.permute.xlu0 %3440
      %3442 = vrot.lane.b32.xlu0 %v3395, 111
      %v3443 = vpop.permute.xlu0 %3442
      %v3444 = vsel %vm877, %v3413, %v3415
      %v3445 = vsel %vm877, %v3415, %v3417
      %v3446 = vsel %vm877, %v3417, %v3419
      %v3447 = vsel %vm877, %v3421, %v3423
      %v3448 = vsel %vm877, %v3423, %v3425
      %v3449 = vsel %vm877, %v3425, %v3427
      %v3450 = vsel %vm877, %v3429, %v3431
      %v3451 = vsel %vm877, %v3431, %v3433
      %v3452 = vsel %vm877, %v3433, %v3435
      %v3453 = vsel %vm877, %v3437, %v3439
      %v3454 = vsel %vm877, %v3439, %v3441
      %v3455 = vsel %vm877, %v3441, %v3443
      %3468 = vst [vmem:[#allocation5 + $0x240] sm:$0xff] %v3444
      %3469 = vst [vmem:[#allocation5 + $0x248] sm:$0xff] %v3445
      %3470 = vst [vmem:[#allocation5 + $0x250] sm:$0xff] %v3446
      %3471 = vst [vmem:[#allocation5 + $0x258] sm:$0xff] %v3447
      %3472 = vst [vmem:[#allocation5 + $0x260] sm:$0xff] %v3448
      %3473 = vst [vmem:[#allocation5 + $0x268] sm:$0xff] %v3449
      %3474 = vst [vmem:[#allocation5 + $0x270] sm:$0xff] %v3450
      %3475 = vst [vmem:[#allocation5 + $0x278] sm:$0xff] %v3451
      %3476 = vst [vmem:[#allocation5 + $0x280] sm:$0xff] %v3452
      %3477 = vst [vmem:[#allocation5 + $0x288] sm:$0xff] %v3453
      %3478 = vst [vmem:[#allocation5 + $0x290] sm:$0xff] %v3454
      %3479 = vst [vmem:[#allocation5 + $0x298] sm:$0xff] %v3455
      %v3480 = vld [vmem:[#allocation3 + $0x8] sm:$0xff]
      %v3481 = vld [vmem:[#allocation3 + $0x10] sm:$0xff]
      %v3482 = vld [vmem:[#allocation3 + $0x18] sm:$0xff]
      %v3483 = vld [vmem:[#allocation3 + $0x20] sm:$0xff]
      %v3484 = vld [vmem:[#allocation3 + $0x30] sm:$0xff]
      %v3485 = vld [vmem:[#allocation3 + $0x38] sm:$0xff]
      %v3486 = vld [vmem:[#allocation3 + $0x40] sm:$0xff]
      %v3487 = vld [vmem:[#allocation3 + $0x48] sm:$0xff]
      %v3488 = vld [vmem:[#allocation3 + $0x58] sm:$0xff]
      %v3489 = vld [vmem:[#allocation3 + $0x60] sm:$0xff]
      %v3490 = vld [vmem:[#allocation3 + $0x68] sm:$0xff]
      %v3491 = vld [vmem:[#allocation3 + $0x70] sm:$0xff]
      %v3492 = vld [vmem:[#allocation3 + $0x80] sm:$0xff]
      %v3493 = vld [vmem:[#allocation3 + $0x88] sm:$0xff]
      %v3494 = vld [vmem:[#allocation3 + $0x90] sm:$0xff]
      %v3495 = vld [vmem:[#allocation3 + $0x98] sm:$0xff]
      %3512 = vrot.lane.b32.xlu0 %v3480, 110
      %v3513 = vpop.permute.xlu0 %3512
      %3514 = vrot.lane.b32.xlu0 %v3481, 110
      %v3515 = vpop.permute.xlu0 %3514
      %3516 = vrot.lane.b32.xlu0 %v3482, 110
      %v3517 = vpop.permute.xlu0 %3516
      %3518 = vrot.lane.b32.xlu0 %v3483, 110
      %v3519 = vpop.permute.xlu0 %3518
      %3520 = vrot.lane.b32.xlu0 %v3484, 110
      %v3521 = vpop.permute.xlu0 %3520
      %3522 = vrot.lane.b32.xlu0 %v3485, 110
      %v3523 = vpop.permute.xlu0 %3522
      %3524 = vrot.lane.b32.xlu0 %v3486, 110
      %v3525 = vpop.permute.xlu0 %3524
      %3526 = vrot.lane.b32.xlu0 %v3487, 110
      %v3527 = vpop.permute.xlu0 %3526
      %3528 = vrot.lane.b32.xlu0 %v3488, 110
      %v3529 = vpop.permute.xlu0 %3528
      %3530 = vrot.lane.b32.xlu0 %v3489, 110
      %v3531 = vpop.permute.xlu0 %3530
      %3532 = vrot.lane.b32.xlu0 %v3490, 110
      %v3533 = vpop.permute.xlu0 %3532
      %3534 = vrot.lane.b32.xlu0 %v3491, 110
      %v3535 = vpop.permute.xlu0 %3534
      %3536 = vrot.lane.b32.xlu0 %v3492, 110
      %v3537 = vpop.permute.xlu0 %3536
      %3538 = vrot.lane.b32.xlu0 %v3493, 110
      %v3539 = vpop.permute.xlu0 %3538
      %3540 = vrot.lane.b32.xlu0 %v3494, 110
      %v3541 = vpop.permute.xlu0 %3540
      %3542 = vrot.lane.b32.xlu0 %v3495, 110
      %v3543 = vpop.permute.xlu0 %3542
      %v3544 = vsel %vm901, %v3513, %v3515
      %v3545 = vsel %vm901, %v3515, %v3517
      %v3546 = vsel %vm901, %v3517, %v3519
      %v3547 = vsel %vm901, %v3521, %v3523
      %v3548 = vsel %vm901, %v3523, %v3525
      %v3549 = vsel %vm901, %v3525, %v3527
      %v3550 = vsel %vm901, %v3529, %v3531
      %v3551 = vsel %vm901, %v3531, %v3533
      %v3552 = vsel %vm901, %v3533, %v3535
      %v3553 = vsel %vm901, %v3537, %v3539
      %v3554 = vsel %vm901, %v3539, %v3541
      %v3555 = vsel %vm901, %v3541, %v3543
      %3568 = vst [vmem:[#allocation5 + $0x2a0] sm:$0xff] %v3544
      %3569 = vst [vmem:[#allocation5 + $0x2a8] sm:$0xff] %v3545
      %3570 = vst [vmem:[#allocation5 + $0x2b0] sm:$0xff] %v3546
      %3571 = vst [vmem:[#allocation5 + $0x2b8] sm:$0xff] %v3547
      %3572 = vst [vmem:[#allocation5 + $0x2c0] sm:$0xff] %v3548
      %3573 = vst [vmem:[#allocation5 + $0x2c8] sm:$0xff] %v3549
      %3574 = vst [vmem:[#allocation5 + $0x2d0] sm:$0xff] %v3550
      %3575 = vst [vmem:[#allocation5 + $0x2d8] sm:$0xff] %v3551
      %3576 = vst [vmem:[#allocation5 + $0x2e0] sm:$0xff] %v3552
      %3577 = vst [vmem:[#allocation5 + $0x2e8] sm:$0xff] %v3553
      %3578 = vst [vmem:[#allocation5 + $0x2f0] sm:$0xff] %v3554
      %3579 = vst [vmem:[#allocation5 + $0x2f8] sm:$0xff] %v3555
      %v3580 = vld [vmem:[#allocation3 + $0x8] sm:$0xff]
      %v3581 = vld [vmem:[#allocation3 + $0x10] sm:$0xff]
      %v3582 = vld [vmem:[#allocation3 + $0x18] sm:$0xff]
      %v3583 = vld [vmem:[#allocation3 + $0x20] sm:$0xff]
      %v3584 = vld [vmem:[#allocation3 + $0x30] sm:$0xff]
      %v3585 = vld [vmem:[#allocation3 + $0x38] sm:$0xff]
      %v3586 = vld [vmem:[#allocation3 + $0x40] sm:$0xff]
      %v3587 = vld [vmem:[#allocation3 + $0x48] sm:$0xff]
      %v3588 = vld [vmem:[#allocation3 + $0x58] sm:$0xff]
      %v3589 = vld [vmem:[#allocation3 + $0x60] sm:$0xff]
      %v3590 = vld [vmem:[#allocation3 + $0x68] sm:$0xff]
      %v3591 = vld [vmem:[#allocation3 + $0x70] sm:$0xff]
      %v3592 = vld [vmem:[#allocation3 + $0x80] sm:$0xff]
      %v3593 = vld [vmem:[#allocation3 + $0x88] sm:$0xff]
      %v3594 = vld [vmem:[#allocation3 + $0x90] sm:$0xff]
      %v3595 = vld [vmem:[#allocation3 + $0x98] sm:$0xff]
      %3612 = vrot.lane.b32.xlu0 %v3580, 109
      %v3613 = vpop.permute.xlu0 %3612
      %3614 = vrot.lane.b32.xlu0 %v3581, 109
      %v3615 = vpop.permute.xlu0 %3614
      %3616 = vrot.lane.b32.xlu0 %v3582, 109
      %v3617 = vpop.permute.xlu0 %3616
      %3618 = vrot.lane.b32.xlu0 %v3583, 109
      %v3619 = vpop.permute.xlu0 %3618
      %3620 = vrot.lane.b32.xlu0 %v3584, 109
      %v3621 = vpop.permute.xlu0 %3620
      %3622 = vrot.lane.b32.xlu0 %v3585, 109
      %v3623 = vpop.permute.xlu0 %3622
      %3624 = vrot.lane.b32.xlu0 %v3586, 109
      %v3625 = vpop.permute.xlu0 %3624
      %3626 = vrot.lane.b32.xlu0 %v3587, 109
      %v3627 = vpop.permute.xlu0 %3626
      %3628 = vrot.lane.b32.xlu0 %v3588, 109
      %v3629 = vpop.permute.xlu0 %3628
      %3630 = vrot.lane.b32.xlu0 %v3589, 109
      %v3631 = vpop.permute.xlu0 %3630
      %3632 = vrot.lane.b32.xlu0 %v3590, 109
      %v3633 = vpop.permute.xlu0 %3632
      %3634 = vrot.lane.b32.xlu0 %v3591, 109
      %v3635 = vpop.permute.xlu0 %3634
      %3636 = vrot.lane.b32.xlu0 %v3592, 109
      %v3637 = vpop.permute.xlu0 %3636
      %3638 = vrot.lane.b32.xlu0 %v3593, 109
      %v3639 = vpop.permute.xlu0 %3638
      %3640 = vrot.lane.b32.xlu0 %v3594, 109
      %v3641 = vpop.permute.xlu0 %3640
      %3642 = vrot.lane.b32.xlu0 %v3595, 109
      %v3643 = vpop.permute.xlu0 %3642
      %v3644 = vsel %vm925, %v3613, %v3615
      %v3645 = vsel %vm925, %v3615, %v3617
      %v3646 = vsel %vm925, %v3617, %v3619
      %v3647 = vsel %vm925, %v3621, %v3623
      %v3648 = vsel %vm925, %v3623, %v3625
      %v3649 = vsel %vm925, %v3625, %v3627
      %v3650 = vsel %vm925, %v3629, %v3631
      %v3651 = vsel %vm925, %v3631, %v3633
      %v3652 = vsel %vm925, %v3633, %v3635
      %v3653 = vsel %vm925, %v3637, %v3639
      %v3654 = vsel %vm925, %v3639, %v3641
      %v3655 = vsel %vm925, %v3641, %v3643
      %3668 = vst [vmem:[#allocation5 + $0x300] sm:$0xff] %v3644
      %3669 = vst [vmem:[#allocation5 + $0x308] sm:$0xff] %v3645
      %3670 = vst [vmem:[#allocation5 + $0x310] sm:$0xff] %v3646
      %3671 = vst [vmem:[#allocation5 + $0x318] sm:$0xff] %v3647
      %3672 = vst [vmem:[#allocation5 + $0x320] sm:$0xff] %v3648
      %3673 = vst [vmem:[#allocation5 + $0x328] sm:$0xff] %v3649
      %3674 = vst [vmem:[#allocation5 + $0x330] sm:$0xff] %v3650
      %3675 = vst [vmem:[#allocation5 + $0x338] sm:$0xff] %v3651
      %3676 = vst [vmem:[#allocation5 + $0x340] sm:$0xff] %v3652
      %3677 = vst [vmem:[#allocation5 + $0x348] sm:$0xff] %v3653
      %3678 = vst [vmem:[#allocation5 + $0x350] sm:$0xff] %v3654
      %3679 = vst [vmem:[#allocation5 + $0x358] sm:$0xff] %v3655
      %v3680 = vld [vmem:[%s8] sm:$0xff]
      %v3681 = vld [vmem:[%s8 + $0x8] sm:$0xf]
      %v3682 = vld [vmem:[#allocation5] sm:$0xff]
      %v3683 = vld [vmem:[#allocation5 + $0x8] sm:$0xff]
      %v3684 = vld [vmem:[#allocation5 + $0x10] sm:$0xff]
      %v3685 = vld [vmem:[#allocation5 + $0x18] sm:$0xff]
      %v3686 = vld [vmem:[#allocation5 + $0x20] sm:$0xff]
      %v3687 = vld [vmem:[#allocation5 + $0x28] sm:$0xff]
      %v3688 = vld [vmem:[#allocation5 + $0x30] sm:$0xff]
      %v3689 = vld [vmem:[#allocation5 + $0x38] sm:$0xff]
      %v3690 = vld [vmem:[#allocation5 + $0x40] sm:$0xff]
      %v3691 = vld [vmem:[#allocation5 + $0x48] sm:$0xff]
      %v3692 = vld [vmem:[#allocation5 + $0x50] sm:$0xff]
      %v3693 = vld [vmem:[#allocation5 + $0x58] sm:$0xff]
      %v3694 = vld [vmem:[#allocation5 + $0x60] sm:$0xff]
      %v3695 = vld [vmem:[#allocation5 + $0x68] sm:$0xff]
      %v3696 = vld [vmem:[#allocation5 + $0x70] sm:$0xff]
      %v3697 = vld [vmem:[#allocation5 + $0x78] sm:$0xff]
      %v3698 = vld [vmem:[#allocation5 + $0x80] sm:$0xff]
      %v3699 = vld [vmem:[#allocation5 + $0x88] sm:$0xff]
      %v3700 = vld [vmem:[#allocation5 + $0x90] sm:$0xff]
      %v3701 = vld [vmem:[#allocation5 + $0x98] sm:$0xff]
      %v3702 = vld [vmem:[#allocation5 + $0xa0] sm:$0xff]
      %v3703 = vld [vmem:[#allocation5 + $0xa8] sm:$0xff]
      %v3704 = vld [vmem:[#allocation5 + $0xb0] sm:$0xff]
      %v3705 = vld [vmem:[#allocation5 + $0xb8] sm:$0xff]
      %v3706 = vld [vmem:[#allocation5 + $0xc0] sm:$0xff]
      %v3707 = vld [vmem:[#allocation5 + $0xc8] sm:$0xff]
      %v3708 = vld [vmem:[#allocation5 + $0xd0] sm:$0xff]
      %v3709 = vld [vmem:[#allocation5 + $0xd8] sm:$0xff]
      %v3710 = vld [vmem:[#allocation5 + $0xe0] sm:$0xff]
      %v3711 = vld [vmem:[#allocation5 + $0xe8] sm:$0xff]
      %v3712 = vld [vmem:[#allocation5 + $0xf0] sm:$0xff]
      %v3713 = vld [vmem:[#allocation5 + $0xf8] sm:$0xff]
      %v3714 = vld [vmem:[#allocation5 + $0x100] sm:$0xff]
      %v3715 = vld [vmem:[#allocation5 + $0x108] sm:$0xff]
      %v3716 = vld [vmem:[#allocation5 + $0x110] sm:$0xff]
      %v3717 = vld [vmem:[#allocation5 + $0x118] sm:$0xff]
      %v3718 = vld [vmem:[#allocation5 + $0x120] sm:$0xff]
      %v3719 = vld [vmem:[#allocation5 + $0x128] sm:$0xff]
      %v3720 = vld [vmem:[#allocation5 + $0x130] sm:$0xff]
      %v3721 = vld [vmem:[#allocation5 + $0x138] sm:$0xff]
      %v3722 = vld [vmem:[#allocation5 + $0x140] sm:$0xff]
      %v3723 = vld [vmem:[#allocation5 + $0x148] sm:$0xff]
      %v3724 = vld [vmem:[#allocation5 + $0x150] sm:$0xff]
      %v3725 = vld [vmem:[#allocation5 + $0x158] sm:$0xff]
      %v3726 = vld [vmem:[#allocation5 + $0x160] sm:$0xff]
      %v3727 = vld [vmem:[#allocation5 + $0x168] sm:$0xff]
      %v3728 = vld [vmem:[#allocation5 + $0x170] sm:$0xff]
      %v3729 = vld [vmem:[#allocation5 + $0x178] sm:$0xff]
      %v3730 = vld [vmem:[#allocation5 + $0x180] sm:$0xff]
      %v3731 = vld [vmem:[#allocation5 + $0x188] sm:$0xff]
      %v3732 = vld [vmem:[#allocation5 + $0x190] sm:$0xff]
      %v3733 = vld [vmem:[#allocation5 + $0x198] sm:$0xff]
      %v3734 = vld [vmem:[#allocation5 + $0x1a0] sm:$0xff]
      %v3735 = vld [vmem:[#allocation5 + $0x1a8] sm:$0xff]
      %v3736 = vld [vmem:[#allocation5 + $0x1b0] sm:$0xff]
      %v3737 = vld [vmem:[#allocation5 + $0x1b8] sm:$0xff]
      %v3738 = vld [vmem:[#allocation5 + $0x1c0] sm:$0xff]
      %v3739 = vld [vmem:[#allocation5 + $0x1c8] sm:$0xff]
      %v3740 = vld [vmem:[#allocation5 + $0x1d0] sm:$0xff]
      %v3741 = vld [vmem:[#allocation5 + $0x1d8] sm:$0xff]
      %v3742 = vld [vmem:[#allocation5 + $0x1e0] sm:$0xff]
      %v3743 = vld [vmem:[#allocation5 + $0x1e8] sm:$0xff]
      %v3744 = vld [vmem:[#allocation5 + $0x1f0] sm:$0xff]
      %v3745 = vld [vmem:[#allocation5 + $0x1f8] sm:$0xff]
      %v3746 = vld [vmem:[#allocation5 + $0x200] sm:$0xff]
      %v3747 = vld [vmem:[#allocation5 + $0x208] sm:$0xff]
      %v3748 = vld [vmem:[#allocation5 + $0x210] sm:$0xff]
      %v3749 = vld [vmem:[#allocation5 + $0x218] sm:$0xff]
      %v3750 = vld [vmem:[#allocation5 + $0x220] sm:$0xff]
      %v3751 = vld [vmem:[#allocation5 + $0x228] sm:$0xff]
      %v3752 = vld [vmem:[#allocation5 + $0x230] sm:$0xff]
      %v3753 = vld [vmem:[#allocation5 + $0x238] sm:$0xff]
      %v3754 = vld [vmem:[#allocation5 + $0x240] sm:$0xff]
      %v3755 = vld [vmem:[#allocation5 + $0x248] sm:$0xff]
      %v3756 = vld [vmem:[#allocation5 + $0x250] sm:$0xff]
      %v3757 = vld [vmem:[#allocation5 + $0x258] sm:$0xff]
      %v3758 = vld [vmem:[#allocation5 + $0x260] sm:$0xff]
      %v3759 = vld [vmem:[#allocation5 + $0x268] sm:$0xff]
      %v3760 = vld [vmem:[#allocation5 + $0x270] sm:$0xff]
      %v3761 = vld [vmem:[#allocation5 + $0x278] sm:$0xff]
      %v3762 = vld [vmem:[#allocation5 + $0x280] sm:$0xff]
      %v3763 = vld [vmem:[#allocation5 + $0x288] sm:$0xff]
      %v3764 = vld [vmem:[#allocation5 + $0x290] sm:$0xff]
      %v3765 = vld [vmem:[#allocation5 + $0x298] sm:$0xff]
      %v3766 = vld [vmem:[#allocation5 + $0x2a0] sm:$0xff]
      %v3767 = vld [vmem:[#allocation5 + $0x2a8] sm:$0xff]
      %v3768 = vld [vmem:[#allocation5 + $0x2b0] sm:$0xff]
      %v3769 = vld [vmem:[#allocation5 + $0x2b8] sm:$0xff]
      %v3770 = vld [vmem:[#allocation5 + $0x2c0] sm:$0xff]
      %v3771 = vld [vmem:[#allocation5 + $0x2c8] sm:$0xff]
      %v3772 = vld [vmem:[#allocation5 + $0x2d0] sm:$0xff]
      %v3773 = vld [vmem:[#allocation5 + $0x2d8] sm:$0xff]
      %v3774 = vld [vmem:[#allocation5 + $0x2e0] sm:$0xff]
      %v3775 = vld [vmem:[#allocation5 + $0x2e8] sm:$0xff]
      %v3776 = vld [vmem:[#allocation5 + $0x2f0] sm:$0xff]
      %v3777 = vld [vmem:[#allocation5 + $0x2f8] sm:$0xff]
      %v3778 = vld [vmem:[#allocation5 + $0x300] sm:$0xff]
      %v3779 = vld [vmem:[#allocation5 + $0x308] sm:$0xff]
      %v3780 = vld [vmem:[#allocation5 + $0x310] sm:$0xff]
      %v3781 = vld [vmem:[#allocation5 + $0x318] sm:$0xff]
      %v3782 = vld [vmem:[#allocation5 + $0x320] sm:$0xff]
      %v3783 = vld [vmem:[#allocation5 + $0x328] sm:$0xff]
      %v3784 = vld [vmem:[#allocation5 + $0x330] sm:$0xff]
      %v3785 = vld [vmem:[#allocation5 + $0x338] sm:$0xff]
      %v3786 = vld [vmem:[#allocation5 + $0x340] sm:$0xff]
      %v3787 = vld [vmem:[#allocation5 + $0x348] sm:$0xff]
      %v3788 = vld [vmem:[#allocation5 + $0x350] sm:$0xff]
      %v3789 = vld [vmem:[#allocation5 + $0x358] sm:$0xff]
      %v3790 = vld [vmem:[%s9] sm:$0xf]
      %3792 = vset.pattern.permute.xlu0 0
      %3793 = vperm.xlu0 %3792, %v3790
      %v3794 = vpop.permute.xlu0 %3793
      %v3798 = vcombine.high %v3680, %v3680
      %v3800 = vsel %vm2218, %v3681, 0
      %3802 = vmatprep.subr.mxu0 %v3728
      %3803 = vmatpush1.msra.mxu0 %v3727
      %3804 = vmatprep.subr.mxu0 %v3725
      %3805 = vmatpush1.msra.mxu0 %v3724
      %3806 = vmatprep.subr.mxu0 %v3722
      %3807 = vmatpush1.msra.mxu0 %v3721
      %3808 = vmatprep.subr.mxu0 %v3719
      %3809 = vmatpush1.msra.mxu0 %v3718
      %3810 = vmatprep.subr.mxu0 %v3716
      %3811 = vmatpush1.msra.mxu0 %v3715
      %3812 = vmatprep.subr.mxu0 %v3713
      %3813 = vmatpush1.msra.mxu0 %v3712
      %3814 = vmatprep.subr.mxu0 %v3710
      %3815 = vmatpush1.msra.mxu0 %v3709
      %3816 = vmatprep.subr.mxu0 %v3707
      %3817 = vmatpush1.msra.mxu0 %v3706
      %3818 = vmatprep.subr.mxu0 %v3704
      %3819 = vmatpush1.msra.mxu0 %v3703
      %3820 = vmatprep.subr.mxu0 %v3701
      %3821 = vmatpush1.msra.mxu0 %v3700
      %3822 = vmatprep.subr.mxu0 %v3698
      %3823 = vmatpush1.msra.mxu0 %v3697
      %3824 = vmatprep.subr.mxu0 %v3695
      %3825 = vmatpush1.msra.mxu0 %v3694
      %3826 = vmatprep.subr.mxu0 %v3692
      %3827 = vmatpush1.msra.mxu0 %v3691
      %3828 = vmatprep.subr.mxu0 %v3689
      %3829 = vmatpush1.msra.mxu0 %v3688
      %3830 = vmatprep.subr.mxu0 %v3686
      %3831 = vmatpush1.msra.mxu0 %v3685
      %3832 = vmatprep.subr.mxu0 %v3683
      %3833 = vmatpush1.msra.mxu0 %v3682
      %3834 = vmatprep.subr.mxu0 %v3776
      %3835 = vmatpush2.msra.mxu0 %v3775
      %3836 = vmatprep.subr.mxu0 %v3773
      %3837 = vmatpush2.msra.mxu0 %v3772
      %3838 = vmatprep.subr.mxu0 %v3770
      %3839 = vmatpush2.msra.mxu0 %v3769
      %3840 = vmatprep.subr.mxu0 %v3767
      %3841 = vmatpush2.msra.mxu0 %v3766
      %3842 = vmatprep.subr.mxu0 %v3764
      %3843 = vmatpush2.msra.mxu0 %v3763
      %3844 = vmatprep.subr.mxu0 %v3761
      %3845 = vmatpush2.msra.mxu0 %v3760
      %3846 = vmatprep.subr.mxu0 %v3758
      %3847 = vmatpush2.msra.mxu0 %v3757
      %3848 = vmatprep.subr.mxu0 %v3755
      %3849 = vmatpush2.msra.mxu0 %v3754
      %3850 = vmatprep.subr.mxu0 %v3752
      %3851 = vmatpush2.msra.mxu0 %v3751
      %3852 = vmatprep.subr.mxu0 %v3749
      %3853 = vmatpush2.msra.mxu0 %v3748
      %3854 = vmatprep.subr.mxu0 %v3746
      %3855 = vmatpush2.msra.mxu0 %v3745
      %3856 = vmatprep.subr.mxu0 %v3743
      %3857 = vmatpush2.msra.mxu0 %v3742
      %3858 = vmatprep.subr.mxu0 %v3740
      %3859 = vmatpush2.msra.mxu0 %v3739
      %3860 = vmatprep.subr.mxu0 %v3737
      %3861 = vmatpush2.msra.mxu0 %v3736
      %3862 = vmatprep.subr.mxu0 %v3734
      %3863 = vmatpush2.msra.mxu0 %v3733
      %3864 = vmatprep.subr.mxu0 %v3731
      %3865 = vmatpush2.msra.mxu0 %v3730
      %3866 = vmatprep.mubr.f32.mxu0 %v3798
      %3867 = vmatmul.mubr.f32.gmra.mxu0 %v3680
      %v3868 = vpop.f32.mrf.mxu0
      %v3869 = vadd.f32 %v3794, %v3868
      %v3870 = vpop.f32.mrf.mxu0
      %v3871 = vadd.f32 %v3794, %v3870
      %3872 = vdwg.mxu0
      %3873 = vmatprep.subr.mxu0 0.0
      %3874 = vmatpush1.msra.mxu0 0.0
      %3875 = vmatprep.subr.mxu0 0.0
      %3876 = vmatpush1.msra.mxu0 0.0
      %3877 = vmatprep.subr.mxu0 0.0
      %3878 = vmatpush1.msra.mxu0 0.0
      %3879 = vmatprep.subr.mxu0 0.0
      %3880 = vmatpush1.msra.mxu0 0.0
      %3881 = vmatprep.subr.mxu0 0.0
      %3882 = vmatpush1.msra.mxu0 0.0
      %3883 = vmatprep.subr.mxu0 0.0
      %3884 = vmatpush1.msra.mxu0 0.0
      %3885 = vmatprep.subr.mxu0 0.0
      %3886 = vmatpush1.msra.mxu0 0.0
      %3887 = vmatprep.subr.mxu0 0.0
      %3888 = vmatpush1.msra.mxu0 0.0
      %3889 = vmatprep.subr.mxu0 0.0
      %3890 = vmatpush1.msra.mxu0 0.0
      %3891 = vmatprep.subr.mxu0 0.0
      %3892 = vmatpush1.msra.mxu0 0.0
      %3893 = vmatprep.subr.mxu0 0.0
      %3894 = vmatpush1.msra.mxu0 0.0
      %3895 = vmatprep.subr.mxu0 0.0
      %3896 = vmatpush1.msra.mxu0 0.0
      %3897 = vmatprep.subr.mxu0 %v3788
      %3898 = vmatpush1.msra.mxu0 %v3787
      %3899 = vmatprep.subr.mxu0 %v3785
      %3900 = vmatpush1.msra.mxu0 %v3784
      %3901 = vmatprep.subr.mxu0 %v3782
      %3902 = vmatpush1.msra.mxu0 %v3781
      %3903 = vmatprep.subr.mxu0 %v3779
      %3904 = vmatpush1.msra.mxu0 %v3778
      %3905 = vmatprep.subr.mxu0 0.0
      %3906 = vmatpush2.msra.mxu0 0.0
      %3907 = vmatprep.subr.mxu0 0.0
      %3908 = vmatpush2.msra.mxu0 0.0
      %3909 = vmatprep.subr.mxu0 0.0
      %3910 = vmatpush2.msra.mxu0 0.0
      %3911 = vmatprep.subr.mxu0 0.0
      %3912 = vmatpush2.msra.mxu0 0.0
      %3913 = vmatprep.subr.mxu0 0.0
      %3914 = vmatpush2.msra.mxu0 0.0
      %3915 = vmatprep.subr.mxu0 0.0
      %3916 = vmatpush2.msra.mxu0 0.0
      %3917 = vmatprep.subr.mxu0 0.0
      %3918 = vmatpush2.msra.mxu0 0.0
      %3919 = vmatprep.subr.mxu0 0.0
      %3920 = vmatpush2.msra.mxu0 0.0
      %3921 = vmatprep.subr.mxu0 0.0
      %3922 = vmatpush2.msra.mxu0 0.0
      %3923 = vmatprep.subr.mxu0 0.0
      %3924 = vmatpush2.msra.mxu0 0.0
      %3925 = vmatprep.subr.mxu0 0.0
      %3926 = vmatpush2.msra.mxu0 0.0
      %3927 = vmatprep.subr.mxu0 0.0
      %3928 = vmatpush2.msra.mxu0 0.0
      %3929 = vmatprep.subr.mxu0 0.0
      %3930 = vmatpush2.msra.mxu0 0.0
      %3931 = vmatprep.subr.mxu0 0.0
      %3932 = vmatpush2.msra.mxu0 0.0
      %3933 = vmatprep.subr.mxu0 0.0
      %3934 = vmatpush2.msra.mxu0 0.0
      %3935 = vmatprep.subr.mxu0 0.0
      %3936 = vmatpush2.msra.mxu0 0.0
      %3937 = vmatprep.mubr.f32.mxu0 0.0
      %3938 = vmatmul.mubr.f32.gmra.mxu0 %v3800
      %v3939 = vpop.f32.mrf.mxu0
      %v3940 = vadd.f32 %v3869, %v3939
      %v3941 = vpop.f32.mrf.mxu0
      %v3942 = vadd.f32 %v3871, %v3941
      %3943 = vdwg.mxu0
      %3944 = vmatprep.subr.mxu0 0.0
      %3945 = vmatpush1.msra.mxu0 %v3729
      %3946 = vmatprep.subr.mxu0 0.0
      %3947 = vmatpush1.msra.mxu0 %v3726
      %3948 = vmatprep.subr.mxu0 0.0
      %3949 = vmatpush1.msra.mxu0 %v3723
      %3950 = vmatprep.subr.mxu0 0.0
      %3951 = vmatpush1.msra.mxu0 %v3720
      %3952 = vmatprep.subr.mxu0 0.0
      %3953 = vmatpush1.msra.mxu0 %v3717
      %3954 = vmatprep.subr.mxu0 0.0
      %3955 = vmatpush1.msra.mxu0 %v3714
      %3956 = vmatprep.subr.mxu0 0.0
      %3957 = vmatpush1.msra.mxu0 %v3711
      %3958 = vmatprep.subr.mxu0 0.0
      %3959 = vmatpush1.msra.mxu0 %v3708
      %3960 = vmatprep.subr.mxu0 0.0
      %3961 = vmatpush1.msra.mxu0 %v3705
      %3962 = vmatprep.subr.mxu0 0.0
      %3963 = vmatpush1.msra.mxu0 %v3702
      %3964 = vmatprep.subr.mxu0 0.0
      %3965 = vmatpush1.msra.mxu0 %v3699
      %3966 = vmatprep.subr.mxu0 0.0
      %3967 = vmatpush1.msra.mxu0 %v3696
      %3968 = vmatprep.subr.mxu0 0.0
      %3969 = vmatpush1.msra.mxu0 %v3693
      %3970 = vmatprep.subr.mxu0 0.0
      %3971 = vmatpush1.msra.mxu0 %v3690
      %3972 = vmatprep.subr.mxu0 0.0
      %3973 = vmatpush1.msra.mxu0 %v3687
      %3974 = vmatprep.subr.mxu0 0.0
      %3975 = vmatpush1.msra.mxu0 %v3684
      %3976 = vmatprep.subr.mxu0 0.0
      %3977 = vmatpush2.msra.mxu0 %v3777
      %3978 = vmatprep.subr.mxu0 0.0
      %3979 = vmatpush2.msra.mxu0 %v3774
      %3980 = vmatprep.subr.mxu0 0.0
      %3981 = vmatpush2.msra.mxu0 %v3771
      %3982 = vmatprep.subr.mxu0 0.0
      %3983 = vmatpush2.msra.mxu0 %v3768
      %3984 = vmatprep.subr.mxu0 0.0
      %3985 = vmatpush2.msra.mxu0 %v3765
      %3986 = vmatprep.subr.mxu0 0.0
      %3987 = vmatpush2.msra.mxu0 %v3762
      %3988 = vmatprep.subr.mxu0 0.0
      %3989 = vmatpush2.msra.mxu0 %v3759
      %3990 = vmatprep.subr.mxu0 0.0
      %3991 = vmatpush2.msra.mxu0 %v3756
      %3992 = vmatprep.subr.mxu0 0.0
      %3993 = vmatpush2.msra.mxu0 %v3753
      %3994 = vmatprep.subr.mxu0 0.0
      %3995 = vmatpush2.msra.mxu0 %v3750
      %3996 = vmatprep.subr.mxu0 0.0
      %3997 = vmatpush2.msra.mxu0 %v3747
      %3998 = vmatprep.subr.mxu0 0.0
      %3999 = vmatpush2.msra.mxu0 %v3744
      %4000 = vmatprep.subr.mxu0 0.0
      %4001 = vmatpush2.msra.mxu0 %v3741
      %4002 = vmatprep.subr.mxu0 0.0
      %4003 = vmatpush2.msra.mxu0 %v3738
      %4004 = vmatprep.subr.mxu0 0.0
      %4005 = vmatpush2.msra.mxu0 %v3735
      %4006 = vmatprep.subr.mxu0 0.0
      %4007 = vmatpush2.msra.mxu0 %v3732
      %4008 = vmatprep.mubr.f32.mxu0 %v3798
      %4009 = vmatmul.mubr.f32.gmra.mxu0 %v3680
      %v4010 = vpop.f32.mrf.mxu0
      %v4011 = vadd.f32 %v3794, %v4010
      %v4012 = vpop.f32.mrf.mxu0
      %4013 = vdwg.mxu0
      %4014 = vmatprep.subr.mxu0 0.0
      %4015 = vmatpush1.msra.mxu0 0.0
      %4016 = vmatprep.subr.mxu0 0.0
      %4017 = vmatpush1.msra.mxu0 0.0
      %4018 = vmatprep.subr.mxu0 0.0
      %4019 = vmatpush1.msra.mxu0 0.0
      %4020 = vmatprep.subr.mxu0 0.0
      %4021 = vmatpush1.msra.mxu0 0.0
      %4022 = vmatprep.subr.mxu0 0.0
      %4023 = vmatpush1.msra.mxu0 0.0
      %4024 = vmatprep.subr.mxu0 0.0
      %4025 = vmatpush1.msra.mxu0 0.0
      %4026 = vmatprep.subr.mxu0 0.0
      %4027 = vmatpush1.msra.mxu0 0.0
      %4028 = vmatprep.subr.mxu0 0.0
      %4029 = vmatpush1.msra.mxu0 0.0
      %4030 = vmatprep.subr.mxu0 0.0
      %4031 = vmatpush1.msra.mxu0 0.0
      %4032 = vmatprep.subr.mxu0 0.0
      %4033 = vmatpush1.msra.mxu0 0.0
      %4034 = vmatprep.subr.mxu0 0.0
      %4035 = vmatpush1.msra.mxu0 0.0
      %4036 = vmatprep.subr.mxu0 0.0
      %4037 = vmatpush1.msra.mxu0 0.0
      %4038 = vmatprep.subr.mxu0 0.0
      %4039 = vmatpush1.msra.mxu0 %v3789
      %4040 = vmatprep.subr.mxu0 0.0
      %4041 = vmatpush1.msra.mxu0 %v3786
      %4042 = vmatprep.subr.mxu0 0.0
      %4043 = vmatpush1.msra.mxu0 %v3783
      %4044 = vmatprep.subr.mxu0 0.0
      %4045 = vmatpush1.msra.mxu0 %v3780
      %4046 = vmatprep.subr.mxu0 0.0
      %4047 = vmatpush2.msra.mxu0 0.0
      %4048 = vmatprep.subr.mxu0 0.0
      %4049 = vmatpush2.msra.mxu0 0.0
      %4050 = vmatprep.subr.mxu0 0.0
      %4051 = vmatpush2.msra.mxu0 0.0
      %4052 = vmatprep.subr.mxu0 0.0
      %4053 = vmatpush2.msra.mxu0 0.0
      %4054 = vmatprep.subr.mxu0 0.0
      %4055 = vmatpush2.msra.mxu0 0.0
      %4056 = vmatprep.subr.mxu0 0.0
      %4057 = vmatpush2.msra.mxu0 0.0
      %4058 = vmatprep.subr.mxu0 0.0
      %4059 = vmatpush2.msra.mxu0 0.0
      %4060 = vmatprep.subr.mxu0 0.0
      %4061 = vmatpush2.msra.mxu0 0.0
      %4062 = vmatprep.subr.mxu0 0.0
      %4063 = vmatpush2.msra.mxu0 0.0
      %4064 = vmatprep.subr.mxu0 0.0
      %4065 = vmatpush2.msra.mxu0 0.0
      %4066 = vmatprep.subr.mxu0 0.0
      %4067 = vmatpush2.msra.mxu0 0.0
      %4068 = vmatprep.subr.mxu0 0.0
      %4069 = vmatpush2.msra.mxu0 0.0
      %4070 = vmatprep.subr.mxu0 0.0
      %4071 = vmatpush2.msra.mxu0 0.0
      %4072 = vmatprep.subr.mxu0 0.0
      %4073 = vmatpush2.msra.mxu0 0.0
      %4074 = vmatprep.subr.mxu0 0.0
      %4075 = vmatpush2.msra.mxu0 0.0
      %4076 = vmatprep.subr.mxu0 0.0
      %4077 = vmatpush2.msra.mxu0 0.0
      %4078 = vmatprep.mubr.f32.mxu0 0.0
      %4079 = vmatmul.mubr.f32.gmra.mxu0 %v3800
      %v4080 = vpop.f32.mrf.mxu0
      %v4081 = vadd.f32 %v4011, %v4080
      %v4082 = vpop.f32.mrf.mxu0
      %4083 = vdwg.mxu0
      %vm4084 = vcmp.ge.f32.partialorder %v3940, 0.0
      %vm4085 = vcmp.ge.f32.partialorder %v3942, 0.0
      %vm4086 = vcmp.ge.f32.partialorder %v4081, 0.0
      %v4087 = vmul.f32 %v3940, 0.2
      %v4088 = vmul.f32 %v3942, 0.2
      %v4089 = vmul.f32 %v4081, 0.2
      %v4090 = vsel %vm4084, %v3940, %v4087
      %v4091 = vsel %vm4085, %v3942, %v4088
      %v4092 = vsel %vm4086, %v4081, %v4089
      %v4093 = vmul.f32 %v4090, %v1214
      %v4094 = vmul.f32 %v4091, %v1218
      %v4095 = vmul.f32 %v4092, %v1222
      %v4098 = vcombine.low %v4093, %v4094
      %4100 = vst [vmem:[#allocation4 + $0x4] sm:$0xff] %v4098
      %4101 = vst [vmem:[#allocation4 + $0xc] sm:$0xf] %v4095
      %v4102 = vld [vmem:[#allocation4] sm:$0xff]
      %v4103 = vld [vmem:[#allocation4 + $0x8] sm:$0xff]
      %v4106 = vcombine.high %v4102, %v4102
      %v4107 = vcombine.high %v4103, %v4103
      %4108 = vrot.lane.b32.xlu0 %v4102, 19
      %v4109 = vpop.permute.xlu0 %4108
      %4110 = vrot.lane.b32.xlu0 %v4106, 19
      %v4111 = vpop.permute.xlu0 %4110
      %4112 = vrot.lane.b32.xlu0 %v4103, 19
      %v4113 = vpop.permute.xlu0 %4112
      %4114 = vrot.lane.b32.xlu0 %v4107, 19
      %v4115 = vpop.permute.xlu0 %4114
      %v4116 = vsel %vm749, %v4109, %v4111
      %v4117 = vsel %vm749, %v4111, %v4113
      %v4118 = vsel %vm749, %v4113, %v4115
      %4122 = vst [vmem:[#allocation5] sm:$0xf] %v4116
      %4123 = vst [vmem:[#allocation5 + $0x8] sm:$0xf] %v4117
      %4124 = vst [vmem:[#allocation5 + $0x10] sm:$0xf] %v4118
      %v4125 = vld [vmem:[#allocation4] sm:$0xff]
      %v4126 = vld [vmem:[#allocation4 + $0x8] sm:$0xff]
      %v4129 = vcombine.low %v4125, %v4125
      %v4130 = vcombine.low %v4126, %v4126
      %4131 = vrot.lane.b32.xlu0 %v4129, 18
      %v4132 = vpop.permute.xlu0 %4131
      %4133 = vrot.lane.b32.xlu0 %v4125, 18
      %v4134 = vpop.permute.xlu0 %4133
      %4135 = vrot.lane.b32.xlu0 %v4130, 18
      %v4136 = vpop.permute.xlu0 %4135
      %4137 = vrot.lane.b32.xlu0 %v4126, 18
      %v4138 = vpop.permute.xlu0 %4137
      %v4139 = vsel %vm773, %v4132, %v4134
      %v4140 = vsel %vm773, %v4134, %v4136
      %v4141 = vsel %vm773, %v4136, %v4138
      %4145 = vst [vmem:[#allocation5] sm:$0xf0] %v4139
      %4146 = vst [vmem:[#allocation5 + $0x8] sm:$0xf0] %v4140
      %4147 = vst [vmem:[#allocation5 + $0x10] sm:$0xf0] %v4141
      %v4148 = vld [vmem:[#allocation4] sm:$0xff]
      %v4149 = vld [vmem:[#allocation4 + $0x8] sm:$0xff]
      %v4152 = vcombine.high %v4148, %v4148
      %v4153 = vcombine.high %v4149, %v4149
      %4154 = vrot.lane.b32.xlu0 %v4148, 17
      %v4155 = vpop.permute.xlu0 %4154
      %4156 = vrot.lane.b32.xlu0 %v4152, 17
      %v4157 = vpop.permute.xlu0 %4156
      %4158 = vrot.lane.b32.xlu0 %v4149, 17
      %v4159 = vpop.permute.xlu0 %4158
      %4160 = vrot.lane.b32.xlu0 %v4153, 17
      %v4161 = vpop.permute.xlu0 %4160
      %v4162 = vsel %vm797, %v4155, %v4157
      %v4163 = vsel %vm797, %v4157, %v4159
      %v4164 = vsel %vm797, %v4159, %v4161
      %4168 = vst [vmem:[#allocation5 + $0x18] sm:$0xf] %v4162
      %4169 = vst [vmem:[#allocation5 + $0x20] sm:$0xf] %v4163
      %4170 = vst [vmem:[#allocation5 + $0x28] sm:$0xf] %v4164
      %v4171 = vld [vmem:[#allocation4] sm:$0xff]
      %v4172 = vld [vmem:[#allocation4 + $0x8] sm:$0xff]
      %v4175 = vcombine.low %v4171, %v4171
      %v4176 = vcombine.low %v4172, %v4172
      %4177 = vrot.lane.b32.xlu0 %v4175, 1
      %v4178 = vpop.permute.xlu0 %4177
      %4179 = vrot.lane.b32.xlu0 %v4171, 1
      %v4180 = vpop.permute.xlu0 %4179
      %4181 = vrot.lane.b32.xlu0 %v4176, 1
      %v4182 = vpop.permute.xlu0 %4181
      %4183 = vrot.lane.b32.xlu0 %v4172, 1
      %v4184 = vpop.permute.xlu0 %4183
      %v4185 = vsel %vm821, %v4178, %v4180
      %v4186 = vsel %vm821, %v4180, %v4182
      %v4187 = vsel %vm821, %v4182, %v4184
      %4191 = vst [vmem:[#allocation5 + $0x18] sm:$0xf0] %v4185
      %4192 = vst [vmem:[#allocation5 + $0x20] sm:$0xf0] %v4186
      %4193 = vst [vmem:[#allocation5 + $0x28] sm:$0xf0] %v4187
      %v4194 = vld [vmem:[#allocation4 + $0x4] sm:$0xff]
      %v4195 = vld [vmem:[#allocation4 + $0xc] sm:$0xf]
      %v4197 = vcombine.high %v4194, %v4194
      %4199 = vst [vmem:[#allocation5 + $0x30] sm:$0xf] %v4194
      %4200 = vst [vmem:[#allocation5 + $0x38] sm:$0xf] %v4197
      %4201 = vst [vmem:[#allocation5 + $0x40] sm:$0xf] %v4195
      %v4202 = vld [vmem:[#allocation4 + $0x4] sm:$0xff]
      %v4203 = vld [vmem:[#allocation4 + $0xc] sm:$0xff]
      %v4206 = vcombine.low %v4202, %v4202
      %v4207 = vcombine.low %v4203, %v4203
      %4208 = vrot.lane.b32.xlu0 %v4206, 127
      %v4209 = vpop.permute.xlu0 %4208
      %4210 = vrot.lane.b32.xlu0 %v4202, 127
      %v4211 = vpop.permute.xlu0 %4210
      %4212 = vrot.lane.b32.xlu0 %v4207, 127
      %v4213 = vpop.permute.xlu0 %4212
      %4214 = vrot.lane.b32.xlu0 %v4203, 127
      %v4215 = vpop.permute.xlu0 %4214
      %v4216 = vsel %vm853, %v4209, %v4211
      %v4217 = vsel %vm853, %v4211, %v4213
      %v4218 = vsel %vm853, %v4213, %v4215
      %4222 = vst [vmem:[#allocation5 + $0x30] sm:$0xf0] %v4216
      %4223 = vst [vmem:[#allocation5 + $0x38] sm:$0xf0] %v4217
      %4224 = vst [vmem:[#allocation5 + $0x40] sm:$0xf0] %v4218
      %v4225 = vld [vmem:[#allocation4 + $0x4] sm:$0xff]
      %v4226 = vld [vmem:[#allocation4 + $0xc] sm:$0xff]
      %v4229 = vcombine.high %v4225, %v4225
      %v4230 = vcombine.high %v4226, %v4226
      %4231 = vrot.lane.b32.xlu0 %v4225, 111
      %v4232 = vpop.permute.xlu0 %4231
      %4233 = vrot.lane.b32.xlu0 %v4229, 111
      %v4234 = vpop.permute.xlu0 %4233
      %4235 = vrot.lane.b32.xlu0 %v4226, 111
      %v4236 = vpop.permute.xlu0 %4235
      %4237 = vrot.lane.b32.xlu0 %v4230, 111
      %v4238 = vpop.permute.xlu0 %4237
      %v4239 = vsel %vm877, %v4232, %v4234
      %v4240 = vsel %vm877, %v4234, %v4236
      %v4241 = vsel %vm877, %v4236, %v4238
      %4245 = vst [vmem:[#allocation5 + $0x48] sm:$0xf] %v4239
      %4246 = vst [vmem:[#allocation5 + $0x50] sm:$0xf] %v4240
      %4247 = vst [vmem:[#allocation5 + $0x58] sm:$0xf] %v4241
      %v4248 = vld [vmem:[#allocation4 + $0x4] sm:$0xff]
      %v4249 = vld [vmem:[#allocation4 + $0xc] sm:$0xff]
      %v4252 = vcombine.low %v4248, %v4248
      %v4253 = vcombine.low %v4249, %v4249
      %4254 = vrot.lane.b32.xlu0 %v4252, 110
      %v4255 = vpop.permute.xlu0 %4254
      %4256 = vrot.lane.b32.xlu0 %v4248, 110
      %v4257 = vpop.permute.xlu0 %4256
      %4258 = vrot.lane.b32.xlu0 %v4253, 110
      %v4259 = vpop.permute.xlu0 %4258
      %4260 = vrot.lane.b32.xlu0 %v4249, 110
      %v4261 = vpop.permute.xlu0 %4260
      %v4262 = vsel %vm901, %v4255, %v4257
      %v4263 = vsel %vm901, %v4257, %v4259
      %v4264 = vsel %vm901, %v4259, %v4261
      %4268 = vst [vmem:[#allocation5 + $0x48] sm:$0xf0] %v4262
      %4269 = vst [vmem:[#allocation5 + $0x50] sm:$0xf0] %v4263
      %4270 = vst [vmem:[#allocation5 + $0x58] sm:$0xf0] %v4264
      %v4271 = vld [vmem:[#allocation4 + $0x4] sm:$0xff]
      %v4272 = vld [vmem:[#allocation4 + $0xc] sm:$0xff]
      %v4275 = vcombine.high %v4271, %v4271
      %v4276 = vcombine.high %v4272, %v4272
      %4277 = vrot.lane.b32.xlu0 %v4271, 109
      %v4278 = vpop.permute.xlu0 %4277
      %4279 = vrot.lane.b32.xlu0 %v4275, 109
      %v4280 = vpop.permute.xlu0 %4279
      %4281 = vrot.lane.b32.xlu0 %v4272, 109
      %v4282 = vpop.permute.xlu0 %4281
      %4283 = vrot.lane.b32.xlu0 %v4276, 109
      %v4284 = vpop.permute.xlu0 %4283
      %v4285 = vsel %vm925, %v4278, %v4280
      %v4286 = vsel %vm925, %v4280, %v4282
      %v4287 = vsel %vm925, %v4282, %v4284
      %4291 = vst [vmem:[#allocation5 + $0x60] sm:$0xf] %v4285
      %4292 = vst [vmem:[#allocation5 + $0x68] sm:$0xf] %v4286
      %4293 = vst [vmem:[#allocation5 + $0x70] sm:$0xf] %v4287
      %v4294 = vld [vmem:[%s10] sm:$0xf]
      %v4295 = vld [vmem:[#allocation5] sm:$0xff]
      %v4296 = vld [vmem:[#allocation5 + $0x8] sm:$0xff]
      %v4297 = vld [vmem:[#allocation5 + $0x10] sm:$0xff]
      %v4298 = vld [vmem:[#allocation5 + $0x18] sm:$0xff]
      %v4299 = vld [vmem:[#allocation5 + $0x20] sm:$0xff]
      %v4300 = vld [vmem:[#allocation5 + $0x28] sm:$0xff]
      %v4301 = vld [vmem:[#allocation5 + $0x30] sm:$0xff]
      %v4302 = vld [vmem:[#allocation5 + $0x38] sm:$0xff]
      %v4303 = vld [vmem:[#allocation5 + $0x40] sm:$0xff]
      %v4304 = vld [vmem:[#allocation5 + $0x48] sm:$0xff]
      %v4305 = vld [vmem:[#allocation5 + $0x50] sm:$0xff]
      %v4306 = vld [vmem:[#allocation5 + $0x58] sm:$0xff]
      %v4307 = vld [vmem:[#allocation5 + $0x60] sm:$0xf]
      %v4308 = vld [vmem:[#allocation5 + $0x68] sm:$0xf]
      %v4309 = vld [vmem:[#allocation5 + $0x70] sm:$0xf]
      %v4310 = vld [vmem:[%s11] sm:$0xf]
      %4312 = vset.pattern.permute.xlu0 0
      %4313 = vperm.xlu0 %4312, %v4310
      %v4314 = vpop.permute.xlu0 %4313
      %v4317 = vsel %vm978, %v4294, 0
      %v4320 = vsel %vm543, %v4307, 0
      %v4323 = vsel %vm543, %v4308, 0
      %v4326 = vsel %vm543, %v4309, 0
      %4328 = vmatprep.subr.mxu0 0.0
      %4329 = vmatpush1.msra.mxu0 0.0
      %4330 = vmatprep.subr.mxu0 0.0
      %4331 = vmatpush1.msra.mxu0 0.0
      %4332 = vmatprep.subr.mxu0 0.0
      %4333 = vmatpush1.msra.mxu0 0.0
      %4334 = vmatprep.subr.mxu0 0.0
      %4335 = vmatpush1.msra.mxu0 0.0
      %4336 = vmatprep.subr.mxu0 0.0
      %4337 = vmatpush1.msra.mxu0 0.0
      %4338 = vmatprep.subr.mxu0 0.0
      %4339 = vmatpush1.msra.mxu0 0.0
      %4340 = vmatprep.subr.mxu0 0.0
      %4341 = vmatpush1.msra.mxu0 0.0
      %4342 = vmatprep.subr.mxu0 0.0
      %4343 = vmatpush1.msra.mxu0 0.0
      %4344 = vmatprep.subr.mxu0 0.0
      %4345 = vmatpush1.msra.mxu0 0.0
      %4346 = vmatprep.subr.mxu0 0.0
      %4347 = vmatpush1.msra.mxu0 0.0
      %4348 = vmatprep.subr.mxu0 0.0
      %4349 = vmatpush1.msra.mxu0 0.0
      %4350 = vmatprep.subr.mxu0 %v4323
      %4351 = vmatpush1.msra.mxu0 %v4320
      %4352 = vmatprep.subr.mxu0 %v4305
      %4353 = vmatpush1.msra.mxu0 %v4304
      %4354 = vmatprep.subr.mxu0 %v4302
      %4355 = vmatpush1.msra.mxu0 %v4301
      %4356 = vmatprep.subr.mxu0 %v4299
      %4357 = vmatpush1.msra.mxu0 %v4298
      %4358 = vmatprep.subr.mxu0 %v4296
      %4359 = vmatpush1.msra.mxu0 %v4295
      %4360 = vmatprep.subr.mxu0 0.0
      %4361 = vmatpush2.msra.mxu0 0.0
      %4362 = vmatprep.subr.mxu0 0.0
      %4363 = vmatpush2.msra.mxu0 0.0
      %4364 = vmatprep.subr.mxu0 0.0
      %4365 = vmatpush2.msra.mxu0 0.0
      %4366 = vmatprep.subr.mxu0 0.0
      %4367 = vmatpush2.msra.mxu0 0.0
      %4368 = vmatprep.subr.mxu0 0.0
      %4369 = vmatpush2.msra.mxu0 0.0
      %4370 = vmatprep.subr.mxu0 0.0
      %4371 = vmatpush2.msra.mxu0 0.0
      %4372 = vmatprep.subr.mxu0 0.0
      %4373 = vmatpush2.msra.mxu0 0.0
      %4374 = vmatprep.subr.mxu0 0.0
      %4375 = vmatpush2.msra.mxu0 0.0
      %4376 = vmatprep.subr.mxu0 0.0
      %4377 = vmatpush2.msra.mxu0 0.0
      %4378 = vmatprep.subr.mxu0 0.0
      %4379 = vmatpush2.msra.mxu0 0.0
      %4380 = vmatprep.subr.mxu0 0.0
      %4381 = vmatpush2.msra.mxu0 0.0
      %4382 = vmatprep.subr.mxu0 0.0
      %4383 = vmatpush2.msra.mxu0 0.0
      %4384 = vmatprep.subr.mxu0 0.0
      %4385 = vmatpush2.msra.mxu0 0.0
      %4386 = vmatprep.subr.mxu0 0.0
      %4387 = vmatpush2.msra.mxu0 0.0
      %4388 = vmatprep.subr.mxu0 0.0
      %4389 = vmatpush2.msra.mxu0 0.0
      %4390 = vmatprep.subr.mxu0 0.0
      %4391 = vmatpush2.msra.mxu0 0.0
      %4392 = vmatprep.mubr.f32.mxu0 0.0
      %4393 = vmatmul.mubr.f32.gmra.mxu0 %v4317
      %v4394 = vpop.f32.mrf.mxu0
      %v4395 = vadd.f32 %v4314, %v4394
      %v4396 = vpop.f32.mrf.mxu0
      %v4397 = vadd.f32 %v4314, %v4396
      %4398 = vdwg.mxu0
      %4399 = vmatprep.subr.mxu0 0.0
      %4400 = vmatpush1.msra.mxu0 0.0
      %4401 = vmatprep.subr.mxu0 0.0
      %4402 = vmatpush1.msra.mxu0 0.0
      %4403 = vmatprep.subr.mxu0 0.0
      %4404 = vmatpush1.msra.mxu0 0.0
      %4405 = vmatprep.subr.mxu0 0.0
      %4406 = vmatpush1.msra.mxu0 0.0
      %4407 = vmatprep.subr.mxu0 0.0
      %4408 = vmatpush1.msra.mxu0 0.0
      %4409 = vmatprep.subr.mxu0 0.0
      %4410 = vmatpush1.msra.mxu0 0.0
      %4411 = vmatprep.subr.mxu0 0.0
      %4412 = vmatpush1.msra.mxu0 0.0
      %4413 = vmatprep.subr.mxu0 0.0
      %4414 = vmatpush1.msra.mxu0 0.0
      %4415 = vmatprep.subr.mxu0 0.0
      %4416 = vmatpush1.msra.mxu0 0.0
      %4417 = vmatprep.subr.mxu0 0.0
      %4418 = vmatpush1.msra.mxu0 0.0
      %4419 = vmatprep.subr.mxu0 0.0
      %4420 = vmatpush1.msra.mxu0 0.0
      %4421 = vmatprep.subr.mxu0 0.0
      %4422 = vmatpush1.msra.mxu0 %v4326
      %4423 = vmatprep.subr.mxu0 0.0
      %4424 = vmatpush1.msra.mxu0 %v4306
      %4425 = vmatprep.subr.mxu0 0.0
      %4426 = vmatpush1.msra.mxu0 %v4303
      %4427 = vmatprep.subr.mxu0 0.0
      %4428 = vmatpush1.msra.mxu0 %v4300
      %4429 = vmatprep.subr.mxu0 0.0
      %4430 = vmatpush1.msra.mxu0 %v4297
      %4431 = vmatprep.subr.mxu0 0.0
      %4432 = vmatpush2.msra.mxu0 0.0
      %4433 = vmatprep.subr.mxu0 0.0
      %4434 = vmatpush2.msra.mxu0 0.0
      %4435 = vmatprep.subr.mxu0 0.0
      %4436 = vmatpush2.msra.mxu0 0.0
      %4437 = vmatprep.subr.mxu0 0.0
      %4438 = vmatpush2.msra.mxu0 0.0
      %4439 = vmatprep.subr.mxu0 0.0
      %4440 = vmatpush2.msra.mxu0 0.0
      %4441 = vmatprep.subr.mxu0 0.0
      %4442 = vmatpush2.msra.mxu0 0.0
      %4443 = vmatprep.subr.mxu0 0.0
      %4444 = vmatpush2.msra.mxu0 0.0
      %4445 = vmatprep.subr.mxu0 0.0
      %4446 = vmatpush2.msra.mxu0 0.0
      %4447 = vmatprep.subr.mxu0 0.0
      %4448 = vmatpush2.msra.mxu0 0.0
      %4449 = vmatprep.subr.mxu0 0.0
      %4450 = vmatpush2.msra.mxu0 0.0
      %4451 = vmatprep.subr.mxu0 0.0
      %4452 = vmatpush2.msra.mxu0 0.0
      %4453 = vmatprep.subr.mxu0 0.0
      %4454 = vmatpush2.msra.mxu0 0.0
      %4455 = vmatprep.subr.mxu0 0.0
      %4456 = vmatpush2.msra.mxu0 0.0
      %4457 = vmatprep.subr.mxu0 0.0
      %4458 = vmatpush2.msra.mxu0 0.0
      %4459 = vmatprep.subr.mxu0 0.0
      %4460 = vmatpush2.msra.mxu0 0.0
      %4461 = vmatprep.subr.mxu0 0.0
      %4462 = vmatpush2.msra.mxu0 0.0
      %4463 = vmatprep.mubr.f32.mxu0 0.0
      %4464 = vmatmul.mubr.f32.gmra.mxu0 %v4317
      %v4465 = vpop.f32.mrf.mxu0
      %v4466 = vadd.f32 %v4314, %v4465
      %v4467 = vpop.f32.mrf.mxu0
      %4468 = vdwg.mxu0
      %vm4469 = vcmp.ge.f32.partialorder %v4395, 0.0
      %vm4470 = vcmp.ge.f32.partialorder %v4397, 0.0
      %vm4471 = vcmp.ge.f32.partialorder %v4466, 0.0
      %v4472 = vmul.f32 %v4395, 0.2
      %v4473 = vmul.f32 %v4397, 0.2
      %v4474 = vmul.f32 %v4466, 0.2
      %v4475 = vsel %vm4469, %v4395, %v4472
      %v4476 = vsel %vm4470, %v4397, %v4473
      %v4477 = vsel %vm4471, %v4466, %v4474
      %v4478 = vadd.f32 %v4475, %v2782
      %v4479 = vadd.f32 %v4476, %v2784
      %v4480 = vadd.f32 %v4477, %v2853
      %v4481 = vadd.f32 %v4478, %v617
      %v4482 = vadd.f32 %v4479, %v619
      %v4483 = vadd.f32 %v4480, %v712
      %v4486 = vcombine.low %v4481, %v4482
      %4488 = vst [vmem:[%s467] sm:$0xff] %v4486
      %4489 = vst [vmem:[%s467 + $0x8] sm:$0xf] %v4483
      %p4490 = scmp.lt.s32.totalorder %s25, 1
      %s4491 = scalar_select %p4490, %s25, 1
      %s4492 = smul.addr %s4491, 3
      %s4493 = smul.addr %s4492, 4
      %s4494 = scalar_lea.vmem %s14, %s4493
      // Predicated region
      $region77: #{hinet_skip_block.1} parent=75 // pred_check
        %p4495 = pneg %p342
      $region78: #{hinet_skip_block.1} parent=75 // pred_check_branch
        %4497 = sbr.rel (%p4495) target = $region80
      $region79: #{hinet_skip_block.1} parent=75 // pred_region
        _
      $region80: #{hinet_skip_block.1} parent=75 // pred_fallthru
        _
    $region76: #{hinet_skip_block.1} parent=5 // pred_fallthru
      _
    %p4498 = scmp.le.s32.totalorder 2, %s20
    // Predicated region
    $region81: #{hinet_skip_block.1} parent=5 // pred_check
      %p4499 = pneg %p4498
    $region82: #{hinet_skip_block.1} parent=5 // pred_check_branch
      %4501 = sbr.rel (%p4499) target = $region84
    $region83: #{hinet_skip_block.1} parent=5 // pred_region
      %s4502 = ssub.s32 %s20, 2
      // Predicated region
      $region85: #{hinet_skip_block.1} parent=83 // pred_check
        %p4503 = pneg %p348
      $region86: #{hinet_skip_block.1} parent=83 // pred_check_branch
        %4505 = sbr.rel (%p4503) target = $region88
      $region87: #{hinet_skip_block.1} parent=83 // pred_region
        %p4506 = scmp.lt.s32.totalorder %s26, 1
        %s4507 = scalar_select %p4506, %s26, 1
        %s4508 = smul.addr %s4507, 3
        %s4509 = smul.addr %s4508, 4
        %s4510 = scalar_lea.vmem %s14, %s4509
      $region88: #{hinet_skip_block.1} parent=83 // pred_fallthru
        _
    $region84: #{hinet_skip_block.1} parent=5 // pred_fallthru
      _
  $region6: #{hinet_skip_block.1} parent=0 // loop_footer
    %s24 = sadd.s32 1, %s20
  $region7: #{hinet_skip_block.1} parent=0 // loop_footer_branch
    %19 = sbr.rel target = $region3
  $region8: #{hinet_skip_block.1} parent=0 // loop_exit
    _

</llo_original>
